<compile_context>
chip_gen: v7x
topology: tpu7x:2x2x1
jax: 0.10.0
libtpu: 0.0.40
codegen_flags: <defaults>
</compile_context>

<pallas_src>
import numpy as np
import jax
import jax.numpy as jnp
from jax.experimental import pallas as pl
from jax.experimental.pallas import tpu as pltpu

EPS = 1e-5                                          # BatchNorm1d default eps
SQRT_HALF = np.float32(np.sqrt(np.float32(0.5)))    # torch.sqrt(FloatTensor([0.5]))
LANE = 128


def _round_up(x, m):
    return ((x + m - 1) // m) * m


def _choose_block_rows(N, vbs, *, max_rows=1024, min_grid=2):
    """Largest multiple of `vbs` that divides N, capped at `max_rows`, while
    still leaving at least `min_grid` grid steps (pipeline overlap)."""
    # TODO(synk): make min_grid core-count aware (>= 2 steps per TensorCore on
    # multi-core parts such as v7x).
    best = None
    r = vbs
    lim = min(N, max_rows)
    while r <= lim:
        if N % r == 0 and N // r >= min_grid:
            best = r
        r += vbs
    if best is None:
        # Fall back to the whole batch in one step (still a multiple of vbs).
        best = N if N <= max_rows else vbs
    return best


def _make_glu_chain_kernel(n_layers, first, n_vb, vbs, out_dim, out_p):
    """Kernel processing one block of R = n_vb * vbs rows through all layers.

    Per layer: one fused (value|gate) bf16 MXU matmul with f32 accumulation,
    Ghost BatchNorm (training-mode, biased variance) per virtual batch with a
    folded affine, GLU gate, and the sqrt(0.5)-scaled residual.
    """
    two_out_p = 2 * out_p

    def kernel(x_ref, bn_ref, *rest):
        o_ref = rest[-1]
        w_refs = rest[:-1]                      # one fused (K_i, 2*out_p) bf16 weight per layer
        x = x_ref[...]                          # (R, in_dim) bf16  (layer-0 MXU operand)

        for i in range(n_layers):
            w = w_refs[i][...]                  # (K_i, 2*out_p) bf16, value|gate packed
            lhs = x if i == 0 else x.astype(jnp.bfloat16)
            h = jnp.dot(lhs, w, preferred_element_type=jnp.float32)   # (R, 2*out_p) f32

            # Ghost BatchNorm per virtual batch, affine folded into scale/shift
            # computed on the small (n_vb, 1, 2*out_p) stats tensor.
            h3 = h.reshape(n_vb, vbs, two_out_p)
            m = jnp.mean(h3, axis=1, keepdims=True)
            d = h3 - m
            v = jnp.mean(d * d, axis=1, keepdims=True)

            gb = bn_ref[2 * i:2 * i + 2, :]                    # (2, 2*out_p) f32
            gamma = gb[0:1, :].reshape(1, 1, two_out_p)
            beta = gb[1:2, :].reshape(1, 1, two_out_p)
            scale = jax.lax.rsqrt(v + EPS) * gamma             # (n_vb, 1, 2*out_p): cheap
            hn = (d * scale + beta).reshape(n_vb * vbs, two_out_p)

            hv = hn[:, :out_p]                 # 128-aligned slices: free
            hg = hn[:, out_p:]
            # NOTE: jax.nn.sigmoid kept (portable in interpret + Mosaic); the
            # exp lands on the EUP slot either way.
            g = hv * jax.nn.sigmoid(hg)        # GLU gate; padded lanes stay exactly 0

            if i == 0 and first:
                x = g
            else:
                x = (x.astype(jnp.float32) + g) * SQRT_HALF

        o_ref[...] = x[:, :out_dim].astype(o_ref.dtype)

    return kernel


def prepare_glu_chain_params(weights, gammas, betas):
    """One-time host-side packing of PyTorch-layout parameters.

    weights[i]: (2*out_dim, in_dim_i) Linear(bias=False) weight.
    gammas[i]/betas[i]: BatchNorm1d affine params of length 2*out_dim.

    Returns padded, pre-transposed, value|gate-fused bf16 weights (value half
    in lanes [0, out_dim), gate half in lanes [out_p, out_p+out_dim)) plus a
    packed f32 gamma/beta table.  Padded lanes get gamma=beta=0 so they stay
    exactly zero through the whole chain.
    """
    n_layers = len(weights)
    w0 = np.asarray(weights[0], np.float32)
    out_dim = w0.shape[0] // 2
    in_dim = w0.shape[1]
    out_p = _round_up(out_dim, LANE)
    two_out_p = 2 * out_p

    w_list = []
    for i, w in enumerate(weights):
        w = np.asarray(w, np.float32)                      # (2*out_dim, d_in)
        d_in = w.shape[1]
        # Layer 0 keeps its true (unpadded) contraction dim; layers >= 1
        # consume the lane-padded carried activation, so pad K to out_p.
        k = d_in if i == 0 else out_p
        wp = np.zeros((k, two_out_p), np.float32)
        wp[:d_in, :out_dim] = w[:out_dim, :].T             # value half
        wp[:d_in, out_p:out_p + out_dim] = w[out_dim:, :].T  # gate half
        w_list.append(jnp.asarray(wp, dtype=jnp.bfloat16))

    bn = np.zeros((2 * n_layers, two_out_p), np.float32)
    for i in range(n_layers):
        g = np.asarray(gammas[i], np.float32)
        b = np.asarray(betas[i], np.float32)
        bn[2 * i, :out_dim] = g[:out_dim]
        bn[2 * i, out_p:out_p + out_dim] = g[out_dim:]
        bn[2 * i + 1, :out_dim] = b[:out_dim]
        bn[2 * i + 1, out_p:out_p + out_dim] = b[out_dim:]

    return {"in_dim": in_dim, "out_dim": out_dim, "out_p": out_p,
            "weights": tuple(w_list), "bn": jnp.asarray(bn)}


def glu_chain_forward(x, params, *, first=True, virtual_batch_size=128,
                      block_rows=None):
    """Fused chain of GLU layers (Linear -> GBN -> GLU -> residual)."""
    N = x.shape[0]
    in_dim, out_dim, out_p = params["in_dim"], params["out_dim"], params["out_p"]
    w_list, bn = params["weights"], params["bn"]
    n_layers = len(w_list)
    assert x.shape[1] == in_dim

    vbs = virtual_batch_size
    assert N % vbs == 0, "demo assumes batch divisible by virtual_batch_size"
    # TODO(synk): ragged last ghost-batch chunk (N % vbs != 0) needs a masked-stats path.

    if block_rows is None:
        block_rows = _choose_block_rows(N, vbs)
    R = block_rows
    assert R % vbs == 0 and N % R == 0
    n_vb = R // vbs
    grid = (N // R,)

    # bf16 input: layer 0 already consumes bf16 MXU operands, so this is
    # lossless w.r.t. the kernel's precision policy and halves input HBM traffic.
    xb = x.astype(jnp.bfloat16)

    kernel = _make_glu_chain_kernel(n_layers, first, n_vb, vbs, out_dim, out_p)

    in_specs = [pl.BlockSpec((R, in_dim), lambda c: (c, 0)),
                pl.BlockSpec(bn.shape, lambda c: (0, 0))]
    in_specs += [pl.BlockSpec(w.shape, lambda c: (0, 0)) for w in w_list]

    # TODO(synk): for much deeper chains / larger R, wrap the homogeneous
    # layers in lax.fori_loop (stacked weights) to bound VMEM live ranges on
    # 64 MiB-VMEM parts.
    y = pl.pallas_call(
        kernel,
        out_shape=jax.ShapeDtypeStruct((N, out_dim), jnp.float32),
        grid=grid,
        in_specs=in_specs,
        out_specs=pl.BlockSpec((R, out_dim), lambda c: (c, 0)),
        compiler_params=pltpu.CompilerParams(
            dimension_semantics=("parallel",)),
    )(xb, bn, *w_list)
    return y


def prepare_feat_transformer_params(shared_weights, shared_gammas, shared_betas,
                                    ind_weights, ind_gammas, ind_betas):
    """Hoisted, once-per-model parameter packing for FeatTransformer."""
    weights = list(shared_weights) + list(ind_weights)
    gammas = list(shared_gammas) + list(ind_gammas)
    betas = list(shared_betas) + list(ind_betas)
    if not weights:                      # both blocks are Identity
        return None
    return prepare_glu_chain_params(weights, gammas, betas)


def feat_transformer_pallas(x, params, *, virtual_batch_size=128, block_rows=None):
    """FeatTransformer forward: shared GLU_Block(first=True) then independent
    GLU_Block(first=False), fused into a single residual GLU chain kernel."""
    if params is None:
        return x
    # TODO(synk): BatchNorm running-stat (momentum) updates are training-side
    # state and do not affect this forward output; the kernel always uses
    # training-mode (batch) statistics like the PyTorch module in train().
    return glu_chain_forward(x, params, first=True,
                             virtual_batch_size=virtual_batch_size,
                             block_rows=block_rows)


def feat_transformer_ref(x, weights, gammas, betas, *, virtual_batch_size,
                         matmul_dtype=jnp.float32, precision=None):
    """Pure-JAX reference mirroring the PyTorch forward (training-mode GBN).
    `matmul_dtype` selects the matmul-operand precision so the kernel's
    bf16-MXU policy can be mirrored."""
    N = x.shape[0]
    n_layers = len(weights)
    out_dim = weights[0].shape[0] // 2
    vbs = virtual_batch_size
    assert N % vbs == 0

    def gbn(h, gamma, beta):
        h3 = h.reshape(N // vbs, vbs, h.shape[-1])
        m = jnp.mean(h3, axis=1, keepdims=True)
        v = jnp.mean((h3 - m) ** 2, axis=1, keepdims=True)
        h3 = (h3 - m) * jax.lax.rsqrt(v + EPS) * gamma + beta
        return h3.reshape(N, h.shape[-1])

    def layer(xi, i):
        h = jnp.dot(xi.astype(matmul_dtype), weights[i].T.astype(matmul_dtype),
                    preferred_element_type=jnp.float32, precision=precision)
        h = gbn(h, gammas[i][None, None, :], betas[i][None, None, :])
        return h[:, :out_dim] * jax.nn.sigmoid(h[:, out_dim:])

    y = layer(x, 0)                      # first=True: layer 0 has no residual
    for i in range(1, n_layers):
        y = (y + layer(y, i)) * SQRT_HALF
    return y


def xavier_normal_glu(key, in_dim, out_dim2):
    # Matches initialize_glu: xavier_normal_ with gain = sqrt((in+2*out)/sqrt(in))
    gain = np.sqrt((in_dim + out_dim2) / np.sqrt(in_dim))
    std = np.float32(gain * np.sqrt(2.0 / (in_dim + out_dim2)))
    return std * jax.random.normal(key, (out_dim2, in_dim), dtype=jnp.float32)


if __name__ == "__main__":
    # FeatTransformer(input_dim=16, output_dim=16, shared_layers=[2 Linear],
    #                 n_glu_independent=2, virtual_batch_size=32)
    N, input_dim, output_dim = 256, 16, 16
    n_shared, n_independent, vbs = 2, 2, 32
    n_layers = n_shared + n_independent

    key = jax.random.PRNGKey(0)
    keys = jax.random.split(key, 1 + n_layers + 2)
    x = jax.random.normal(keys[0], (N, input_dim), dtype=jnp.float32)

    dims_in = [input_dim] + [output_dim] * (n_layers - 1)
    weights = [xavier_normal_glu(keys[1 + i], dims_in[i], 2 * output_dim)
               for i in range(n_layers)]
    # BatchNorm1d default init is gamma=1, beta=0; perturb deterministically to
    # exercise the affine path.
    gkey, bkey = keys[-2], keys[-1]
    gammas = [1.0 + 0.1 * jax.random.normal(jax.random.fold_in(gkey, i),
                                            (2 * output_dim,), jnp.float32)
              for i in range(n_layers)]
    betas = [0.05 * jax.random.normal(jax.random.fold_in(bkey, i),
                                      (2 * output_dim,), jnp.float32)
             for i in range(n_layers)]

    params = prepare_feat_transformer_params(
        weights[:n_shared], gammas[:n_shared], betas[:n_shared],
        weights[n_shared:], gammas[n_shared:], betas[n_shared:])

    out = feat_transformer_pallas(x, params, virtual_batch_size=vbs)
    out = jax.block_until_ready(out)
    assert out.shape == (N, output_dim)

    # References: (a) bf16 matmul operands (matches the kernel's MXU policy),
    # (b) full-f32 HIGHEST-precision matmuls (PyTorch semantics).  Norm-based
    # relative-error checks are used because element-wise tolerances are
    # brittle under bf16 rounding-flip amplification through BatchNorm.
    ref_bf16 = feat_transformer_ref(x, weights, gammas, betas,
                                    virtual_batch_size=vbs,
                                    matmul_dtype=jnp.bfloat16)
    ref_f32 = feat_transformer_ref(x, weights, gammas, betas,
                                   virtual_batch_size=vbs,
                                   matmul_dtype=jnp.float32,
                                   precision=jax.lax.Precision.HIGHEST)

    def rel_err(a, b):
        a = a.astype(jnp.float32)
        b = b.astype(jnp.float32)
        return float(jnp.linalg.norm(a - b) / (jnp.linalg.norm(b) + 1e-12))

    e_bf16 = rel_err(out, ref_bf16)
    e_f32 = rel_err(out, ref_f32)
    assert e_bf16 < 1e-2, f"kernel vs bf16-matched reference rel err {e_bf16:.3e}"
    assert e_f32 < 5e-2, f"kernel vs f32 reference rel err {e_f32:.3e}"

    print("KERNEL_OK")
</pallas_src>

<mosaic_0001>
module attributes {stable_mosaic.version = 11 : i64} {
  func.func @kernel(%arg0: i32, %arg1: memref<128x16xbf16, #tpu.memory_space<vmem>>, %arg2: memref<8x256xf32, #tpu.memory_space<vmem>>, %arg3: memref<16x256xbf16, #tpu.memory_space<vmem>>, %arg4: memref<128x256xbf16, #tpu.memory_space<vmem>>, %arg5: memref<128x256xbf16, #tpu.memory_space<vmem>>, %arg6: memref<128x256xbf16, #tpu.memory_space<vmem>>, %arg7: memref<128x16xf32, #tpu.memory_space<vmem>>) attributes {dimension_semantics = [#tpu.dimension_semantics<parallel>], iteration_bounds = array<i64: 2>, scalar_prefetch = 0 : i64, scratch_operands = 0 : i64, tpu.core_type = #tpu.core_type<tc>, window_params = [{transform_indices = @transform_0, window_bounds = array<i64: 128, 16>}, {pipeline_mode = #tpu.pipeline_mode<synchronous>, transform_indices = @transform_1, window_bounds = array<i64: 8, 256>}, {pipeline_mode = #tpu.pipeline_mode<synchronous>, transform_indices = @transform_2, window_bounds = array<i64: 16, 256>}, {pipeline_mode = #tpu.pipeline_mode<synchronous>, transform_indices = @transform_3, window_bounds = array<i64: 128, 256>}, {pipeline_mode = #tpu.pipeline_mode<synchronous>, transform_indices = @transform_4, window_bounds = array<i64: 128, 256>}, {pipeline_mode = #tpu.pipeline_mode<synchronous>, transform_indices = @transform_5, window_bounds = array<i64: 128, 256>}, {transform_indices = @transform_6, window_bounds = array<i64: 128, 16>}]} {
    %c0 = arith.constant 0 : index
    %c0_0 = arith.constant 0 : index
    %0 = vector.load %arg1[%c0, %c0_0] : memref<128x16xbf16, #tpu.memory_space<vmem>>, vector<128x16xbf16>
    %c0_1 = arith.constant 0 : index
    %c0_2 = arith.constant 0 : index
    %1 = vector.load %arg3[%c0_1, %c0_2] : memref<16x256xbf16, #tpu.memory_space<vmem>>, vector<16x256xbf16>
    %cst = arith.constant dense<0.000000e+00> : vector<128x256xf32>
    %2 = tpu.matmul %0, %1, %cst {dimension_numbers = #tpu.dot_dimension_numbers<[1], [0], [0], [1], [0, 0, 1, 1], [], []>} : vector<128x16xbf16>, vector<16x256xbf16>, vector<128x256xf32> -> vector<128x256xf32>
    %3 = vector.shape_cast %2 : vector<128x256xf32> to vector<4x32x256xf32>
    %cst_3 = arith.constant dense<0.000000e+00> : vector<4x256xf32>
    %4 = vector.multi_reduction <add>, %3, %cst_3 [1] : vector<4x32x256xf32> to vector<4x256xf32>
    %5 = vector.shape_cast %4 : vector<4x256xf32> to vector<4x1x256xf32>
    %cst_4 = arith.constant 3.200000e+01 : f32
    %6 = vector.broadcast %cst_4 : f32 to vector<4x1x256xf32>
    %7 = arith.divf %5, %6 : vector<4x1x256xf32>
    %8 = vector.broadcast %7 : vector<4x1x256xf32> to vector<4x32x256xf32>
    %9 = arith.subf %3, %8 : vector<4x32x256xf32>
    %10 = arith.mulf %9, %9 : vector<4x32x256xf32>
    %cst_5 = arith.constant dense<0.000000e+00> : vector<4x256xf32>
    %11 = vector.multi_reduction <add>, %10, %cst_5 [1] : vector<4x32x256xf32> to vector<4x256xf32>
    %12 = vector.shape_cast %11 : vector<4x256xf32> to vector<4x1x256xf32>
    %cst_6 = arith.constant 3.200000e+01 : f32
    %13 = vector.broadcast %cst_6 : f32 to vector<4x1x256xf32>
    %14 = arith.divf %12, %13 : vector<4x1x256xf32>
    %c0_7 = arith.constant 0 : index
    %c0_8 = arith.constant 0 : index
    %15 = vector.load %arg2[%c0_7, %c0_8] : memref<8x256xf32, #tpu.memory_space<vmem>>, vector<2x256xf32>
    %16 = vector.extract_strided_slice %15 {offsets = [0, 0], sizes = [1, 256], strides = [1, 1]} : vector<2x256xf32> to vector<1x256xf32>
    %17 = vector.shape_cast %16 : vector<1x256xf32> to vector<1x1x256xf32>
    %18 = vector.extract_strided_slice %15 {offsets = [1, 0], sizes = [1, 256], strides = [1, 1]} : vector<2x256xf32> to vector<1x256xf32>
    %19 = vector.shape_cast %18 : vector<1x256xf32> to vector<1x1x256xf32>
    %cst_9 = arith.constant 9.99999974E-6 : f32
    %20 = vector.broadcast %cst_9 : f32 to vector<4x1x256xf32>
    %21 = arith.addf %14, %20 : vector<4x1x256xf32>
    %22 = math.rsqrt %21 : vector<4x1x256xf32>
    %23 = vector.broadcast %17 : vector<1x1x256xf32> to vector<4x1x256xf32>
    %24 = arith.mulf %22, %23 : vector<4x1x256xf32>
    %25 = vector.broadcast %24 : vector<4x1x256xf32> to vector<4x32x256xf32>
    %26 = arith.mulf %9, %25 : vector<4x32x256xf32>
    %27 = vector.broadcast %19 : vector<1x1x256xf32> to vector<4x32x256xf32>
    %28 = arith.addf %26, %27 : vector<4x32x256xf32>
    %29 = vector.shape_cast %28 : vector<4x32x256xf32> to vector<128x256xf32>
    %30 = vector.extract_strided_slice %29 {offsets = [0, 0], sizes = [128, 128], strides = [1, 1]} : vector<128x256xf32> to vector<128x128xf32>
    %31 = vector.extract_strided_slice %29 {offsets = [0, 128], sizes = [128, 128], strides = [1, 1]} : vector<128x256xf32> to vector<128x128xf32>
    %32 = arith.negf %31 : vector<128x128xf32>
    %33 = math.exp %32 : vector<128x128xf32>
    %cst_10 = arith.constant 1.000000e+00 : f32
    %34 = vector.broadcast %cst_10 : f32 to vector<128x128xf32>
    %35 = arith.addf %34, %33 : vector<128x128xf32>
    %36 = arith.divf %34, %35 : vector<128x128xf32>
    %37 = arith.mulf %30, %36 : vector<128x128xf32>
    %c0_11 = arith.constant 0 : index
    %c0_12 = arith.constant 0 : index
    %38 = vector.load %arg4[%c0_11, %c0_12] : memref<128x256xbf16, #tpu.memory_space<vmem>>, vector<128x256xbf16>
    %39 = arith.truncf %37 : vector<128x128xf32> to vector<128x128xbf16>
    %cst_13 = arith.constant dense<0.000000e+00> : vector<128x256xf32>
    %40 = tpu.matmul %39, %38, %cst_13 {dimension_numbers = #tpu.dot_dimension_numbers<[1], [0], [0], [1], [0, 0, 1, 1], [], []>} : vector<128x128xbf16>, vector<128x256xbf16>, vector<128x256xf32> -> vector<128x256xf32>
    %41 = vector.shape_cast %40 : vector<128x256xf32> to vector<4x32x256xf32>
    %cst_14 = arith.constant dense<0.000000e+00> : vector<4x256xf32>
    %42 = vector.multi_reduction <add>, %41, %cst_14 [1] : vector<4x32x256xf32> to vector<4x256xf32>
    %43 = vector.shape_cast %42 : vector<4x256xf32> to vector<4x1x256xf32>
    %cst_15 = arith.constant 3.200000e+01 : f32
    %44 = vector.broadcast %cst_15 : f32 to vector<4x1x256xf32>
    %45 = arith.divf %43, %44 : vector<4x1x256xf32>
    %46 = vector.broadcast %45 : vector<4x1x256xf32> to vector<4x32x256xf32>
    %47 = arith.subf %41, %46 : vector<4x32x256xf32>
    %48 = arith.mulf %47, %47 : vector<4x32x256xf32>
    %cst_16 = arith.constant dense<0.000000e+00> : vector<4x256xf32>
    %49 = vector.multi_reduction <add>, %48, %cst_16 [1] : vector<4x32x256xf32> to vector<4x256xf32>
    %50 = vector.shape_cast %49 : vector<4x256xf32> to vector<4x1x256xf32>
    %cst_17 = arith.constant 3.200000e+01 : f32
    %51 = vector.broadcast %cst_17 : f32 to vector<4x1x256xf32>
    %52 = arith.divf %50, %51 : vector<4x1x256xf32>
    %c2 = arith.constant 2 : index
    %c0_18 = arith.constant 0 : index
    %53 = vector.load %arg2[%c2, %c0_18] : memref<8x256xf32, #tpu.memory_space<vmem>>, vector<2x256xf32>
    %54 = vector.extract_strided_slice %53 {offsets = [0, 0], sizes = [1, 256], strides = [1, 1]} : vector<2x256xf32> to vector<1x256xf32>
    %55 = vector.shape_cast %54 : vector<1x256xf32> to vector<1x1x256xf32>
    %56 = vector.extract_strided_slice %53 {offsets = [1, 0], sizes = [1, 256], strides = [1, 1]} : vector<2x256xf32> to vector<1x256xf32>
    %57 = vector.shape_cast %56 : vector<1x256xf32> to vector<1x1x256xf32>
    %cst_19 = arith.constant 9.99999974E-6 : f32
    %58 = vector.broadcast %cst_19 : f32 to vector<4x1x256xf32>
    %59 = arith.addf %52, %58 : vector<4x1x256xf32>
    %60 = math.rsqrt %59 : vector<4x1x256xf32>
    %61 = vector.broadcast %55 : vector<1x1x256xf32> to vector<4x1x256xf32>
    %62 = arith.mulf %60, %61 : vector<4x1x256xf32>
    %63 = vector.broadcast %62 : vector<4x1x256xf32> to vector<4x32x256xf32>
    %64 = arith.mulf %47, %63 : vector<4x32x256xf32>
    %65 = vector.broadcast %57 : vector<1x1x256xf32> to vector<4x32x256xf32>
    %66 = arith.addf %64, %65 : vector<4x32x256xf32>
    %67 = vector.shape_cast %66 : vector<4x32x256xf32> to vector<128x256xf32>
    %68 = vector.extract_strided_slice %67 {offsets = [0, 0], sizes = [128, 128], strides = [1, 1]} : vector<128x256xf32> to vector<128x128xf32>
    %69 = vector.extract_strided_slice %67 {offsets = [0, 128], sizes = [128, 128], strides = [1, 1]} : vector<128x256xf32> to vector<128x128xf32>
    %70 = arith.negf %69 : vector<128x128xf32>
    %71 = math.exp %70 : vector<128x128xf32>
    %cst_20 = arith.constant 1.000000e+00 : f32
    %72 = vector.broadcast %cst_20 : f32 to vector<128x128xf32>
    %73 = arith.addf %72, %71 : vector<128x128xf32>
    %74 = arith.divf %72, %73 : vector<128x128xf32>
    %75 = arith.mulf %68, %74 : vector<128x128xf32>
    %76 = arith.addf %37, %75 : vector<128x128xf32>
    %cst_21 = arith.constant 0.707106769 : f32
    %77 = vector.broadcast %cst_21 : f32 to vector<128x128xf32>
    %78 = arith.mulf %76, %77 : vector<128x128xf32>
    %c0_22 = arith.constant 0 : index
    %c0_23 = arith.constant 0 : index
    %79 = vector.load %arg5[%c0_22, %c0_23] : memref<128x256xbf16, #tpu.memory_space<vmem>>, vector<128x256xbf16>
    %80 = arith.truncf %78 : vector<128x128xf32> to vector<128x128xbf16>
    %cst_24 = arith.constant dense<0.000000e+00> : vector<128x256xf32>
    %81 = tpu.matmul %80, %79, %cst_24 {dimension_numbers = #tpu.dot_dimension_numbers<[1], [0], [0], [1], [0, 0, 1, 1], [], []>} : vector<128x128xbf16>, vector<128x256xbf16>, vector<128x256xf32> -> vector<128x256xf32>
    %82 = vector.shape_cast %81 : vector<128x256xf32> to vector<4x32x256xf32>
    %cst_25 = arith.constant dense<0.000000e+00> : vector<4x256xf32>
    %83 = vector.multi_reduction <add>, %82, %cst_25 [1] : vector<4x32x256xf32> to vector<4x256xf32>
    %84 = vector.shape_cast %83 : vector<4x256xf32> to vector<4x1x256xf32>
    %cst_26 = arith.constant 3.200000e+01 : f32
    %85 = vector.broadcast %cst_26 : f32 to vector<4x1x256xf32>
    %86 = arith.divf %84, %85 : vector<4x1x256xf32>
    %87 = vector.broadcast %86 : vector<4x1x256xf32> to vector<4x32x256xf32>
    %88 = arith.subf %82, %87 : vector<4x32x256xf32>
    %89 = arith.mulf %88, %88 : vector<4x32x256xf32>
    %cst_27 = arith.constant dense<0.000000e+00> : vector<4x256xf32>
    %90 = vector.multi_reduction <add>, %89, %cst_27 [1] : vector<4x32x256xf32> to vector<4x256xf32>
    %91 = vector.shape_cast %90 : vector<4x256xf32> to vector<4x1x256xf32>
    %cst_28 = arith.constant 3.200000e+01 : f32
    %92 = vector.broadcast %cst_28 : f32 to vector<4x1x256xf32>
    %93 = arith.divf %91, %92 : vector<4x1x256xf32>
    %c4 = arith.constant 4 : index
    %c0_29 = arith.constant 0 : index
    %94 = vector.load %arg2[%c4, %c0_29] : memref<8x256xf32, #tpu.memory_space<vmem>>, vector<2x256xf32>
    %95 = vector.extract_strided_slice %94 {offsets = [0, 0], sizes = [1, 256], strides = [1, 1]} : vector<2x256xf32> to vector<1x256xf32>
    %96 = vector.shape_cast %95 : vector<1x256xf32> to vector<1x1x256xf32>
    %97 = vector.extract_strided_slice %94 {offsets = [1, 0], sizes = [1, 256], strides = [1, 1]} : vector<2x256xf32> to vector<1x256xf32>
    %98 = vector.shape_cast %97 : vector<1x256xf32> to vector<1x1x256xf32>
    %cst_30 = arith.constant 9.99999974E-6 : f32
    %99 = vector.broadcast %cst_30 : f32 to vector<4x1x256xf32>
    %100 = arith.addf %93, %99 : vector<4x1x256xf32>
    %101 = math.rsqrt %100 : vector<4x1x256xf32>
    %102 = vector.broadcast %96 : vector<1x1x256xf32> to vector<4x1x256xf32>
    %103 = arith.mulf %101, %102 : vector<4x1x256xf32>
    %104 = vector.broadcast %103 : vector<4x1x256xf32> to vector<4x32x256xf32>
    %105 = arith.mulf %88, %104 : vector<4x32x256xf32>
    %106 = vector.broadcast %98 : vector<1x1x256xf32> to vector<4x32x256xf32>
    %107 = arith.addf %105, %106 : vector<4x32x256xf32>
    %108 = vector.shape_cast %107 : vector<4x32x256xf32> to vector<128x256xf32>
    %109 = vector.extract_strided_slice %108 {offsets = [0, 0], sizes = [128, 128], strides = [1, 1]} : vector<128x256xf32> to vector<128x128xf32>
    %110 = vector.extract_strided_slice %108 {offsets = [0, 128], sizes = [128, 128], strides = [1, 1]} : vector<128x256xf32> to vector<128x128xf32>
    %111 = arith.negf %110 : vector<128x128xf32>
    %112 = math.exp %111 : vector<128x128xf32>
    %cst_31 = arith.constant 1.000000e+00 : f32
    %113 = vector.broadcast %cst_31 : f32 to vector<128x128xf32>
    %114 = arith.addf %113, %112 : vector<128x128xf32>
    %115 = arith.divf %113, %114 : vector<128x128xf32>
    %116 = arith.mulf %109, %115 : vector<128x128xf32>
    %117 = arith.addf %78, %116 : vector<128x128xf32>
    %cst_32 = arith.constant 0.707106769 : f32
    %118 = vector.broadcast %cst_32 : f32 to vector<128x128xf32>
    %119 = arith.mulf %117, %118 : vector<128x128xf32>
    %c0_33 = arith.constant 0 : index
    %c0_34 = arith.constant 0 : index
    %120 = vector.load %arg6[%c0_33, %c0_34] : memref<128x256xbf16, #tpu.memory_space<vmem>>, vector<128x256xbf16>
    %121 = arith.truncf %119 : vector<128x128xf32> to vector<128x128xbf16>
    %cst_35 = arith.constant dense<0.000000e+00> : vector<128x256xf32>
    %122 = tpu.matmul %121, %120, %cst_35 {dimension_numbers = #tpu.dot_dimension_numbers<[1], [0], [0], [1], [0, 0, 1, 1], [], []>} : vector<128x128xbf16>, vector<128x256xbf16>, vector<128x256xf32> -> vector<128x256xf32>
    %123 = vector.shape_cast %122 : vector<128x256xf32> to vector<4x32x256xf32>
    %cst_36 = arith.constant dense<0.000000e+00> : vector<4x256xf32>
    %124 = vector.multi_reduction <add>, %123, %cst_36 [1] : vector<4x32x256xf32> to vector<4x256xf32>
    %125 = vector.shape_cast %124 : vector<4x256xf32> to vector<4x1x256xf32>
    %cst_37 = arith.constant 3.200000e+01 : f32
    %126 = vector.broadcast %cst_37 : f32 to vector<4x1x256xf32>
    %127 = arith.divf %125, %126 : vector<4x1x256xf32>
    %128 = vector.broadcast %127 : vector<4x1x256xf32> to vector<4x32x256xf32>
    %129 = arith.subf %123, %128 : vector<4x32x256xf32>
    %130 = arith.mulf %129, %129 : vector<4x32x256xf32>
    %cst_38 = arith.constant dense<0.000000e+00> : vector<4x256xf32>
    %131 = vector.multi_reduction <add>, %130, %cst_38 [1] : vector<4x32x256xf32> to vector<4x256xf32>
    %132 = vector.shape_cast %131 : vector<4x256xf32> to vector<4x1x256xf32>
    %cst_39 = arith.constant 3.200000e+01 : f32
    %133 = vector.broadcast %cst_39 : f32 to vector<4x1x256xf32>
    %134 = arith.divf %132, %133 : vector<4x1x256xf32>
    %c6 = arith.constant 6 : index
    %c0_40 = arith.constant 0 : index
    %135 = vector.load %arg2[%c6, %c0_40] : memref<8x256xf32, #tpu.memory_space<vmem>>, vector<2x256xf32>
    %136 = vector.extract_strided_slice %135 {offsets = [0, 0], sizes = [1, 256], strides = [1, 1]} : vector<2x256xf32> to vector<1x256xf32>
    %137 = vector.shape_cast %136 : vector<1x256xf32> to vector<1x1x256xf32>
    %138 = vector.extract_strided_slice %135 {offsets = [1, 0], sizes = [1, 256], strides = [1, 1]} : vector<2x256xf32> to vector<1x256xf32>
    %139 = vector.shape_cast %138 : vector<1x256xf32> to vector<1x1x256xf32>
    %cst_41 = arith.constant 9.99999974E-6 : f32
    %140 = vector.broadcast %cst_41 : f32 to vector<4x1x256xf32>
    %141 = arith.addf %134, %140 : vector<4x1x256xf32>
    %142 = math.rsqrt %141 : vector<4x1x256xf32>
    %143 = vector.broadcast %137 : vector<1x1x256xf32> to vector<4x1x256xf32>
    %144 = arith.mulf %142, %143 : vector<4x1x256xf32>
    %145 = vector.broadcast %144 : vector<4x1x256xf32> to vector<4x32x256xf32>
    %146 = arith.mulf %129, %145 : vector<4x32x256xf32>
    %147 = vector.broadcast %139 : vector<1x1x256xf32> to vector<4x32x256xf32>
    %148 = arith.addf %146, %147 : vector<4x32x256xf32>
    %149 = vector.shape_cast %148 : vector<4x32x256xf32> to vector<128x256xf32>
    %150 = vector.extract_strided_slice %149 {offsets = [0, 0], sizes = [128, 128], strides = [1, 1]} : vector<128x256xf32> to vector<128x128xf32>
    %151 = vector.extract_strided_slice %149 {offsets = [0, 128], sizes = [128, 128], strides = [1, 1]} : vector<128x256xf32> to vector<128x128xf32>
    %152 = arith.negf %151 : vector<128x128xf32>
    %153 = math.exp %152 : vector<128x128xf32>
    %cst_42 = arith.constant 1.000000e+00 : f32
    %154 = vector.broadcast %cst_42 : f32 to vector<128x128xf32>
    %155 = arith.addf %154, %153 : vector<128x128xf32>
    %156 = arith.divf %154, %155 : vector<128x128xf32>
    %157 = arith.mulf %150, %156 : vector<128x128xf32>
    %158 = arith.addf %119, %157 : vector<128x128xf32>
    %cst_43 = arith.constant 0.707106769 : f32
    %159 = vector.broadcast %cst_43 : f32 to vector<128x128xf32>
    %160 = arith.mulf %158, %159 : vector<128x128xf32>
    %161 = vector.extract_strided_slice %160 {offsets = [0, 0], sizes = [128, 16], strides = [1, 1]} : vector<128x128xf32> to vector<128x16xf32>
    %c0_44 = arith.constant 0 : index
    %c0_45 = arith.constant 0 : index
    %162 = vector.load %arg7[%c0_44, %c0_45] : memref<128x16xf32, #tpu.memory_space<vmem>>, vector<128x16xf32>
    tpu.vector_store %arg7[%c0_44, %c0_45], %161 {strides = array<i32>} : memref<128x16xf32, #tpu.memory_space<vmem>>, vector<128x16xf32>,
    return
  }
  func.func @transform_0(%arg0: i32) -> (i32, i32) {
    %c0_i32 = arith.constant 0 : i32
    %c0_i32_0 = arith.constant 0 : i32
    return %arg0, %c0_i32 : i32, i32
  }
  func.func @transform_1(%arg0: i32) -> (i32, i32) {
    %c0_i32 = arith.constant 0 : i32
    %c0_i32_0 = arith.constant 0 : i32
    %c0_i32_1 = arith.constant 0 : i32
    return %c0_i32, %c0_i32_0 : i32, i32
  }
  func.func @transform_2(%arg0: i32) -> (i32, i32) {
    %c0_i32 = arith.constant 0 : i32
    %c0_i32_0 = arith.constant 0 : i32
    %c0_i32_1 = arith.constant 0 : i32
    return %c0_i32, %c0_i32_0 : i32, i32
  }
  func.func @transform_3(%arg0: i32) -> (i32, i32) {
    %c0_i32 = arith.constant 0 : i32
    %c0_i32_0 = arith.constant 0 : i32
    %c0_i32_1 = arith.constant 0 : i32
    return %c0_i32, %c0_i32_0 : i32, i32
  }
  func.func @transform_4(%arg0: i32) -> (i32, i32) {
    %c0_i32 = arith.constant 0 : i32
    %c0_i32_0 = arith.constant 0 : i32
    %c0_i32_1 = arith.constant 0 : i32
    return %c0_i32, %c0_i32_0 : i32, i32
  }
  func.func @transform_5(%arg0: i32) -> (i32, i32) {
    %c0_i32 = arith.constant 0 : i32
    %c0_i32_0 = arith.constant 0 : i32
    %c0_i32_1 = arith.constant 0 : i32
    return %c0_i32, %c0_i32_0 : i32, i32
  }
  func.func @transform_6(%arg0: i32) -> (i32, i32) {
    %c0_i32 = arith.constant 0 : i32
    %c0_i32_0 = arith.constant 0 : i32
    return %arg0, %c0_i32 : i32, i32
  }
}

</mosaic_0001>

<llo_original>
// kernel: tpu_custom_call.1
$region0: #{tpu_custom_call.1}
  #allocation0 [shape = 'u32[]', space=smem, size = 0x4, offset = 0x4, fixed_abs, tag = 'smem constant byte address 0x4 - core index']
  #allocation1 [shape = 'u32[144,128]{1,0:T(1,128)}', space=vmem, size = 0x12000, scoped, tag = 'internal scratch']
  %s0 = inlined_call_operand.vmem [shape: bf16[256,16], index: 0, kind: input, shape index: {}]
  %s1 = inlined_call_operand.vmem [shape: f32[8,256], index: 1, kind: input, shape index: {}]
  %s2 = inlined_call_operand.hbm [shape: bf16[16,256], index: 2, kind: input, shape index: {}]
  %s3 = inlined_call_operand.vmem [shape: bf16[128,256], index: 3, kind: input, shape index: {}]
  %s4 = inlined_call_operand.hbm [shape: bf16[128,256], index: 4, kind: input, shape index: {}]
  %s5 = inlined_call_operand.hbm [shape: bf16[128,256], index: 5, kind: input, shape index: {}]
  %s6 = inlined_call_operand.vmem [shape: f32[256,16], index: 6, kind: output, shape index: {}]
  %s7 = sld [smem:[#allocation0]]
  $region69: #{tpu_custom_call.1} parent=0
    _
  %s9 = ssub.s32 1, %s7
  %s10 = scalar_select 0, %s9, %s7
  $region1: #{tpu_custom_call.1} parent=0
    #allocation2 [shape = 'u8[8192]{0}', space=vmem, size = 0x2000, scoped, tag = 'input window, operand 2, single buffered']
    #allocation3 [shape = 's32[2]{0}', space=sflag, size = 0x8, scoped, tag = 'scoped memory for tpu_custom_call.1']
    #allocation4 [shape = 'u8[65536]{0}', space=vmem, size = 0x10000, scoped, tag = 'input window, operand 4, single buffered']
    #allocation5 [shape = 's32[1]{0}', space=sflag, size = 0x4, scoped, tag = 'scoped memory for tpu_custom_call.1']
    #allocation6 [shape = 'u8[65536]{0}', space=vmem, size = 0x10000, scoped, tag = 'input window, operand 5, single buffered']
    %11 = vsyncpa [#allocation3], 0
    %12 = vsyncpa [#allocation5], 0
    loop: start=0, step=1, limit=4
    $region2: #{tpu_custom_call.1} parent=1 // loop_pre_header
      _
    $region3: #{tpu_custom_call.1} parent=1 // loop_header
      %s14 = sphi 0, %s18
      %p15 = scmp.ge.s32.totalorder %s14, 4
      %s24 = sphi 0, %s26
      %s27 = sphi 0, %s24
      %s28 = sphi 0, %s27
      %s44 = sphi 0, %s28
      %s48 = sphi 0, %s48
      %s50 = sphi 0, %s48
      %s51 = sphi 0, %s50
      %s65 = sphi 0, %s51
      %s69 = sphi 0, %s69
      %s71 = sphi 0, %s69
      %s72 = sphi 0, %s71
      %s86 = sphi 0, %s72
      %s90 = sphi 0, %s90
      %s92 = sphi 0, %s90
      %s93 = sphi 0, %s92
      %s107 = sphi 0, %s93
      %s111 = sphi 0, %s111
      %s113 = sphi 0, %s111
      %s114 = sphi 0, %s113
      %s128 = sphi 0, %s114
      %s132 = sphi 0, %s132
      %s134 = sphi 0, %s132
      %s135 = sphi 0, %s134
      %s149 = sphi 0, %s135
      %s155 = sphi 0, %s157
      %s158 = sphi 0, %s155
      %s159 = sphi 0, %s158
      %s175 = sphi 0, %s159
    $region4: #{tpu_custom_call.1} parent=1 // loop_header_branch
      %17 = sbr.rel (%p15) target = $region8
    $region5: #{tpu_custom_call.1} parent=1 // loop_body
      %s19 = ssub.s32 %s14, 1
      %s20 = ssub.s32 %s14, 2
      %s21 = sadd.s32 %s14, 1
      %s22 = ssub.s32 %s14, %s21
      %p23 = scmp.eq.s32.totalorder %s22, 0
      %s25 = sadd.s32 %s24, 1
      %s26 = scalar_select %p23, %s24, %s25
      %p29 = pneg %p23
      %p30 = scmp.eq.s32.totalorder %s14, 1
      %p31 = por %p29, %p30
      %p32 = scmp.ne.s32.totalorder %s24, %s27
      %p33 = scmp.eq.s32.totalorder %s14, 0
      %p34 = por %p32, %p33
      %p35 = scmp.ne.s32.totalorder %s24, %s27
      %p36 = scmp.eq.s32.totalorder %s19, 1
      %p37 = por %p35, %p36
      %p38 = scmp.ne.s32.totalorder %s27, %s28
      %p39 = scmp.eq.s32.totalorder %s19, 0
      %p40 = por %p38, %p39
      %p41 = scmp.ne.s32.totalorder %s27, %s28
      %p42 = scmp.eq.s32.totalorder %s20, 1
      %p43 = por %p41, %p42
      %p45 = scmp.ne.s32.totalorder %s28, %s44
      %p46 = scmp.eq.s32.totalorder %s20, 0
      %p47 = por %p45, %p46
      %s49 = sadd.s32 %s48, 1
      %p52 = scmp.eq.s32.totalorder %s14, 1
      %p53 = scmp.ne.s32.totalorder %s48, %s50
      %p54 = scmp.eq.s32.totalorder %s14, 0
      %p55 = por %p53, %p54
      %p56 = scmp.ne.s32.totalorder %s48, %s50
      %p57 = scmp.eq.s32.totalorder %s19, 1
      %p58 = por %p56, %p57
      %p59 = scmp.ne.s32.totalorder %s50, %s51
      %p60 = scmp.eq.s32.totalorder %s19, 0
      %p61 = por %p59, %p60
      %p62 = scmp.ne.s32.totalorder %s50, %s51
      %p63 = scmp.eq.s32.totalorder %s20, 1
      %p64 = por %p62, %p63
      %p66 = scmp.ne.s32.totalorder %s51, %s65
      %p67 = scmp.eq.s32.totalorder %s20, 0
      %p68 = por %p66, %p67
      %s70 = sadd.s32 %s69, 1
      %p73 = scmp.eq.s32.totalorder %s14, 1
      %p74 = scmp.ne.s32.totalorder %s69, %s71
      %p75 = scmp.eq.s32.totalorder %s14, 0
      %p76 = por %p74, %p75
      %p77 = scmp.ne.s32.totalorder %s69, %s71
      %p78 = scmp.eq.s32.totalorder %s19, 1
      %p79 = por %p77, %p78
      %p80 = scmp.ne.s32.totalorder %s71, %s72
      %p81 = scmp.eq.s32.totalorder %s19, 0
      %p82 = por %p80, %p81
      %p83 = scmp.ne.s32.totalorder %s71, %s72
      %p84 = scmp.eq.s32.totalorder %s20, 1
      %p85 = por %p83, %p84
      %p87 = scmp.ne.s32.totalorder %s72, %s86
      %p88 = scmp.eq.s32.totalorder %s20, 0
      %p89 = por %p87, %p88
      %s91 = sadd.s32 %s90, 1
      %p94 = scmp.eq.s32.totalorder %s14, 1
      %p95 = scmp.ne.s32.totalorder %s90, %s92
      %p96 = scmp.eq.s32.totalorder %s14, 0
      %p97 = por %p95, %p96
      %p98 = scmp.ne.s32.totalorder %s90, %s92
      %p99 = scmp.eq.s32.totalorder %s19, 1
      %p100 = por %p98, %p99
      %p101 = scmp.ne.s32.totalorder %s92, %s93
      %p102 = scmp.eq.s32.totalorder %s19, 0
      %p103 = por %p101, %p102
      %p104 = scmp.ne.s32.totalorder %s92, %s93
      %p105 = scmp.eq.s32.totalorder %s20, 1
      %p106 = por %p104, %p105
      %p108 = scmp.ne.s32.totalorder %s93, %s107
      %p109 = scmp.eq.s32.totalorder %s20, 0
      %p110 = por %p108, %p109
      %s112 = sadd.s32 %s111, 1
      %p115 = scmp.eq.s32.totalorder %s14, 1
      %p116 = scmp.ne.s32.totalorder %s111, %s113
      %p117 = scmp.eq.s32.totalorder %s14, 0
      %p118 = por %p116, %p117
      %p119 = scmp.ne.s32.totalorder %s111, %s113
      %p120 = scmp.eq.s32.totalorder %s19, 1
      %p121 = por %p119, %p120
      %p122 = scmp.ne.s32.totalorder %s113, %s114
      %p123 = scmp.eq.s32.totalorder %s19, 0
      %p124 = por %p122, %p123
      %p125 = scmp.ne.s32.totalorder %s113, %s114
      %p126 = scmp.eq.s32.totalorder %s20, 1
      %p127 = por %p125, %p126
      %p129 = scmp.ne.s32.totalorder %s114, %s128
      %p130 = scmp.eq.s32.totalorder %s20, 0
      %p131 = por %p129, %p130
      %s133 = sadd.s32 %s132, 1
      %p136 = scmp.eq.s32.totalorder %s14, 1
      %p137 = scmp.ne.s32.totalorder %s132, %s134
      %p138 = scmp.eq.s32.totalorder %s14, 0
      %p139 = por %p137, %p138
      %p140 = scmp.ne.s32.totalorder %s132, %s134
      %p141 = scmp.eq.s32.totalorder %s19, 1
      %p142 = por %p140, %p141
      %p143 = scmp.ne.s32.totalorder %s134, %s135
      %p144 = scmp.eq.s32.totalorder %s19, 0
      %p145 = por %p143, %p144
      %p146 = scmp.ne.s32.totalorder %s134, %s135
      %p147 = scmp.eq.s32.totalorder %s20, 1
      %p148 = por %p146, %p147
      %p150 = scmp.ne.s32.totalorder %s135, %s149
      %p151 = scmp.eq.s32.totalorder %s20, 0
      %p152 = por %p150, %p151
      %s153 = ssub.s32 %s14, %s21
      %p154 = scmp.eq.s32.totalorder %s153, 0
      %s156 = sadd.s32 %s155, 1
      %s157 = scalar_select %p154, %s155, %s156
      %p160 = pneg %p154
      %p161 = scmp.eq.s32.totalorder %s14, 1
      %p162 = por %p160, %p161
      %p163 = scmp.ne.s32.totalorder %s155, %s158
      %p164 = scmp.eq.s32.totalorder %s14, 0
      %p165 = por %p163, %p164
      %p166 = scmp.ne.s32.totalorder %s155, %s158
      %p167 = scmp.eq.s32.totalorder %s19, 1
      %p168 = por %p166, %p167
      %p169 = scmp.ne.s32.totalorder %s158, %s159
      %p170 = scmp.eq.s32.totalorder %s19, 0
      %p171 = por %p169, %p170
      %p172 = scmp.ne.s32.totalorder %s158, %s159
      %p173 = scmp.eq.s32.totalorder %s20, 1
      %p174 = por %p172, %p173
      %p176 = scmp.ne.s32.totalorder %s159, %s175
      %p177 = scmp.eq.s32.totalorder %s20, 0
      %p178 = por %p176, %p177
      %p179 = scmp.le.s32.totalorder 1, %s14
      %p180 = scmp.lt.s32.totalorder %s14, 3
      %p181 = pnand %p179, %p180
      %p182 = pneg %p181
      // Predicated region
      $region9: #{tpu_custom_call.1} parent=5 // pred_check
        _
      $region10: #{tpu_custom_call.1} parent=5 // pred_check_branch
        %184 = sbr.rel (%p181) target = $region12
      $region11: #{tpu_custom_call.1} parent=5 // pred_region
        %s185 = ssub.s32 %s14, 1
        // Predicated region
        $region13: #{tpu_custom_call.1} parent=11 // pred_check
          %p186 = pneg %p61
        $region14: #{tpu_custom_call.1} parent=11 // pred_check_branch
          %188 = sbr.rel (%p186) target = $region16
        $region15: #{tpu_custom_call.1} parent=11 // pred_region
          _
        $region16: #{tpu_custom_call.1} parent=11 // pred_fallthru
          _
        // Predicated region
        $region17: #{tpu_custom_call.1} parent=11 // pred_check
          %p189 = pneg %p82
        $region18: #{tpu_custom_call.1} parent=11 // pred_check_branch
          %191 = sbr.rel (%p189) target = $region20
        $region19: #{tpu_custom_call.1} parent=11 // pred_region
          %s193 = ssub.s32 256, 256
          %194 = vsyncadd [#allocation3], %s193
          %s195 = sshll.u32 [#allocation2], 4
          %s196 = int_to_ptr.vmem [resolvable:$true] %s195
          %201 = dma.hbm_to_vmem [thread:$0]  %s2, 256, %s196, [#allocation3], 128, 128, 8
        $region20: #{tpu_custom_call.1} parent=11 // pred_fallthru
          _
        // Predicated region
        $region21: #{tpu_custom_call.1} parent=11 // pred_check
          %p202 = pneg %p103
        $region22: #{tpu_custom_call.1} parent=11 // pred_check_branch
          %204 = sbr.rel (%p202) target = $region24
        $region23: #{tpu_custom_call.1} parent=11 // pred_region
          _
        $region24: #{tpu_custom_call.1} parent=11 // pred_fallthru
          _
        // Predicated region
        $region25: #{tpu_custom_call.1} parent=11 // pred_check
          %p205 = pneg %p124
        $region26: #{tpu_custom_call.1} parent=11 // pred_check_branch
          %207 = sbr.rel (%p205) target = $region28
        $region27: #{tpu_custom_call.1} parent=11 // pred_region
          %s209 = ssub.s32 2048, 2048
          %210 = vsyncadd [#allocation5], %s209
          %s211 = sshll.u32 [#allocation4], 4
          %s212 = int_to_ptr.vmem [resolvable:$true] %s211
          %217 = dma.hbm_to_vmem [thread:$0]  %s4, 2048, %s212, [#allocation5], 128, 128, 8
        $region28: #{tpu_custom_call.1} parent=11 // pred_fallthru
          _
        // Predicated region
        $region29: #{tpu_custom_call.1} parent=11 // pred_check
          %p218 = pneg %p145
        $region30: #{tpu_custom_call.1} parent=11 // pred_check_branch
          %220 = sbr.rel (%p218) target = $region32
        $region31: #{tpu_custom_call.1} parent=11 // pred_region
          %s222 = ssub.s32 2048, 2048
          %223 = vsyncadd [#allocation5], %s222
          %s224 = sshll.u32 [#allocation6], 4
          %s225 = int_to_ptr.vmem [resolvable:$true] %s224
          %230 = dma.hbm_to_vmem [thread:$0]  %s5, 2048, %s225, [#allocation5], 128, 128, 8
        $region32: #{tpu_custom_call.1} parent=11 // pred_fallthru
          _
      $region12: #{tpu_custom_call.1} parent=5 // pred_fallthru
        _
      %p231 = scmp.lt.s32.totalorder %s14, 2
      // Predicated region
      $region33: #{tpu_custom_call.1} parent=5 // pred_check
        %p232 = pneg %p231
      $region34: #{tpu_custom_call.1} parent=5 // pred_check_branch
        %234 = sbr.rel (%p232) target = $region36
      $region35: #{tpu_custom_call.1} parent=5 // pred_region
        // Predicated region
        $region37: #{tpu_custom_call.1} parent=35 // pred_check
          %p235 = pneg %p34
        $region38: #{tpu_custom_call.1} parent=35 // pred_check_branch
          %237 = sbr.rel (%p235) target = $region40
        $region39: #{tpu_custom_call.1} parent=35 // pred_region
          %s238 = smul.u32 16, %s14
          %p239 = scmp.lt.s32.totalorder %s238, 31
          %s240 = scalar_select %p239, %s238, 31
          %s241 = smul.addr %s240, 4
          %s242 = scalar_lea.vmem %s0, %s241
          %s243 = smul.u32 16, %s14
        $region40: #{tpu_custom_call.1} parent=35 // pred_fallthru
          _
      $region36: #{tpu_custom_call.1} parent=5 // pred_fallthru
        _
      %p244 = scmp.le.s32.totalorder 1, %s14
      %p245 = scmp.lt.s32.totalorder %s14, 3
      %p246 = pnand %p244, %p245
      %p247 = pneg %p246
      // Predicated region
      $region41: #{tpu_custom_call.1} parent=5 // pred_check
        _
      $region42: #{tpu_custom_call.1} parent=5 // pred_check_branch
        %249 = sbr.rel (%p246) target = $region44
      $region43: #{tpu_custom_call.1} parent=5 // pred_region
        %s250 = ssub.s32 %s14, 1
        // Predicated region
        $region45: #{tpu_custom_call.1} parent=43 // pred_check
          %p251 = pneg %p82
        $region46: #{tpu_custom_call.1} parent=43 // pred_check_branch
          %253 = sbr.rel (%p251) target = $region48
        $region47: #{tpu_custom_call.1} parent=43 // pred_region
          %254 = dma.done [#allocation3], 256
        $region48: #{tpu_custom_call.1} parent=43 // pred_fallthru
          _
        // Predicated region
        $region49: #{tpu_custom_call.1} parent=43 // pred_check
          %p255 = pneg %p124
        $region50: #{tpu_custom_call.1} parent=43 // pred_check_branch
          %257 = sbr.rel (%p255) target = $region52
        $region51: #{tpu_custom_call.1} parent=43 // pred_region
          %258 = dma.done [#allocation5], 2048
        $region52: #{tpu_custom_call.1} parent=43 // pred_fallthru
          _
        // Predicated region
        $region53: #{tpu_custom_call.1} parent=43 // pred_check
          %p259 = pneg %p145
        $region54: #{tpu_custom_call.1} parent=43 // pred_check_branch
          %261 = sbr.rel (%p259) target = $region56
        $region55: #{tpu_custom_call.1} parent=43 // pred_region
          %262 = dma.done [#allocation5], 2048
        $region56: #{tpu_custom_call.1} parent=43 // pred_fallthru
          _
        %s263 = smul.u32 16, %s19
        %p264 = scmp.lt.s32.totalorder %s263, 31
        %s265 = scalar_select %p264, %s263, 31
        %s266 = smul.addr %s265, 4
        %s267 = scalar_lea.vmem %s0, %s266
        %p268 = pneg %p40
        %p269 = pneg %p37
        %p270 = pneg %p61
        %p271 = pneg %p58
        %p272 = pneg %p82
        %p273 = pneg %p79
        %p274 = pneg %p103
        %p275 = pneg %p100
        %p276 = pneg %p124
        %p277 = pneg %p121
        %p278 = pneg %p145
        %p279 = pneg %p142
        %p280 = pneg %p171
        %p281 = pneg %p168
        %s282 = smul.u32 16, %s19
        %p283 = scmp.lt.s32.totalorder %s282, 31
        %s284 = scalar_select %p283, %s282, 31
        %s285 = smul.addr %s284, 8
        %s286 = scalar_lea.vmem %s6, %s285
        %s287 = smul.u32 16, %s19
        %p288 = scmp.lt.s32.totalorder %s287, 31
        %s289 = scalar_select %p288, %s287, 31
        %s290 = smul.addr %s289, 4
        %s291 = scalar_lea.vmem %s0, %s290
        %s292 = smul.u32 16, %s19
        %s293 = smul.u32 16, %s19
        %p294 = scmp.lt.s32.totalorder %s293, 31
        %s295 = scalar_select %p294, %s293, 31
        %s296 = smul.addr %s295, 8
        %s297 = scalar_lea.vmem %s6, %s296
        %s298 = smul.u32 16, %s19
        %v300 = vld [vmem:[%s291] sm:$0xf]
        %v301 = vld [vmem:[%s291 + $0x4] sm:$0xf]
        %v302 = vld [vmem:[%s291 + $0x8] sm:$0xf]
        %v303 = vld [vmem:[%s291 + $0xc] sm:$0xf]
        %v304 = vld [vmem:[%s291 + $0x10] sm:$0xf]
        %v305 = vld [vmem:[%s291 + $0x14] sm:$0xf]
        %v306 = vld [vmem:[%s291 + $0x18] sm:$0xf]
        %v307 = vld [vmem:[%s291 + $0x1c] sm:$0xf]
        %v308 = vld [vmem:[%s291 + $0x20] sm:$0xf]
        %v309 = vld [vmem:[%s291 + $0x24] sm:$0xf]
        %v310 = vld [vmem:[%s291 + $0x28] sm:$0xf]
        %v311 = vld [vmem:[%s291 + $0x2c] sm:$0xf]
        %v312 = vld [vmem:[%s291 + $0x30] sm:$0xf]
        %v313 = vld [vmem:[%s291 + $0x34] sm:$0xf]
        %v314 = vld [vmem:[%s291 + $0x38] sm:$0xf]
        %v315 = vld [vmem:[%s291 + $0x3c] sm:$0xf]
        %v316 = vld [vmem:[#allocation2] sm:$0xff]
        %v317 = vld [vmem:[#allocation2 + $0x8] sm:$0xff]
        %v334 = vunpack.c.l.b16 %v300
        %v335 = vunpack.c.l.b16 %v301
        %v336 = vunpack.c.l.b16 %v302
        %v337 = vunpack.c.l.b16 %v303
        %v338 = vunpack.c.l.b16 %v304
        %v339 = vunpack.c.l.b16 %v305
        %v340 = vunpack.c.l.b16 %v306
        %v341 = vunpack.c.l.b16 %v307
        %v342 = vunpack.c.l.b16 %v308
        %v343 = vunpack.c.l.b16 %v309
        %v344 = vunpack.c.l.b16 %v310
        %v345 = vunpack.c.l.b16 %v311
        %v346 = vunpack.c.l.b16 %v312
        %v347 = vunpack.c.l.b16 %v313
        %v348 = vunpack.c.l.b16 %v314
        %v349 = vunpack.c.l.b16 %v315
        %v350 = vpack.c.b16 %v335, %v334
        %v351 = vpack.c.b16 %v337, %v336
        %v352 = vpack.c.b16 %v339, %v338
        %v353 = vpack.c.b16 %v341, %v340
        %v354 = vpack.c.b16 %v343, %v342
        %v355 = vpack.c.b16 %v345, %v344
        %v356 = vpack.c.b16 %v347, %v346
        %v357 = vpack.c.b16 %v349, %v348
        %v360 = vunpack.c.l.b16 %v316
        %v361 = vunpack.c.h.b16 %v316
        %v362 = vunpack.c.l.b16 %v317
        %v363 = vunpack.c.h.b16 %v317
        %v364 = vpack.c.b16 %v362, %v360
        %v365 = vpack.c.b16 %v363, %v361
        %vm368 = vcmask 130048
        %v370 = vsel %vm368, %v350, 0
        %v373 = vsel %vm368, %v351, 0
        %v376 = vsel %vm368, %v352, 0
        %v379 = vsel %vm368, %v353, 0
        %v382 = vsel %vm368, %v354, 0
        %v385 = vsel %vm368, %v355, 0
        %v388 = vsel %vm368, %v356, 0
        %v391 = vsel %vm368, %v357, 0
        %393 = vmatprep.subr.bf16.mxu0 %v365
        %394 = vmatpush1.bf16.msra.mxu0 %v364
        %395 = vmatprep.subr.bf16.mxu0 0
        %396 = vmatpush1.bf16.msra.mxu0 0
        %397 = vmatprep.subr.bf16.mxu0 0
        %398 = vmatpush1.bf16.msra.mxu0 0
        %399 = vmatprep.subr.bf16.mxu0 0
        %400 = vmatpush1.bf16.msra.mxu0 0
        %401 = vmatprep.subr.bf16.mxu0 0
        %402 = vmatpush1.bf16.msra.mxu0 0
        %403 = vmatprep.subr.bf16.mxu0 0
        %404 = vmatpush1.bf16.msra.mxu0 0
        %405 = vmatprep.subr.bf16.mxu0 0
        %406 = vmatpush1.bf16.msra.mxu0 0
        %407 = vmatprep.subr.bf16.mxu0 0
        %408 = vmatpush1.bf16.msra.mxu0 0
        %409 = vmatprep.subr.bf16.mxu0 0
        %410 = vmatpush1.bf16.msra.mxu0 0
        %411 = vmatprep.subr.bf16.mxu0 0
        %412 = vmatpush1.bf16.msra.mxu0 0
        %413 = vmatprep.subr.bf16.mxu0 0
        %414 = vmatpush1.bf16.msra.mxu0 0
        %415 = vmatprep.subr.bf16.mxu0 0
        %416 = vmatpush1.bf16.msra.mxu0 0
        %417 = vmatprep.subr.bf16.mxu0 0
        %418 = vmatpush1.bf16.msra.mxu0 0
        %419 = vmatprep.subr.bf16.mxu0 0
        %420 = vmatpush1.bf16.msra.mxu0 0
        %421 = vmatprep.subr.bf16.mxu0 0
        %422 = vmatpush1.bf16.msra.mxu0 0
        %423 = vmatprep.subr.bf16.mxu0 0
        %424 = vmatpush1.bf16.msra.mxu0 0
        %425 = vmatprep.mubr.bf16.mxu0 0
        %426 = vmatmul.mubr.bf16.gmra.mrb[0].mxu0 %v370
        %v427 = vpop.f32.mrb[0].mxu0
        %v428 = vadd.f32 0.0, %v427
        %v429 = vpop.f32.mrb[0].mxu0
        %v430 = vadd.f32 0.0, %v429
        %v431 = vpop.f32.mrb[0].mxu0
        %v432 = vadd.f32 0.0, %v431
        %v433 = vpop.f32.mrb[0].mxu0
        %v434 = vadd.f32 0.0, %v433
        %435 = vmatprep.mubr.bf16.mxu0 0
        %436 = vmatmul.mubr.bf16.gmra.mrb[0].mxu0 %v373
        %v437 = vpop.f32.mrb[0].mxu0
        %v438 = vadd.f32 0.0, %v437
        %v439 = vpop.f32.mrb[0].mxu0
        %v440 = vadd.f32 0.0, %v439
        %v441 = vpop.f32.mrb[0].mxu0
        %v442 = vadd.f32 0.0, %v441
        %v443 = vpop.f32.mrb[0].mxu0
        %v444 = vadd.f32 0.0, %v443
        %445 = vmatprep.mubr.bf16.mxu0 0
        %446 = vmatmul.mubr.bf16.gmra.mrb[0].mxu0 %v376
        %v447 = vpop.f32.mrb[0].mxu0
        %v448 = vadd.f32 0.0, %v447
        %v449 = vpop.f32.mrb[0].mxu0
        %v450 = vadd.f32 0.0, %v449
        %v451 = vpop.f32.mrb[0].mxu0
        %v452 = vadd.f32 0.0, %v451
        %v453 = vpop.f32.mrb[0].mxu0
        %v454 = vadd.f32 0.0, %v453
        %455 = vmatprep.mubr.bf16.mxu0 0
        %456 = vmatmul.mubr.bf16.gmra.mrb[0].mxu0 %v379
        %v457 = vpop.f32.mrb[0].mxu0
        %v458 = vadd.f32 0.0, %v457
        %v459 = vpop.f32.mrb[0].mxu0
        %v460 = vadd.f32 0.0, %v459
        %v461 = vpop.f32.mrb[0].mxu0
        %v462 = vadd.f32 0.0, %v461
        %v463 = vpop.f32.mrb[0].mxu0
        %v464 = vadd.f32 0.0, %v463
        %465 = vmatprep.mubr.bf16.mxu0 0
        %466 = vmatmul.mubr.bf16.gmra.mrb[0].mxu0 %v382
        %v467 = vpop.f32.mrb[0].mxu0
        %v468 = vadd.f32 0.0, %v467
        %v469 = vpop.f32.mrb[0].mxu0
        %v470 = vadd.f32 0.0, %v469
        %v471 = vpop.f32.mrb[0].mxu0
        %v472 = vadd.f32 0.0, %v471
        %v473 = vpop.f32.mrb[0].mxu0
        %v474 = vadd.f32 0.0, %v473
        %475 = vmatprep.mubr.bf16.mxu0 0
        %476 = vmatmul.mubr.bf16.gmra.mrb[0].mxu0 %v385
        %v477 = vpop.f32.mrb[0].mxu0
        %v478 = vadd.f32 0.0, %v477
        %v479 = vpop.f32.mrb[0].mxu0
        %v480 = vadd.f32 0.0, %v479
        %v481 = vpop.f32.mrb[0].mxu0
        %v482 = vadd.f32 0.0, %v481
        %v483 = vpop.f32.mrb[0].mxu0
        %v484 = vadd.f32 0.0, %v483
        %485 = vmatprep.mubr.bf16.mxu0 0
        %486 = vmatmul.mubr.bf16.gmra.mrb[0].mxu0 %v388
        %v487 = vpop.f32.mrb[0].mxu0
        %v488 = vadd.f32 0.0, %v487
        %v489 = vpop.f32.mrb[0].mxu0
        %v490 = vadd.f32 0.0, %v489
        %v491 = vpop.f32.mrb[0].mxu0
        %v492 = vadd.f32 0.0, %v491
        %v493 = vpop.f32.mrb[0].mxu0
        %v494 = vadd.f32 0.0, %v493
        %495 = vmatprep.mubr.bf16.mxu0 0
        %496 = vmatmul.mubr.bf16.gmra.mrb[0].mxu0 %v391
        %v497 = vpop.f32.mrb[0].mxu0
        %v498 = vadd.f32 0.0, %v497
        %v499 = vpop.f32.mrb[0].mxu0
        %v500 = vadd.f32 0.0, %v499
        %v501 = vpop.f32.mrb[0].mxu0
        %v502 = vadd.f32 0.0, %v501
        %v503 = vpop.f32.mrb[0].mxu0
        %v504 = vadd.f32 0.0, %v503
        %505 = vdwg.mxu0
        %v506 = vadd.f32 %v428, %v432
        %v507 = vadd.f32 %v506, %v438
        %v508 = vadd.f32 %v507, %v442
        %v509 = vrot.slane %v508, 4
        %v510 = vadd.f32 %v508, %v509
        %v511 = vrot.slane %v510, 2
        %v512 = vadd.f32 %v510, %v511
        %v513 = vrot.slane %v512, 1
        %v514 = vadd.f32 %v512, %v513
        %v515 = vadd.f32 %v430, %v434
        %v516 = vadd.f32 %v515, %v440
        %v517 = vadd.f32 %v516, %v444
        %v518 = vrot.slane %v517, 4
        %v519 = vadd.f32 %v517, %v518
        %v520 = vrot.slane %v519, 2
        %v521 = vadd.f32 %v519, %v520
        %v522 = vrot.slane %v521, 1
        %v523 = vadd.f32 %v521, %v522
        %v524 = vadd.f32 %v448, %v452
        %v525 = vadd.f32 %v524, %v458
        %v526 = vadd.f32 %v525, %v462
        %v527 = vrot.slane %v526, 4
        %v528 = vadd.f32 %v526, %v527
        %v529 = vrot.slane %v528, 2
        %v530 = vadd.f32 %v528, %v529
        %v531 = vrot.slane %v530, 1
        %v532 = vadd.f32 %v530, %v531
        %v533 = vadd.f32 %v450, %v454
        %v534 = vadd.f32 %v533, %v460
        %v535 = vadd.f32 %v534, %v464
        %v536 = vrot.slane %v535, 4
        %v537 = vadd.f32 %v535, %v536
        %v538 = vrot.slane %v537, 2
        %v539 = vadd.f32 %v537, %v538
        %v540 = vrot.slane %v539, 1
        %v541 = vadd.f32 %v539, %v540
        %v542 = vadd.f32 %v468, %v472
        %v543 = vadd.f32 %v542, %v478
        %v544 = vadd.f32 %v543, %v482
        %v545 = vrot.slane %v544, 4
        %v546 = vadd.f32 %v544, %v545
        %v547 = vrot.slane %v546, 2
        %v548 = vadd.f32 %v546, %v547
        %v549 = vrot.slane %v548, 1
        %v550 = vadd.f32 %v548, %v549
        %v551 = vadd.f32 %v470, %v474
        %v552 = vadd.f32 %v551, %v480
        %v553 = vadd.f32 %v552, %v484
        %v554 = vrot.slane %v553, 4
        %v555 = vadd.f32 %v553, %v554
        %v556 = vrot.slane %v555, 2
        %v557 = vadd.f32 %v555, %v556
        %v558 = vrot.slane %v557, 1
        %v559 = vadd.f32 %v557, %v558
        %v560 = vadd.f32 %v488, %v492
        %v561 = vadd.f32 %v560, %v498
        %v562 = vadd.f32 %v561, %v502
        %v563 = vrot.slane %v562, 4
        %v564 = vadd.f32 %v562, %v563
        %v565 = vrot.slane %v564, 2
        %v566 = vadd.f32 %v564, %v565
        %v567 = vrot.slane %v566, 1
        %v568 = vadd.f32 %v566, %v567
        %v569 = vadd.f32 %v490, %v494
        %v570 = vadd.f32 %v569, %v500
        %v571 = vadd.f32 %v570, %v504
        %v572 = vrot.slane %v571, 4
        %v573 = vadd.f32 %v571, %v572
        %v574 = vrot.slane %v573, 2
        %v575 = vadd.f32 %v573, %v574
        %v576 = vrot.slane %v575, 1
        %v577 = vadd.f32 %v575, %v576
        %v578 = vrcp.pop 32.0
        %v579 = vmul.f32 %v514, %v578
        %v580 = vmul.f32 %v523, %v578
        %v581 = vmul.f32 %v532, %v578
        %v582 = vmul.f32 %v541, %v578
        %v583 = vmul.f32 %v550, %v578
        %v584 = vmul.f32 %v559, %v578
        %v585 = vmul.f32 %v568, %v578
        %v586 = vmul.f32 %v577, %v578
        %v587 = vsub.f32 %v428, %v579
        %v588 = vsub.f32 %v430, %v580
        %v589 = vsub.f32 %v432, %v579
        %v590 = vsub.f32 %v434, %v580
        %v591 = vsub.f32 %v438, %v579
        %v592 = vsub.f32 %v440, %v580
        %v593 = vsub.f32 %v442, %v579
        %v594 = vsub.f32 %v444, %v580
        %v595 = vsub.f32 %v448, %v581
        %v596 = vsub.f32 %v450, %v582
        %v597 = vsub.f32 %v452, %v581
        %v598 = vsub.f32 %v454, %v582
        %v599 = vsub.f32 %v458, %v581
        %v600 = vsub.f32 %v460, %v582
        %v601 = vsub.f32 %v462, %v581
        %v602 = vsub.f32 %v464, %v582
        %v603 = vsub.f32 %v468, %v583
        %v604 = vsub.f32 %v470, %v584
        %v605 = vsub.f32 %v472, %v583
        %v606 = vsub.f32 %v474, %v584
        %v607 = vsub.f32 %v478, %v583
        %v608 = vsub.f32 %v480, %v584
        %v609 = vsub.f32 %v482, %v583
        %v610 = vsub.f32 %v484, %v584
        %v611 = vsub.f32 %v488, %v585
        %v612 = vsub.f32 %v490, %v586
        %v613 = vsub.f32 %v492, %v585
        %v614 = vsub.f32 %v494, %v586
        %v615 = vsub.f32 %v498, %v585
        %v616 = vsub.f32 %v500, %v586
        %v617 = vsub.f32 %v502, %v585
        %v618 = vsub.f32 %v504, %v586
        %v619 = vmul.f32 %v587, %v587
        %v620 = vmul.f32 %v588, %v588
        %v621 = vmul.f32 %v589, %v589
        %v622 = vmul.f32 %v590, %v590
        %v623 = vmul.f32 %v591, %v591
        %v624 = vmul.f32 %v592, %v592
        %v625 = vmul.f32 %v593, %v593
        %v626 = vmul.f32 %v594, %v594
        %v627 = vmul.f32 %v595, %v595
        %v628 = vmul.f32 %v596, %v596
        %v629 = vmul.f32 %v597, %v597
        %v630 = vmul.f32 %v598, %v598
        %v631 = vmul.f32 %v599, %v599
        %v632 = vmul.f32 %v600, %v600
        %v633 = vmul.f32 %v601, %v601
        %v634 = vmul.f32 %v602, %v602
        %v635 = vmul.f32 %v603, %v603
        %v636 = vmul.f32 %v604, %v604
        %v637 = vmul.f32 %v605, %v605
        %v638 = vmul.f32 %v606, %v606
        %v639 = vmul.f32 %v607, %v607
        %v640 = vmul.f32 %v608, %v608
        %v641 = vmul.f32 %v609, %v609
        %v642 = vmul.f32 %v610, %v610
        %v643 = vmul.f32 %v611, %v611
        %v644 = vmul.f32 %v612, %v612
        %v645 = vmul.f32 %v613, %v613
        %v646 = vmul.f32 %v614, %v614
        %v647 = vmul.f32 %v615, %v615
        %v648 = vmul.f32 %v616, %v616
        %v649 = vmul.f32 %v617, %v617
        %v650 = vmul.f32 %v618, %v618
        %v651 = vadd.f32 %v619, %v621
        %v652 = vadd.f32 %v651, %v623
        %v653 = vadd.f32 %v652, %v625
        %v654 = vrot.slane %v653, 4
        %v655 = vadd.f32 %v653, %v654
        %v656 = vrot.slane %v655, 2
        %v657 = vadd.f32 %v655, %v656
        %v658 = vrot.slane %v657, 1
        %v659 = vadd.f32 %v657, %v658
        %v660 = vadd.f32 %v620, %v622
        %v661 = vadd.f32 %v660, %v624
        %v662 = vadd.f32 %v661, %v626
        %v663 = vrot.slane %v662, 4
        %v664 = vadd.f32 %v662, %v663
        %v665 = vrot.slane %v664, 2
        %v666 = vadd.f32 %v664, %v665
        %v667 = vrot.slane %v666, 1
        %v668 = vadd.f32 %v666, %v667
        %v669 = vadd.f32 %v627, %v629
        %v670 = vadd.f32 %v669, %v631
        %v671 = vadd.f32 %v670, %v633
        %v672 = vrot.slane %v671, 4
        %v673 = vadd.f32 %v671, %v672
        %v674 = vrot.slane %v673, 2
        %v675 = vadd.f32 %v673, %v674
        %v676 = vrot.slane %v675, 1
        %v677 = vadd.f32 %v675, %v676
        %v678 = vadd.f32 %v628, %v630
        %v679 = vadd.f32 %v678, %v632
        %v680 = vadd.f32 %v679, %v634
        %v681 = vrot.slane %v680, 4
        %v682 = vadd.f32 %v680, %v681
        %v683 = vrot.slane %v682, 2
        %v684 = vadd.f32 %v682, %v683
        %v685 = vrot.slane %v684, 1
        %v686 = vadd.f32 %v684, %v685
        %v687 = vadd.f32 %v635, %v637
        %v688 = vadd.f32 %v687, %v639
        %v689 = vadd.f32 %v688, %v641
        %v690 = vrot.slane %v689, 4
        %v691 = vadd.f32 %v689, %v690
        %v692 = vrot.slane %v691, 2
        %v693 = vadd.f32 %v691, %v692
        %v694 = vrot.slane %v693, 1
        %v695 = vadd.f32 %v693, %v694
        %v696 = vadd.f32 %v636, %v638
        %v697 = vadd.f32 %v696, %v640
        %v698 = vadd.f32 %v697, %v642
        %v699 = vrot.slane %v698, 4
        %v700 = vadd.f32 %v698, %v699
        %v701 = vrot.slane %v700, 2
        %v702 = vadd.f32 %v700, %v701
        %v703 = vrot.slane %v702, 1
        %v704 = vadd.f32 %v702, %v703
        %v705 = vadd.f32 %v643, %v645
        %v706 = vadd.f32 %v705, %v647
        %v707 = vadd.f32 %v706, %v649
        %v708 = vrot.slane %v707, 4
        %v709 = vadd.f32 %v707, %v708
        %v710 = vrot.slane %v709, 2
        %v711 = vadd.f32 %v709, %v710
        %v712 = vrot.slane %v711, 1
        %v713 = vadd.f32 %v711, %v712
        %v714 = vadd.f32 %v644, %v646
        %v715 = vadd.f32 %v714, %v648
        %v716 = vadd.f32 %v715, %v650
        %v717 = vrot.slane %v716, 4
        %v718 = vadd.f32 %v716, %v717
        %v719 = vrot.slane %v718, 2
        %v720 = vadd.f32 %v718, %v719
        %v721 = vrot.slane %v720, 1
        %v722 = vadd.f32 %v720, %v721
        %v723 = vmul.f32 %v659, %v578
        %v724 = vmul.f32 %v668, %v578
        %v725 = vmul.f32 %v677, %v578
        %v726 = vmul.f32 %v686, %v578
        %v727 = vmul.f32 %v695, %v578
        %v728 = vmul.f32 %v704, %v578
        %v729 = vmul.f32 %v713, %v578
        %v730 = vmul.f32 %v722, %v578
        %v731 = vld [vmem:[%s1] sm:$0x3]
        %v732 = vld [vmem:[%s1 + $0x8] sm:$0x3]
        %v733 = vadd.f32 %v723, 1e-05
        %v734 = vadd.f32 %v724, 1e-05
        %v735 = vadd.f32 %v725, 1e-05
        %v736 = vadd.f32 %v726, 1e-05
        %v737 = vadd.f32 %v727, 1e-05
        %v738 = vadd.f32 %v728, 1e-05
        %v739 = vadd.f32 %v729, 1e-05
        %v740 = vadd.f32 %v730, 1e-05
        %v741 = vrsqrt.pop %v733
        %v742 = vrsqrt.pop %v734
        %v743 = vrsqrt.pop %v735
        %v744 = vrsqrt.pop %v736
        %v745 = vrsqrt.pop %v737
        %v746 = vrsqrt.pop %v738
        %v747 = vrsqrt.pop %v739
        %v748 = vrsqrt.pop %v740
        %v749 = vmul.f32 %v741, %v731
        %v750 = vmul.f32 %v742, %v732
        %v751 = vmul.f32 %v743, %v731
        %v752 = vmul.f32 %v744, %v732
        %v753 = vmul.f32 %v745, %v731
        %v754 = vmul.f32 %v746, %v732
        %v755 = vmul.f32 %v747, %v731
        %v756 = vmul.f32 %v748, %v732
        %v757 = vlaneseq
        %v758 = vshrl.u32 %v757, 7
        %v759 = vsub.s32 0, %v758
        %v760 = vrot.slane %v749, %v759
        %v761 = vlaneseq
        %v762 = vshrl.u32 %v761, 7
        %v763 = vsub.s32 0, %v762
        %v764 = vrot.slane %v750, %v763
        %v765 = vlaneseq
        %v766 = vshrl.u32 %v765, 7
        %v767 = vsub.s32 0, %v766
        %v768 = vrot.slane %v751, %v767
        %v769 = vlaneseq
        %v770 = vshrl.u32 %v769, 7
        %v771 = vsub.s32 0, %v770
        %v772 = vrot.slane %v752, %v771
        %v773 = vlaneseq
        %v774 = vshrl.u32 %v773, 7
        %v775 = vsub.s32 0, %v774
        %v776 = vrot.slane %v753, %v775
        %v777 = vlaneseq
        %v778 = vshrl.u32 %v777, 7
        %v779 = vsub.s32 0, %v778
        %v780 = vrot.slane %v754, %v779
        %v781 = vlaneseq
        %v782 = vshrl.u32 %v781, 7
        %v783 = vsub.s32 0, %v782
        %v784 = vrot.slane %v755, %v783
        %v785 = vlaneseq
        %v786 = vshrl.u32 %v785, 7
        %v787 = vsub.s32 0, %v786
        %v788 = vrot.slane %v756, %v787
        %v789 = vmul.f32 %v587, %v760
        %v790 = vmul.f32 %v588, %v764
        %v791 = vmul.f32 %v589, %v760
        %v792 = vmul.f32 %v590, %v764
        %v793 = vmul.f32 %v591, %v760
        %v794 = vmul.f32 %v592, %v764
        %v795 = vmul.f32 %v593, %v760
        %v796 = vmul.f32 %v594, %v764
        %v797 = vmul.f32 %v595, %v768
        %v798 = vmul.f32 %v596, %v772
        %v799 = vmul.f32 %v597, %v768
        %v800 = vmul.f32 %v598, %v772
        %v801 = vmul.f32 %v599, %v768
        %v802 = vmul.f32 %v600, %v772
        %v803 = vmul.f32 %v601, %v768
        %v804 = vmul.f32 %v602, %v772
        %v805 = vmul.f32 %v603, %v776
        %v806 = vmul.f32 %v604, %v780
        %v807 = vmul.f32 %v605, %v776
        %v808 = vmul.f32 %v606, %v780
        %v809 = vmul.f32 %v607, %v776
        %v810 = vmul.f32 %v608, %v780
        %v811 = vmul.f32 %v609, %v776
        %v812 = vmul.f32 %v610, %v780
        %v813 = vmul.f32 %v611, %v784
        %v814 = vmul.f32 %v612, %v788
        %v815 = vmul.f32 %v613, %v784
        %v816 = vmul.f32 %v614, %v788
        %v817 = vmul.f32 %v615, %v784
        %v818 = vmul.f32 %v616, %v788
        %v819 = vmul.f32 %v617, %v784
        %v820 = vmul.f32 %v618, %v788
        %v821 = vlaneseq
        %v822 = vshrl.u32 %v821, 7
        %v823 = vsub.s32 1, %v822
        %v824 = vrot.slane %v731, %v823
        %v825 = vlaneseq
        %v826 = vshrl.u32 %v825, 7
        %v827 = vsub.s32 1, %v826
        %v828 = vrot.slane %v732, %v827
        %v829 = vadd.f32 %v789, %v824
        %v830 = vadd.f32 %v790, %v828
        %v831 = vadd.f32 %v791, %v824
        %v832 = vadd.f32 %v792, %v828
        %v833 = vadd.f32 %v793, %v824
        %v834 = vadd.f32 %v794, %v828
        %v835 = vadd.f32 %v795, %v824
        %v836 = vadd.f32 %v796, %v828
        %v837 = vadd.f32 %v797, %v824
        %v838 = vadd.f32 %v798, %v828
        %v839 = vadd.f32 %v799, %v824
        %v840 = vadd.f32 %v800, %v828
        %v841 = vadd.f32 %v801, %v824
        %v842 = vadd.f32 %v802, %v828
        %v843 = vadd.f32 %v803, %v824
        %v844 = vadd.f32 %v804, %v828
        %v845 = vadd.f32 %v805, %v824
        %v846 = vadd.f32 %v806, %v828
        %v847 = vadd.f32 %v807, %v824
        %v848 = vadd.f32 %v808, %v828
        %v849 = vadd.f32 %v809, %v824
        %v850 = vadd.f32 %v810, %v828
        %v851 = vadd.f32 %v811, %v824
        %v852 = vadd.f32 %v812, %v828
        %v853 = vadd.f32 %v813, %v824
        %v854 = vadd.f32 %v814, %v828
        %v855 = vadd.f32 %v815, %v824
        %v856 = vadd.f32 %v816, %v828
        %v857 = vadd.f32 %v817, %v824
        %v858 = vadd.f32 %v818, %v828
        %v859 = vadd.f32 %v819, %v824
        %v860 = vadd.f32 %v820, %v828
        %v861 = vxor.u32 %v830, 2147483648
        %v862 = vxor.u32 %v832, 2147483648
        %v863 = vxor.u32 %v834, 2147483648
        %v864 = vxor.u32 %v836, 2147483648
        %v865 = vxor.u32 %v838, 2147483648
        %v866 = vxor.u32 %v840, 2147483648
        %v867 = vxor.u32 %v842, 2147483648
        %v868 = vxor.u32 %v844, 2147483648
        %v869 = vxor.u32 %v846, 2147483648
        %v870 = vxor.u32 %v848, 2147483648
        %v871 = vxor.u32 %v850, 2147483648
        %v872 = vxor.u32 %v852, 2147483648
        %v873 = vxor.u32 %v854, 2147483648
        %v874 = vxor.u32 %v856, 2147483648
        %v875 = vxor.u32 %v858, 2147483648
        %v876 = vxor.u32 %v860, 2147483648
        %v877 = vmul.f32 %v861, 1.442695
        %v878 = vpow.pop %v877
        %v879 = vmul.f32 %v862, 1.442695
        %v880 = vpow.pop %v879
        %v881 = vmul.f32 %v863, 1.442695
        %v882 = vpow.pop %v881
        %v883 = vmul.f32 %v864, 1.442695
        %v884 = vpow.pop %v883
        %v885 = vmul.f32 %v865, 1.442695
        %v886 = vpow.pop %v885
        %v887 = vmul.f32 %v866, 1.442695
        %v888 = vpow.pop %v887
        %v889 = vmul.f32 %v867, 1.442695
        %v890 = vpow.pop %v889
        %v891 = vmul.f32 %v868, 1.442695
        %v892 = vpow.pop %v891
        %v893 = vmul.f32 %v869, 1.442695
        %v894 = vpow.pop %v893
        %v895 = vmul.f32 %v870, 1.442695
        %v896 = vpow.pop %v895
        %v897 = vmul.f32 %v871, 1.442695
        %v898 = vpow.pop %v897
        %v899 = vmul.f32 %v872, 1.442695
        %v900 = vpow.pop %v899
        %v901 = vmul.f32 %v873, 1.442695
        %v902 = vpow.pop %v901
        %v903 = vmul.f32 %v874, 1.442695
        %v904 = vpow.pop %v903
        %v905 = vmul.f32 %v875, 1.442695
        %v906 = vpow.pop %v905
        %v907 = vmul.f32 %v876, 1.442695
        %v908 = vpow.pop %v907
        %v909 = vadd.f32 %v878, 1.0
        %v910 = vadd.f32 %v880, 1.0
        %v911 = vadd.f32 %v882, 1.0
        %v912 = vadd.f32 %v884, 1.0
        %v913 = vadd.f32 %v886, 1.0
        %v914 = vadd.f32 %v888, 1.0
        %v915 = vadd.f32 %v890, 1.0
        %v916 = vadd.f32 %v892, 1.0
        %v917 = vadd.f32 %v894, 1.0
        %v918 = vadd.f32 %v896, 1.0
        %v919 = vadd.f32 %v898, 1.0
        %v920 = vadd.f32 %v900, 1.0
        %v921 = vadd.f32 %v902, 1.0
        %v922 = vadd.f32 %v904, 1.0
        %v923 = vadd.f32 %v906, 1.0
        %v924 = vadd.f32 %v908, 1.0
        %v925 = vrcp.pop %v909
        %v926 = vmul.f32 1.0, %v925
        %v927 = vrcp.pop %v910
        %v928 = vmul.f32 1.0, %v927
        %v929 = vrcp.pop %v911
        %v930 = vmul.f32 1.0, %v929
        %v931 = vrcp.pop %v912
        %v932 = vmul.f32 1.0, %v931
        %v933 = vrcp.pop %v913
        %v934 = vmul.f32 1.0, %v933
        %v935 = vrcp.pop %v914
        %v936 = vmul.f32 1.0, %v935
        %v937 = vrcp.pop %v915
        %v938 = vmul.f32 1.0, %v937
        %v939 = vrcp.pop %v916
        %v940 = vmul.f32 1.0, %v939
        %v941 = vrcp.pop %v917
        %v942 = vmul.f32 1.0, %v941
        %v943 = vrcp.pop %v918
        %v944 = vmul.f32 1.0, %v943
        %v945 = vrcp.pop %v919
        %v946 = vmul.f32 1.0, %v945
        %v947 = vrcp.pop %v920
        %v948 = vmul.f32 1.0, %v947
        %v949 = vrcp.pop %v921
        %v950 = vmul.f32 1.0, %v949
        %v951 = vrcp.pop %v922
        %v952 = vmul.f32 1.0, %v951
        %v953 = vrcp.pop %v923
        %v954 = vmul.f32 1.0, %v953
        %v955 = vrcp.pop %v924
        %v956 = vmul.f32 1.0, %v955
        %v957 = vmul.f32 %v829, %v926
        %v958 = vmul.f32 %v831, %v928
        %v959 = vmul.f32 %v833, %v930
        %v960 = vmul.f32 %v835, %v932
        %v961 = vmul.f32 %v837, %v934
        %v962 = vmul.f32 %v839, %v936
        %v963 = vmul.f32 %v841, %v938
        %v964 = vmul.f32 %v843, %v940
        %v965 = vmul.f32 %v845, %v942
        %v966 = vmul.f32 %v847, %v944
        %v967 = vmul.f32 %v849, %v946
        %v968 = vmul.f32 %v851, %v948
        %v969 = vmul.f32 %v853, %v950
        %v970 = vmul.f32 %v855, %v952
        %v971 = vmul.f32 %v857, %v954
        %v972 = vmul.f32 %v859, %v956
        %v973 = vld [vmem:[%s3] sm:$0xff]
        %v974 = vld [vmem:[%s3 + $0x8] sm:$0xff]
        %v975 = vld [vmem:[%s3 + $0x10] sm:$0xff]
        %v976 = vld [vmem:[%s3 + $0x18] sm:$0xff]
        %v977 = vld [vmem:[%s3 + $0x20] sm:$0xff]
        %v978 = vld [vmem:[%s3 + $0x28] sm:$0xff]
        %v979 = vld [vmem:[%s3 + $0x30] sm:$0xff]
        %v980 = vld [vmem:[%s3 + $0x38] sm:$0xff]
        %v981 = vld [vmem:[%s3 + $0x40] sm:$0xff]
        %v982 = vld [vmem:[%s3 + $0x48] sm:$0xff]
        %v983 = vld [vmem:[%s3 + $0x50] sm:$0xff]
        %v984 = vld [vmem:[%s3 + $0x58] sm:$0xff]
        %v985 = vld [vmem:[%s3 + $0x60] sm:$0xff]
        %v986 = vld [vmem:[%s3 + $0x68] sm:$0xff]
        %v987 = vld [vmem:[%s3 + $0x70] sm:$0xff]
        %v988 = vld [vmem:[%s3 + $0x78] sm:$0xff]
        %v989 = vpack.c.bf16 %v958, %v957
        %v990 = vpack.c.bf16 %v960, %v959
        %v991 = vpack.c.bf16 %v962, %v961
        %v992 = vpack.c.bf16 %v964, %v963
        %v993 = vpack.c.bf16 %v966, %v965
        %v994 = vpack.c.bf16 %v968, %v967
        %v995 = vpack.c.bf16 %v970, %v969
        %v996 = vpack.c.bf16 %v972, %v971
        %v1013 = vunpack.c.l.b16 %v973
        %v1014 = vunpack.c.h.b16 %v973
        %v1015 = vunpack.c.l.b16 %v974
        %v1016 = vunpack.c.h.b16 %v974
        %v1017 = vunpack.c.l.b16 %v975
        %v1018 = vunpack.c.h.b16 %v975
        %v1019 = vunpack.c.l.b16 %v976
        %v1020 = vunpack.c.h.b16 %v976
        %v1021 = vunpack.c.l.b16 %v977
        %v1022 = vunpack.c.h.b16 %v977
        %v1023 = vunpack.c.l.b16 %v978
        %v1024 = vunpack.c.h.b16 %v978
        %v1025 = vunpack.c.l.b16 %v979
        %v1026 = vunpack.c.h.b16 %v979
        %v1027 = vunpack.c.l.b16 %v980
        %v1028 = vunpack.c.h.b16 %v980
        %v1029 = vunpack.c.l.b16 %v981
        %v1030 = vunpack.c.h.b16 %v981
        %v1031 = vunpack.c.l.b16 %v982
        %v1032 = vunpack.c.h.b16 %v982
        %v1033 = vunpack.c.l.b16 %v983
        %v1034 = vunpack.c.h.b16 %v983
        %v1035 = vunpack.c.l.b16 %v984
        %v1036 = vunpack.c.h.b16 %v984
        %v1037 = vunpack.c.l.b16 %v985
        %v1038 = vunpack.c.h.b16 %v985
        %v1039 = vunpack.c.l.b16 %v986
        %v1040 = vunpack.c.h.b16 %v986
        %v1041 = vunpack.c.l.b16 %v987
        %v1042 = vunpack.c.h.b16 %v987
        %v1043 = vunpack.c.l.b16 %v988
        %v1044 = vunpack.c.h.b16 %v988
        %v1045 = vpack.c.b16 %v1015, %v1013
        %v1046 = vpack.c.b16 %v1016, %v1014
        %v1047 = vpack.c.b16 %v1019, %v1017
        %v1048 = vpack.c.b16 %v1020, %v1018
        %v1049 = vpack.c.b16 %v1023, %v1021
        %v1050 = vpack.c.b16 %v1024, %v1022
        %v1051 = vpack.c.b16 %v1027, %v1025
        %v1052 = vpack.c.b16 %v1028, %v1026
        %v1053 = vpack.c.b16 %v1031, %v1029
        %v1054 = vpack.c.b16 %v1032, %v1030
        %v1055 = vpack.c.b16 %v1035, %v1033
        %v1056 = vpack.c.b16 %v1036, %v1034
        %v1057 = vpack.c.b16 %v1039, %v1037
        %v1058 = vpack.c.b16 %v1040, %v1038
        %v1059 = vpack.c.b16 %v1043, %v1041
        %v1060 = vpack.c.b16 %v1044, %v1042
        %1077 = vmatprep.subr.bf16.mxu0 %v1046
        %1078 = vmatpush1.bf16.msra.mxu0 %v1045
        %1079 = vmatprep.subr.bf16.mxu0 %v1048
        %1080 = vmatpush1.bf16.msra.mxu0 %v1047
        %1081 = vmatprep.subr.bf16.mxu0 %v1050
        %1082 = vmatpush1.bf16.msra.mxu0 %v1049
        %1083 = vmatprep.subr.bf16.mxu0 %v1052
        %1084 = vmatpush1.bf16.msra.mxu0 %v1051
        %1085 = vmatprep.subr.bf16.mxu0 %v1054
        %1086 = vmatpush1.bf16.msra.mxu0 %v1053
        %1087 = vmatprep.subr.bf16.mxu0 %v1056
        %1088 = vmatpush1.bf16.msra.mxu0 %v1055
        %1089 = vmatprep.subr.bf16.mxu0 %v1058
        %1090 = vmatpush1.bf16.msra.mxu0 %v1057
        %1091 = vmatprep.subr.bf16.mxu0 %v1060
        %1092 = vmatpush1.bf16.msra.mxu0 %v1059
        %1093 = vmatprep.subr.bf16.mxu0 0
        %1094 = vmatpush1.bf16.msra.mxu0 0
        %1095 = vmatprep.subr.bf16.mxu0 0
        %1096 = vmatpush1.bf16.msra.mxu0 0
        %1097 = vmatprep.subr.bf16.mxu0 0
        %1098 = vmatpush1.bf16.msra.mxu0 0
        %1099 = vmatprep.subr.bf16.mxu0 0
        %1100 = vmatpush1.bf16.msra.mxu0 0
        %1101 = vmatprep.subr.bf16.mxu0 0
        %1102 = vmatpush1.bf16.msra.mxu0 0
        %1103 = vmatprep.subr.bf16.mxu0 0
        %1104 = vmatpush1.bf16.msra.mxu0 0
        %1105 = vmatprep.subr.bf16.mxu0 0
        %1106 = vmatpush1.bf16.msra.mxu0 0
        %1107 = vmatprep.subr.bf16.mxu0 0
        %1108 = vmatpush1.bf16.msra.mxu0 0
        %1109 = vmatprep.mubr.bf16.mxu0 0
        %1110 = vmatmul.mubr.bf16.gmra.mrb[0].mxu0 %v989
        %v1111 = vpop.f32.mrb[0].mxu0
        %v1112 = vadd.f32 0.0, %v1111
        %v1113 = vpop.f32.mrb[0].mxu0
        %v1114 = vadd.f32 0.0, %v1113
        %v1115 = vpop.f32.mrb[0].mxu0
        %v1116 = vadd.f32 0.0, %v1115
        %v1117 = vpop.f32.mrb[0].mxu0
        %v1118 = vadd.f32 0.0, %v1117
        %1119 = vmatprep.mubr.bf16.mxu0 0
        %1120 = vmatmul.mubr.bf16.gmra.mrb[0].mxu0 %v990
        %v1121 = vpop.f32.mrb[0].mxu0
        %v1122 = vadd.f32 0.0, %v1121
        %v1123 = vpop.f32.mrb[0].mxu0
        %v1124 = vadd.f32 0.0, %v1123
        %v1125 = vpop.f32.mrb[0].mxu0
        %v1126 = vadd.f32 0.0, %v1125
        %v1127 = vpop.f32.mrb[0].mxu0
        %v1128 = vadd.f32 0.0, %v1127
        %1129 = vmatprep.mubr.bf16.mxu0 0
        %1130 = vmatmul.mubr.bf16.gmra.mrb[0].mxu0 %v991
        %v1131 = vpop.f32.mrb[0].mxu0
        %v1132 = vadd.f32 0.0, %v1131
        %v1133 = vpop.f32.mrb[0].mxu0
        %v1134 = vadd.f32 0.0, %v1133
        %v1135 = vpop.f32.mrb[0].mxu0
        %v1136 = vadd.f32 0.0, %v1135
        %v1137 = vpop.f32.mrb[0].mxu0
        %v1138 = vadd.f32 0.0, %v1137
        %1139 = vmatprep.mubr.bf16.mxu0 0
        %1140 = vmatmul.mubr.bf16.gmra.mrb[0].mxu0 %v992
        %v1141 = vpop.f32.mrb[0].mxu0
        %v1142 = vadd.f32 0.0, %v1141
        %v1143 = vpop.f32.mrb[0].mxu0
        %v1144 = vadd.f32 0.0, %v1143
        %v1145 = vpop.f32.mrb[0].mxu0
        %v1146 = vadd.f32 0.0, %v1145
        %v1147 = vpop.f32.mrb[0].mxu0
        %v1148 = vadd.f32 0.0, %v1147
        %1149 = vmatprep.mubr.bf16.mxu0 0
        %1150 = vmatmul.mubr.bf16.gmra.mrb[0].mxu0 %v993
        %v1151 = vpop.f32.mrb[0].mxu0
        %v1152 = vadd.f32 0.0, %v1151
        %v1153 = vpop.f32.mrb[0].mxu0
        %v1154 = vadd.f32 0.0, %v1153
        %v1155 = vpop.f32.mrb[0].mxu0
        %v1156 = vadd.f32 0.0, %v1155
        %v1157 = vpop.f32.mrb[0].mxu0
        %v1158 = vadd.f32 0.0, %v1157
        %1159 = vmatprep.mubr.bf16.mxu0 0
        %1160 = vmatmul.mubr.bf16.gmra.mrb[0].mxu0 %v994
        %v1161 = vpop.f32.mrb[0].mxu0
        %v1162 = vadd.f32 0.0, %v1161
        %v1163 = vpop.f32.mrb[0].mxu0
        %v1164 = vadd.f32 0.0, %v1163
        %v1165 = vpop.f32.mrb[0].mxu0
        %v1166 = vadd.f32 0.0, %v1165
        %v1167 = vpop.f32.mrb[0].mxu0
        %v1168 = vadd.f32 0.0, %v1167
        %1169 = vmatprep.mubr.bf16.mxu0 0
        %1170 = vmatmul.mubr.bf16.gmra.mrb[0].mxu0 %v995
        %v1171 = vpop.f32.mrb[0].mxu0
        %v1172 = vadd.f32 0.0, %v1171
        %v1173 = vpop.f32.mrb[0].mxu0
        %v1174 = vadd.f32 0.0, %v1173
        %v1175 = vpop.f32.mrb[0].mxu0
        %v1176 = vadd.f32 0.0, %v1175
        %v1177 = vpop.f32.mrb[0].mxu0
        %v1178 = vadd.f32 0.0, %v1177
        %1179 = vmatprep.mubr.bf16.mxu0 0
        %1180 = vmatmul.mubr.bf16.gmra.mrb[0].mxu0 %v996
        %v1181 = vpop.f32.mrb[0].mxu0
        %v1182 = vadd.f32 0.0, %v1181
        %v1183 = vpop.f32.mrb[0].mxu0
        %v1184 = vadd.f32 0.0, %v1183
        %v1185 = vpop.f32.mrb[0].mxu0
        %v1186 = vadd.f32 0.0, %v1185
        %v1187 = vpop.f32.mrb[0].mxu0
        %v1188 = vadd.f32 0.0, %v1187
        %1189 = vdwg.mxu0
        %v1190 = vadd.f32 %v1112, %v1116
        %v1191 = vadd.f32 %v1190, %v1122
        %v1192 = vadd.f32 %v1191, %v1126
        %v1193 = vrot.slane %v1192, 4
        %v1194 = vadd.f32 %v1192, %v1193
        %v1195 = vrot.slane %v1194, 2
        %v1196 = vadd.f32 %v1194, %v1195
        %v1197 = vrot.slane %v1196, 1
        %v1198 = vadd.f32 %v1196, %v1197
        %v1199 = vadd.f32 %v1114, %v1118
        %v1200 = vadd.f32 %v1199, %v1124
        %v1201 = vadd.f32 %v1200, %v1128
        %v1202 = vrot.slane %v1201, 4
        %v1203 = vadd.f32 %v1201, %v1202
        %v1204 = vrot.slane %v1203, 2
        %v1205 = vadd.f32 %v1203, %v1204
        %v1206 = vrot.slane %v1205, 1
        %v1207 = vadd.f32 %v1205, %v1206
        %v1208 = vadd.f32 %v1132, %v1136
        %v1209 = vadd.f32 %v1208, %v1142
        %v1210 = vadd.f32 %v1209, %v1146
        %v1211 = vrot.slane %v1210, 4
        %v1212 = vadd.f32 %v1210, %v1211
        %v1213 = vrot.slane %v1212, 2
        %v1214 = vadd.f32 %v1212, %v1213
        %v1215 = vrot.slane %v1214, 1
        %v1216 = vadd.f32 %v1214, %v1215
        %v1217 = vadd.f32 %v1134, %v1138
        %v1218 = vadd.f32 %v1217, %v1144
        %v1219 = vadd.f32 %v1218, %v1148
        %v1220 = vrot.slane %v1219, 4
        %v1221 = vadd.f32 %v1219, %v1220
        %v1222 = vrot.slane %v1221, 2
        %v1223 = vadd.f32 %v1221, %v1222
        %v1224 = vrot.slane %v1223, 1
        %v1225 = vadd.f32 %v1223, %v1224
        %v1226 = vadd.f32 %v1152, %v1156
        %v1227 = vadd.f32 %v1226, %v1162
        %v1228 = vadd.f32 %v1227, %v1166
        %v1229 = vrot.slane %v1228, 4
        %v1230 = vadd.f32 %v1228, %v1229
        %v1231 = vrot.slane %v1230, 2
        %v1232 = vadd.f32 %v1230, %v1231
        %v1233 = vrot.slane %v1232, 1
        %v1234 = vadd.f32 %v1232, %v1233
        %v1235 = vadd.f32 %v1154, %v1158
        %v1236 = vadd.f32 %v1235, %v1164
        %v1237 = vadd.f32 %v1236, %v1168
        %v1238 = vrot.slane %v1237, 4
        %v1239 = vadd.f32 %v1237, %v1238
        %v1240 = vrot.slane %v1239, 2
        %v1241 = vadd.f32 %v1239, %v1240
        %v1242 = vrot.slane %v1241, 1
        %v1243 = vadd.f32 %v1241, %v1242
        %v1244 = vadd.f32 %v1172, %v1176
        %v1245 = vadd.f32 %v1244, %v1182
        %v1246 = vadd.f32 %v1245, %v1186
        %v1247 = vrot.slane %v1246, 4
        %v1248 = vadd.f32 %v1246, %v1247
        %v1249 = vrot.slane %v1248, 2
        %v1250 = vadd.f32 %v1248, %v1249
        %v1251 = vrot.slane %v1250, 1
        %v1252 = vadd.f32 %v1250, %v1251
        %v1253 = vadd.f32 %v1174, %v1178
        %v1254 = vadd.f32 %v1253, %v1184
        %v1255 = vadd.f32 %v1254, %v1188
        %v1256 = vrot.slane %v1255, 4
        %v1257 = vadd.f32 %v1255, %v1256
        %v1258 = vrot.slane %v1257, 2
        %v1259 = vadd.f32 %v1257, %v1258
        %v1260 = vrot.slane %v1259, 1
        %v1261 = vadd.f32 %v1259, %v1260
        %v1262 = vmul.f32 %v1198, %v578
        %v1263 = vmul.f32 %v1207, %v578
        %v1264 = vmul.f32 %v1216, %v578
        %v1265 = vmul.f32 %v1225, %v578
        %v1266 = vmul.f32 %v1234, %v578
        %v1267 = vmul.f32 %v1243, %v578
        %v1268 = vmul.f32 %v1252, %v578
        %v1269 = vmul.f32 %v1261, %v578
        %v1270 = vsub.f32 %v1112, %v1262
        %v1271 = vsub.f32 %v1114, %v1263
        %v1272 = vsub.f32 %v1116, %v1262
        %v1273 = vsub.f32 %v1118, %v1263
        %v1274 = vsub.f32 %v1122, %v1262
        %v1275 = vsub.f32 %v1124, %v1263
        %v1276 = vsub.f32 %v1126, %v1262
        %v1277 = vsub.f32 %v1128, %v1263
        %v1278 = vsub.f32 %v1132, %v1264
        %v1279 = vsub.f32 %v1134, %v1265
        %v1280 = vsub.f32 %v1136, %v1264
        %v1281 = vsub.f32 %v1138, %v1265
        %v1282 = vsub.f32 %v1142, %v1264
        %v1283 = vsub.f32 %v1144, %v1265
        %v1284 = vsub.f32 %v1146, %v1264
        %v1285 = vsub.f32 %v1148, %v1265
        %v1286 = vsub.f32 %v1152, %v1266
        %v1287 = vsub.f32 %v1154, %v1267
        %v1288 = vsub.f32 %v1156, %v1266
        %v1289 = vsub.f32 %v1158, %v1267
        %v1290 = vsub.f32 %v1162, %v1266
        %v1291 = vsub.f32 %v1164, %v1267
        %v1292 = vsub.f32 %v1166, %v1266
        %v1293 = vsub.f32 %v1168, %v1267
        %v1294 = vsub.f32 %v1172, %v1268
        %v1295 = vsub.f32 %v1174, %v1269
        %v1296 = vsub.f32 %v1176, %v1268
        %v1297 = vsub.f32 %v1178, %v1269
        %v1298 = vsub.f32 %v1182, %v1268
        %v1299 = vsub.f32 %v1184, %v1269
        %v1300 = vsub.f32 %v1186, %v1268
        %v1301 = vsub.f32 %v1188, %v1269
        %v1302 = vmul.f32 %v1270, %v1270
        %v1303 = vmul.f32 %v1271, %v1271
        %v1304 = vmul.f32 %v1272, %v1272
        %v1305 = vmul.f32 %v1273, %v1273
        %v1306 = vmul.f32 %v1274, %v1274
        %v1307 = vmul.f32 %v1275, %v1275
        %v1308 = vmul.f32 %v1276, %v1276
        %v1309 = vmul.f32 %v1277, %v1277
        %v1310 = vmul.f32 %v1278, %v1278
        %v1311 = vmul.f32 %v1279, %v1279
        %v1312 = vmul.f32 %v1280, %v1280
        %v1313 = vmul.f32 %v1281, %v1281
        %v1314 = vmul.f32 %v1282, %v1282
        %v1315 = vmul.f32 %v1283, %v1283
        %v1316 = vmul.f32 %v1284, %v1284
        %v1317 = vmul.f32 %v1285, %v1285
        %v1318 = vmul.f32 %v1286, %v1286
        %v1319 = vmul.f32 %v1287, %v1287
        %v1320 = vmul.f32 %v1288, %v1288
        %v1321 = vmul.f32 %v1289, %v1289
        %v1322 = vmul.f32 %v1290, %v1290
        %v1323 = vmul.f32 %v1291, %v1291
        %v1324 = vmul.f32 %v1292, %v1292
        %v1325 = vmul.f32 %v1293, %v1293
        %v1326 = vmul.f32 %v1294, %v1294
        %v1327 = vmul.f32 %v1295, %v1295
        %v1328 = vmul.f32 %v1296, %v1296
        %v1329 = vmul.f32 %v1297, %v1297
        %v1330 = vmul.f32 %v1298, %v1298
        %v1331 = vmul.f32 %v1299, %v1299
        %v1332 = vmul.f32 %v1300, %v1300
        %v1333 = vmul.f32 %v1301, %v1301
        %v1334 = vadd.f32 %v1302, %v1304
        %v1335 = vadd.f32 %v1334, %v1306
        %v1336 = vadd.f32 %v1335, %v1308
        %v1337 = vrot.slane %v1336, 4
        %v1338 = vadd.f32 %v1336, %v1337
        %v1339 = vrot.slane %v1338, 2
        %v1340 = vadd.f32 %v1338, %v1339
        %v1341 = vrot.slane %v1340, 1
        %v1342 = vadd.f32 %v1340, %v1341
        %v1343 = vadd.f32 %v1303, %v1305
        %v1344 = vadd.f32 %v1343, %v1307
        %v1345 = vadd.f32 %v1344, %v1309
        %v1346 = vrot.slane %v1345, 4
        %v1347 = vadd.f32 %v1345, %v1346
        %v1348 = vrot.slane %v1347, 2
        %v1349 = vadd.f32 %v1347, %v1348
        %v1350 = vrot.slane %v1349, 1
        %v1351 = vadd.f32 %v1349, %v1350
        %v1352 = vadd.f32 %v1310, %v1312
        %v1353 = vadd.f32 %v1352, %v1314
        %v1354 = vadd.f32 %v1353, %v1316
        %v1355 = vrot.slane %v1354, 4
        %v1356 = vadd.f32 %v1354, %v1355
        %v1357 = vrot.slane %v1356, 2
        %v1358 = vadd.f32 %v1356, %v1357
        %v1359 = vrot.slane %v1358, 1
        %v1360 = vadd.f32 %v1358, %v1359
        %v1361 = vadd.f32 %v1311, %v1313
        %v1362 = vadd.f32 %v1361, %v1315
        %v1363 = vadd.f32 %v1362, %v1317
        %v1364 = vrot.slane %v1363, 4
        %v1365 = vadd.f32 %v1363, %v1364
        %v1366 = vrot.slane %v1365, 2
        %v1367 = vadd.f32 %v1365, %v1366
        %v1368 = vrot.slane %v1367, 1
        %v1369 = vadd.f32 %v1367, %v1368
        %v1370 = vadd.f32 %v1318, %v1320
        %v1371 = vadd.f32 %v1370, %v1322
        %v1372 = vadd.f32 %v1371, %v1324
        %v1373 = vrot.slane %v1372, 4
        %v1374 = vadd.f32 %v1372, %v1373
        %v1375 = vrot.slane %v1374, 2
        %v1376 = vadd.f32 %v1374, %v1375
        %v1377 = vrot.slane %v1376, 1
        %v1378 = vadd.f32 %v1376, %v1377
        %v1379 = vadd.f32 %v1319, %v1321
        %v1380 = vadd.f32 %v1379, %v1323
        %v1381 = vadd.f32 %v1380, %v1325
        %v1382 = vrot.slane %v1381, 4
        %v1383 = vadd.f32 %v1381, %v1382
        %v1384 = vrot.slane %v1383, 2
        %v1385 = vadd.f32 %v1383, %v1384
        %v1386 = vrot.slane %v1385, 1
        %v1387 = vadd.f32 %v1385, %v1386
        %v1388 = vadd.f32 %v1326, %v1328
        %v1389 = vadd.f32 %v1388, %v1330
        %v1390 = vadd.f32 %v1389, %v1332
        %v1391 = vrot.slane %v1390, 4
        %v1392 = vadd.f32 %v1390, %v1391
        %v1393 = vrot.slane %v1392, 2
        %v1394 = vadd.f32 %v1392, %v1393
        %v1395 = vrot.slane %v1394, 1
        %v1396 = vadd.f32 %v1394, %v1395
        %v1397 = vadd.f32 %v1327, %v1329
        %v1398 = vadd.f32 %v1397, %v1331
        %v1399 = vadd.f32 %v1398, %v1333
        %v1400 = vrot.slane %v1399, 4
        %v1401 = vadd.f32 %v1399, %v1400
        %v1402 = vrot.slane %v1401, 2
        %v1403 = vadd.f32 %v1401, %v1402
        %v1404 = vrot.slane %v1403, 1
        %v1405 = vadd.f32 %v1403, %v1404
        %v1406 = vmul.f32 %v1342, %v578
        %v1407 = vmul.f32 %v1351, %v578
        %v1408 = vmul.f32 %v1360, %v578
        %v1409 = vmul.f32 %v1369, %v578
        %v1410 = vmul.f32 %v1378, %v578
        %v1411 = vmul.f32 %v1387, %v578
        %v1412 = vmul.f32 %v1396, %v578
        %v1413 = vmul.f32 %v1405, %v578
        %v1414 = vld [vmem:[%s1] sm:$0xc]
        %v1415 = vld [vmem:[%s1 + $0x8] sm:$0xc]
        %v1416 = vadd.f32 %v1406, 1e-05
        %v1417 = vadd.f32 %v1407, 1e-05
        %v1418 = vadd.f32 %v1408, 1e-05
        %v1419 = vadd.f32 %v1409, 1e-05
        %v1420 = vadd.f32 %v1410, 1e-05
        %v1421 = vadd.f32 %v1411, 1e-05
        %v1422 = vadd.f32 %v1412, 1e-05
        %v1423 = vadd.f32 %v1413, 1e-05
        %v1424 = vrsqrt.pop %v1416
        %v1425 = vrsqrt.pop %v1417
        %v1426 = vrsqrt.pop %v1418
        %v1427 = vrsqrt.pop %v1419
        %v1428 = vrsqrt.pop %v1420
        %v1429 = vrsqrt.pop %v1421
        %v1430 = vrsqrt.pop %v1422
        %v1431 = vrsqrt.pop %v1423
        %v1432 = vmul.f32 %v1424, %v1414
        %v1433 = vmul.f32 %v1425, %v1415
        %v1434 = vmul.f32 %v1426, %v1414
        %v1435 = vmul.f32 %v1427, %v1415
        %v1436 = vmul.f32 %v1428, %v1414
        %v1437 = vmul.f32 %v1429, %v1415
        %v1438 = vmul.f32 %v1430, %v1414
        %v1439 = vmul.f32 %v1431, %v1415
        %v1440 = vlaneseq
        %v1441 = vshrl.u32 %v1440, 7
        %v1442 = vsub.s32 2, %v1441
        %v1443 = vrot.slane %v1432, %v1442
        %v1444 = vlaneseq
        %v1445 = vshrl.u32 %v1444, 7
        %v1446 = vsub.s32 2, %v1445
        %v1447 = vrot.slane %v1433, %v1446
        %v1448 = vlaneseq
        %v1449 = vshrl.u32 %v1448, 7
        %v1450 = vsub.s32 2, %v1449
        %v1451 = vrot.slane %v1434, %v1450
        %v1452 = vlaneseq
        %v1453 = vshrl.u32 %v1452, 7
        %v1454 = vsub.s32 2, %v1453
        %v1455 = vrot.slane %v1435, %v1454
        %v1456 = vlaneseq
        %v1457 = vshrl.u32 %v1456, 7
        %v1458 = vsub.s32 2, %v1457
        %v1459 = vrot.slane %v1436, %v1458
        %v1460 = vlaneseq
        %v1461 = vshrl.u32 %v1460, 7
        %v1462 = vsub.s32 2, %v1461
        %v1463 = vrot.slane %v1437, %v1462
        %v1464 = vlaneseq
        %v1465 = vshrl.u32 %v1464, 7
        %v1466 = vsub.s32 2, %v1465
        %v1467 = vrot.slane %v1438, %v1466
        %v1468 = vlaneseq
        %v1469 = vshrl.u32 %v1468, 7
        %v1470 = vsub.s32 2, %v1469
        %v1471 = vrot.slane %v1439, %v1470
        %v1472 = vmul.f32 %v1270, %v1443
        %v1473 = vmul.f32 %v1271, %v1447
        %v1474 = vmul.f32 %v1272, %v1443
        %v1475 = vmul.f32 %v1273, %v1447
        %v1476 = vmul.f32 %v1274, %v1443
        %v1477 = vmul.f32 %v1275, %v1447
        %v1478 = vmul.f32 %v1276, %v1443
        %v1479 = vmul.f32 %v1277, %v1447
        %v1480 = vmul.f32 %v1278, %v1451
        %v1481 = vmul.f32 %v1279, %v1455
        %v1482 = vmul.f32 %v1280, %v1451
        %v1483 = vmul.f32 %v1281, %v1455
        %v1484 = vmul.f32 %v1282, %v1451
        %v1485 = vmul.f32 %v1283, %v1455
        %v1486 = vmul.f32 %v1284, %v1451
        %v1487 = vmul.f32 %v1285, %v1455
        %v1488 = vmul.f32 %v1286, %v1459
        %v1489 = vmul.f32 %v1287, %v1463
        %v1490 = vmul.f32 %v1288, %v1459
        %v1491 = vmul.f32 %v1289, %v1463
        %v1492 = vmul.f32 %v1290, %v1459
        %v1493 = vmul.f32 %v1291, %v1463
        %v1494 = vmul.f32 %v1292, %v1459
        %v1495 = vmul.f32 %v1293, %v1463
        %v1496 = vmul.f32 %v1294, %v1467
        %v1497 = vmul.f32 %v1295, %v1471
        %v1498 = vmul.f32 %v1296, %v1467
        %v1499 = vmul.f32 %v1297, %v1471
        %v1500 = vmul.f32 %v1298, %v1467
        %v1501 = vmul.f32 %v1299, %v1471
        %v1502 = vmul.f32 %v1300, %v1467
        %v1503 = vmul.f32 %v1301, %v1471
        %v1504 = vlaneseq
        %v1505 = vshrl.u32 %v1504, 7
        %v1506 = vsub.s32 3, %v1505
        %v1507 = vrot.slane %v1414, %v1506
        %v1508 = vlaneseq
        %v1509 = vshrl.u32 %v1508, 7
        %v1510 = vsub.s32 3, %v1509
        %v1511 = vrot.slane %v1415, %v1510
        %v1512 = vadd.f32 %v1472, %v1507
        %v1513 = vadd.f32 %v1473, %v1511
        %v1514 = vadd.f32 %v1474, %v1507
        %v1515 = vadd.f32 %v1475, %v1511
        %v1516 = vadd.f32 %v1476, %v1507
        %v1517 = vadd.f32 %v1477, %v1511
        %v1518 = vadd.f32 %v1478, %v1507
        %v1519 = vadd.f32 %v1479, %v1511
        %v1520 = vadd.f32 %v1480, %v1507
        %v1521 = vadd.f32 %v1481, %v1511
        %v1522 = vadd.f32 %v1482, %v1507
        %v1523 = vadd.f32 %v1483, %v1511
        %v1524 = vadd.f32 %v1484, %v1507
        %v1525 = vadd.f32 %v1485, %v1511
        %v1526 = vadd.f32 %v1486, %v1507
        %v1527 = vadd.f32 %v1487, %v1511
        %v1528 = vadd.f32 %v1488, %v1507
        %v1529 = vadd.f32 %v1489, %v1511
        %v1530 = vadd.f32 %v1490, %v1507
        %v1531 = vadd.f32 %v1491, %v1511
        %v1532 = vadd.f32 %v1492, %v1507
        %v1533 = vadd.f32 %v1493, %v1511
        %v1534 = vadd.f32 %v1494, %v1507
        %v1535 = vadd.f32 %v1495, %v1511
        %v1536 = vadd.f32 %v1496, %v1507
        %v1537 = vadd.f32 %v1497, %v1511
        %v1538 = vadd.f32 %v1498, %v1507
        %v1539 = vadd.f32 %v1499, %v1511
        %v1540 = vadd.f32 %v1500, %v1507
        %v1541 = vadd.f32 %v1501, %v1511
        %v1542 = vadd.f32 %v1502, %v1507
        %v1543 = vadd.f32 %v1503, %v1511
        %v1544 = vxor.u32 %v1513, 2147483648
        %v1545 = vxor.u32 %v1515, 2147483648
        %v1546 = vxor.u32 %v1517, 2147483648
        %v1547 = vxor.u32 %v1519, 2147483648
        %v1548 = vxor.u32 %v1521, 2147483648
        %v1549 = vxor.u32 %v1523, 2147483648
        %v1550 = vxor.u32 %v1525, 2147483648
        %v1551 = vxor.u32 %v1527, 2147483648
        %v1552 = vxor.u32 %v1529, 2147483648
        %v1553 = vxor.u32 %v1531, 2147483648
        %v1554 = vxor.u32 %v1533, 2147483648
        %v1555 = vxor.u32 %v1535, 2147483648
        %v1556 = vxor.u32 %v1537, 2147483648
        %v1557 = vxor.u32 %v1539, 2147483648
        %v1558 = vxor.u32 %v1541, 2147483648
        %v1559 = vxor.u32 %v1543, 2147483648
        %v1560 = vmul.f32 %v1544, 1.442695
        %v1561 = vpow.pop %v1560
        %v1562 = vmul.f32 %v1545, 1.442695
        %v1563 = vpow.pop %v1562
        %v1564 = vmul.f32 %v1546, 1.442695
        %v1565 = vpow.pop %v1564
        %v1566 = vmul.f32 %v1547, 1.442695
        %v1567 = vpow.pop %v1566
        %v1568 = vmul.f32 %v1548, 1.442695
        %v1569 = vpow.pop %v1568
        %v1570 = vmul.f32 %v1549, 1.442695
        %v1571 = vpow.pop %v1570
        %v1572 = vmul.f32 %v1550, 1.442695
        %v1573 = vpow.pop %v1572
        %v1574 = vmul.f32 %v1551, 1.442695
        %v1575 = vpow.pop %v1574
        %v1576 = vmul.f32 %v1552, 1.442695
        %v1577 = vpow.pop %v1576
        %v1578 = vmul.f32 %v1553, 1.442695
        %v1579 = vpow.pop %v1578
        %v1580 = vmul.f32 %v1554, 1.442695
        %v1581 = vpow.pop %v1580
        %v1582 = vmul.f32 %v1555, 1.442695
        %v1583 = vpow.pop %v1582
        %v1584 = vmul.f32 %v1556, 1.442695
        %v1585 = vpow.pop %v1584
        %v1586 = vmul.f32 %v1557, 1.442695
        %v1587 = vpow.pop %v1586
        %v1588 = vmul.f32 %v1558, 1.442695
        %v1589 = vpow.pop %v1588
        %v1590 = vmul.f32 %v1559, 1.442695
        %v1591 = vpow.pop %v1590
        %v1592 = vadd.f32 %v1561, 1.0
        %v1593 = vadd.f32 %v1563, 1.0
        %v1594 = vadd.f32 %v1565, 1.0
        %v1595 = vadd.f32 %v1567, 1.0
        %v1596 = vadd.f32 %v1569, 1.0
        %v1597 = vadd.f32 %v1571, 1.0
        %v1598 = vadd.f32 %v1573, 1.0
        %v1599 = vadd.f32 %v1575, 1.0
        %v1600 = vadd.f32 %v1577, 1.0
        %v1601 = vadd.f32 %v1579, 1.0
        %v1602 = vadd.f32 %v1581, 1.0
        %v1603 = vadd.f32 %v1583, 1.0
        %v1604 = vadd.f32 %v1585, 1.0
        %v1605 = vadd.f32 %v1587, 1.0
        %v1606 = vadd.f32 %v1589, 1.0
        %v1607 = vadd.f32 %v1591, 1.0
        %v1608 = vrcp.pop %v1592
        %v1609 = vmul.f32 1.0, %v1608
        %v1610 = vrcp.pop %v1593
        %v1611 = vmul.f32 1.0, %v1610
        %v1612 = vrcp.pop %v1594
        %v1613 = vmul.f32 1.0, %v1612
        %v1614 = vrcp.pop %v1595
        %v1615 = vmul.f32 1.0, %v1614
        %v1616 = vrcp.pop %v1596
        %v1617 = vmul.f32 1.0, %v1616
        %v1618 = vrcp.pop %v1597
        %v1619 = vmul.f32 1.0, %v1618
        %v1620 = vrcp.pop %v1598
        %v1621 = vmul.f32 1.0, %v1620
        %v1622 = vrcp.pop %v1599
        %v1623 = vmul.f32 1.0, %v1622
        %v1624 = vrcp.pop %v1600
        %v1625 = vmul.f32 1.0, %v1624
        %v1626 = vrcp.pop %v1601
        %v1627 = vmul.f32 1.0, %v1626
        %v1628 = vrcp.pop %v1602
        %v1629 = vmul.f32 1.0, %v1628
        %v1630 = vrcp.pop %v1603
        %v1631 = vmul.f32 1.0, %v1630
        %v1632 = vrcp.pop %v1604
        %v1633 = vmul.f32 1.0, %v1632
        %v1634 = vrcp.pop %v1605
        %v1635 = vmul.f32 1.0, %v1634
        %v1636 = vrcp.pop %v1606
        %v1637 = vmul.f32 1.0, %v1636
        %v1638 = vrcp.pop %v1607
        %v1639 = vmul.f32 1.0, %v1638
        %v1640 = vmul.f32 %v1512, %v1609
        %v1641 = vmul.f32 %v1514, %v1611
        %v1642 = vmul.f32 %v1516, %v1613
        %v1643 = vmul.f32 %v1518, %v1615
        %v1644 = vmul.f32 %v1520, %v1617
        %v1645 = vmul.f32 %v1522, %v1619
        %v1646 = vmul.f32 %v1524, %v1621
        %v1647 = vmul.f32 %v1526, %v1623
        %v1648 = vmul.f32 %v1528, %v1625
        %v1649 = vmul.f32 %v1530, %v1627
        %v1650 = vmul.f32 %v1532, %v1629
        %v1651 = vmul.f32 %v1534, %v1631
        %v1652 = vmul.f32 %v1536, %v1633
        %v1653 = vmul.f32 %v1538, %v1635
        %v1654 = vmul.f32 %v1540, %v1637
        %v1655 = vmul.f32 %v1542, %v1639
        %v1656 = vadd.f32 %v957, %v1640
        %v1657 = vadd.f32 %v958, %v1641
        %v1658 = vadd.f32 %v959, %v1642
        %v1659 = vadd.f32 %v960, %v1643
        %v1660 = vadd.f32 %v961, %v1644
        %v1661 = vadd.f32 %v962, %v1645
        %v1662 = vadd.f32 %v963, %v1646
        %v1663 = vadd.f32 %v964, %v1647
        %v1664 = vadd.f32 %v965, %v1648
        %v1665 = vadd.f32 %v966, %v1649
        %v1666 = vadd.f32 %v967, %v1650
        %v1667 = vadd.f32 %v968, %v1651
        %v1668 = vadd.f32 %v969, %v1652
        %v1669 = vadd.f32 %v970, %v1653
        %v1670 = vadd.f32 %v971, %v1654
        %v1671 = vadd.f32 %v972, %v1655
        %v1672 = vmul.f32 %v1656, 0.70710677
        %v1673 = vmul.f32 %v1657, 0.70710677
        %v1674 = vmul.f32 %v1658, 0.70710677
        %v1675 = vmul.f32 %v1659, 0.70710677
        %v1676 = vmul.f32 %v1660, 0.70710677
        %v1677 = vmul.f32 %v1661, 0.70710677
        %v1678 = vmul.f32 %v1662, 0.70710677
        %v1679 = vmul.f32 %v1663, 0.70710677
        %v1680 = vmul.f32 %v1664, 0.70710677
        %v1681 = vmul.f32 %v1665, 0.70710677
        %v1682 = vmul.f32 %v1666, 0.70710677
        %v1683 = vmul.f32 %v1667, 0.70710677
        %v1684 = vmul.f32 %v1668, 0.70710677
        %v1685 = vmul.f32 %v1669, 0.70710677
        %v1686 = vmul.f32 %v1670, 0.70710677
        %v1687 = vmul.f32 %v1671, 0.70710677
        %v1688 = vld [vmem:[#allocation4] sm:$0xff]
        %v1689 = vld [vmem:[#allocation4 + $0x8] sm:$0xff]
        %v1690 = vld [vmem:[#allocation4 + $0x10] sm:$0xff]
        %v1691 = vld [vmem:[#allocation4 + $0x18] sm:$0xff]
        %v1692 = vld [vmem:[#allocation4 + $0x20] sm:$0xff]
        %v1693 = vld [vmem:[#allocation4 + $0x28] sm:$0xff]
        %v1694 = vld [vmem:[#allocation4 + $0x30] sm:$0xff]
        %v1695 = vld [vmem:[#allocation4 + $0x38] sm:$0xff]
        %v1696 = vld [vmem:[#allocation4 + $0x40] sm:$0xff]
        %v1697 = vld [vmem:[#allocation4 + $0x48] sm:$0xff]
        %v1698 = vld [vmem:[#allocation4 + $0x50] sm:$0xff]
        %v1699 = vld [vmem:[#allocation4 + $0x58] sm:$0xff]
        %v1700 = vld [vmem:[#allocation4 + $0x60] sm:$0xff]
        %v1701 = vld [vmem:[#allocation4 + $0x68] sm:$0xff]
        %v1702 = vld [vmem:[#allocation4 + $0x70] sm:$0xff]
        %v1703 = vld [vmem:[#allocation4 + $0x78] sm:$0xff]
        %v1704 = vpack.c.bf16 %v1673, %v1672
        %v1705 = vpack.c.bf16 %v1675, %v1674
        %v1706 = vpack.c.bf16 %v1677, %v1676
        %v1707 = vpack.c.bf16 %v1679, %v1678
        %v1708 = vpack.c.bf16 %v1681, %v1680
        %v1709 = vpack.c.bf16 %v1683, %v1682
        %v1710 = vpack.c.bf16 %v1685, %v1684
        %v1711 = vpack.c.bf16 %v1687, %v1686
        %v1728 = vunpack.c.l.b16 %v1688
        %v1729 = vunpack.c.h.b16 %v1688
        %v1730 = vunpack.c.l.b16 %v1689
        %v1731 = vunpack.c.h.b16 %v1689
        %v1732 = vunpack.c.l.b16 %v1690
        %v1733 = vunpack.c.h.b16 %v1690
        %v1734 = vunpack.c.l.b16 %v1691
        %v1735 = vunpack.c.h.b16 %v1691
        %v1736 = vunpack.c.l.b16 %v1692
        %v1737 = vunpack.c.h.b16 %v1692
        %v1738 = vunpack.c.l.b16 %v1693
        %v1739 = vunpack.c.h.b16 %v1693
        %v1740 = vunpack.c.l.b16 %v1694
        %v1741 = vunpack.c.h.b16 %v1694
        %v1742 = vunpack.c.l.b16 %v1695
        %v1743 = vunpack.c.h.b16 %v1695
        %v1744 = vunpack.c.l.b16 %v1696
        %v1745 = vunpack.c.h.b16 %v1696
        %v1746 = vunpack.c.l.b16 %v1697
        %v1747 = vunpack.c.h.b16 %v1697
        %v1748 = vunpack.c.l.b16 %v1698
        %v1749 = vunpack.c.h.b16 %v1698
        %v1750 = vunpack.c.l.b16 %v1699
        %v1751 = vunpack.c.h.b16 %v1699
        %v1752 = vunpack.c.l.b16 %v1700
        %v1753 = vunpack.c.h.b16 %v1700
        %v1754 = vunpack.c.l.b16 %v1701
        %v1755 = vunpack.c.h.b16 %v1701
        %v1756 = vunpack.c.l.b16 %v1702
        %v1757 = vunpack.c.h.b16 %v1702
        %v1758 = vunpack.c.l.b16 %v1703
        %v1759 = vunpack.c.h.b16 %v1703
        %v1760 = vpack.c.b16 %v1730, %v1728
        %v1761 = vpack.c.b16 %v1731, %v1729
        %v1762 = vpack.c.b16 %v1734, %v1732
        %v1763 = vpack.c.b16 %v1735, %v1733
        %v1764 = vpack.c.b16 %v1738, %v1736
        %v1765 = vpack.c.b16 %v1739, %v1737
        %v1766 = vpack.c.b16 %v1742, %v1740
        %v1767 = vpack.c.b16 %v1743, %v1741
        %v1768 = vpack.c.b16 %v1746, %v1744
        %v1769 = vpack.c.b16 %v1747, %v1745
        %v1770 = vpack.c.b16 %v1750, %v1748
        %v1771 = vpack.c.b16 %v1751, %v1749
        %v1772 = vpack.c.b16 %v1754, %v1752
        %v1773 = vpack.c.b16 %v1755, %v1753
        %v1774 = vpack.c.b16 %v1758, %v1756
        %v1775 = vpack.c.b16 %v1759, %v1757
        %1792 = vmatprep.subr.bf16.mxu0 %v1761
        %1793 = vmatpush1.bf16.msra.mxu0 %v1760
        %1794 = vmatprep.subr.bf16.mxu0 %v1763
        %1795 = vmatpush1.bf16.msra.mxu0 %v1762
        %1796 = vmatprep.subr.bf16.mxu0 %v1765
        %1797 = vmatpush1.bf16.msra.mxu0 %v1764
        %1798 = vmatprep.subr.bf16.mxu0 %v1767
        %1799 = vmatpush1.bf16.msra.mxu0 %v1766
        %1800 = vmatprep.subr.bf16.mxu0 %v1769
        %1801 = vmatpush1.bf16.msra.mxu0 %v1768
        %1802 = vmatprep.subr.bf16.mxu0 %v1771
        %1803 = vmatpush1.bf16.msra.mxu0 %v1770
        %1804 = vmatprep.subr.bf16.mxu0 %v1773
        %1805 = vmatpush1.bf16.msra.mxu0 %v1772
        %1806 = vmatprep.subr.bf16.mxu0 %v1775
        %1807 = vmatpush1.bf16.msra.mxu0 %v1774
        %1808 = vmatprep.subr.bf16.mxu0 0
        %1809 = vmatpush1.bf16.msra.mxu0 0
        %1810 = vmatprep.subr.bf16.mxu0 0
        %1811 = vmatpush1.bf16.msra.mxu0 0
        %1812 = vmatprep.subr.bf16.mxu0 0
        %1813 = vmatpush1.bf16.msra.mxu0 0
        %1814 = vmatprep.subr.bf16.mxu0 0
        %1815 = vmatpush1.bf16.msra.mxu0 0
        %1816 = vmatprep.subr.bf16.mxu0 0
        %1817 = vmatpush1.bf16.msra.mxu0 0
        %1818 = vmatprep.subr.bf16.mxu0 0
        %1819 = vmatpush1.bf16.msra.mxu0 0
        %1820 = vmatprep.subr.bf16.mxu0 0
        %1821 = vmatpush1.bf16.msra.mxu0 0
        %1822 = vmatprep.subr.bf16.mxu0 0
        %1823 = vmatpush1.bf16.msra.mxu0 0
        %1824 = vmatprep.mubr.bf16.mxu0 0
        %1825 = vmatmul.mubr.bf16.gmra.mrb[0].mxu0 %v1704
        %v1826 = vpop.f32.mrb[0].mxu0
        %v1827 = vadd.f32 0.0, %v1826
        %v1828 = vpop.f32.mrb[0].mxu0
        %v1829 = vadd.f32 0.0, %v1828
        %v1830 = vpop.f32.mrb[0].mxu0
        %v1831 = vadd.f32 0.0, %v1830
        %v1832 = vpop.f32.mrb[0].mxu0
        %v1833 = vadd.f32 0.0, %v1832
        %1834 = vmatprep.mubr.bf16.mxu0 0
        %1835 = vmatmul.mubr.bf16.gmra.mrb[0].mxu0 %v1705
        %v1836 = vpop.f32.mrb[0].mxu0
        %v1837 = vadd.f32 0.0, %v1836
        %v1838 = vpop.f32.mrb[0].mxu0
        %v1839 = vadd.f32 0.0, %v1838
        %v1840 = vpop.f32.mrb[0].mxu0
        %v1841 = vadd.f32 0.0, %v1840
        %v1842 = vpop.f32.mrb[0].mxu0
        %v1843 = vadd.f32 0.0, %v1842
        %1844 = vmatprep.mubr.bf16.mxu0 0
        %1845 = vmatmul.mubr.bf16.gmra.mrb[0].mxu0 %v1706
        %v1846 = vpop.f32.mrb[0].mxu0
        %v1847 = vadd.f32 0.0, %v1846
        %v1848 = vpop.f32.mrb[0].mxu0
        %v1849 = vadd.f32 0.0, %v1848
        %v1850 = vpop.f32.mrb[0].mxu0
        %v1851 = vadd.f32 0.0, %v1850
        %v1852 = vpop.f32.mrb[0].mxu0
        %v1853 = vadd.f32 0.0, %v1852
        %1854 = vmatprep.mubr.bf16.mxu0 0
        %1855 = vmatmul.mubr.bf16.gmra.mrb[0].mxu0 %v1707
        %v1856 = vpop.f32.mrb[0].mxu0
        %v1857 = vadd.f32 0.0, %v1856
        %v1858 = vpop.f32.mrb[0].mxu0
        %v1859 = vadd.f32 0.0, %v1858
        %v1860 = vpop.f32.mrb[0].mxu0
        %v1861 = vadd.f32 0.0, %v1860
        %v1862 = vpop.f32.mrb[0].mxu0
        %v1863 = vadd.f32 0.0, %v1862
        %1864 = vmatprep.mubr.bf16.mxu0 0
        %1865 = vmatmul.mubr.bf16.gmra.mrb[0].mxu0 %v1708
        %v1866 = vpop.f32.mrb[0].mxu0
        %v1867 = vadd.f32 0.0, %v1866
        %v1868 = vpop.f32.mrb[0].mxu0
        %v1869 = vadd.f32 0.0, %v1868
        %v1870 = vpop.f32.mrb[0].mxu0
        %v1871 = vadd.f32 0.0, %v1870
        %v1872 = vpop.f32.mrb[0].mxu0
        %v1873 = vadd.f32 0.0, %v1872
        %1874 = vmatprep.mubr.bf16.mxu0 0
        %1875 = vmatmul.mubr.bf16.gmra.mrb[0].mxu0 %v1709
        %v1876 = vpop.f32.mrb[0].mxu0
        %v1877 = vadd.f32 0.0, %v1876
        %v1878 = vpop.f32.mrb[0].mxu0
        %v1879 = vadd.f32 0.0, %v1878
        %v1880 = vpop.f32.mrb[0].mxu0
        %v1881 = vadd.f32 0.0, %v1880
        %v1882 = vpop.f32.mrb[0].mxu0
        %v1883 = vadd.f32 0.0, %v1882
        %1884 = vmatprep.mubr.bf16.mxu0 0
        %1885 = vmatmul.mubr.bf16.gmra.mrb[0].mxu0 %v1710
        %v1886 = vpop.f32.mrb[0].mxu0
        %v1887 = vadd.f32 0.0, %v1886
        %v1888 = vpop.f32.mrb[0].mxu0
        %v1889 = vadd.f32 0.0, %v1888
        %v1890 = vpop.f32.mrb[0].mxu0
        %v1891 = vadd.f32 0.0, %v1890
        %v1892 = vpop.f32.mrb[0].mxu0
        %v1893 = vadd.f32 0.0, %v1892
        %1894 = vmatprep.mubr.bf16.mxu0 0
        %1895 = vmatmul.mubr.bf16.gmra.mrb[0].mxu0 %v1711
        %v1896 = vpop.f32.mrb[0].mxu0
        %v1897 = vadd.f32 0.0, %v1896
        %v1898 = vpop.f32.mrb[0].mxu0
        %v1899 = vadd.f32 0.0, %v1898
        %v1900 = vpop.f32.mrb[0].mxu0
        %v1901 = vadd.f32 0.0, %v1900
        %v1902 = vpop.f32.mrb[0].mxu0
        %v1903 = vadd.f32 0.0, %v1902
        %1904 = vdwg.mxu0
        %v1905 = vadd.f32 %v1827, %v1831
        %v1906 = vadd.f32 %v1905, %v1837
        %v1907 = vadd.f32 %v1906, %v1841
        %v1908 = vrot.slane %v1907, 4
        %v1909 = vadd.f32 %v1907, %v1908
        %v1910 = vrot.slane %v1909, 2
        %v1911 = vadd.f32 %v1909, %v1910
        %v1912 = vrot.slane %v1911, 1
        %v1913 = vadd.f32 %v1911, %v1912
        %v1914 = vadd.f32 %v1829, %v1833
        %v1915 = vadd.f32 %v1914, %v1839
        %v1916 = vadd.f32 %v1915, %v1843
        %v1917 = vrot.slane %v1916, 4
        %v1918 = vadd.f32 %v1916, %v1917
        %v1919 = vrot.slane %v1918, 2
        %v1920 = vadd.f32 %v1918, %v1919
        %v1921 = vrot.slane %v1920, 1
        %v1922 = vadd.f32 %v1920, %v1921
        %v1923 = vadd.f32 %v1847, %v1851
        %v1924 = vadd.f32 %v1923, %v1857
        %v1925 = vadd.f32 %v1924, %v1861
        %v1926 = vrot.slane %v1925, 4
        %v1927 = vadd.f32 %v1925, %v1926
        %v1928 = vrot.slane %v1927, 2
        %v1929 = vadd.f32 %v1927, %v1928
        %v1930 = vrot.slane %v1929, 1
        %v1931 = vadd.f32 %v1929, %v1930
        %v1932 = vadd.f32 %v1849, %v1853
        %v1933 = vadd.f32 %v1932, %v1859
        %v1934 = vadd.f32 %v1933, %v1863
        %v1935 = vrot.slane %v1934, 4
        %v1936 = vadd.f32 %v1934, %v1935
        %v1937 = vrot.slane %v1936, 2
        %v1938 = vadd.f32 %v1936, %v1937
        %v1939 = vrot.slane %v1938, 1
        %v1940 = vadd.f32 %v1938, %v1939
        %v1941 = vadd.f32 %v1867, %v1871
        %v1942 = vadd.f32 %v1941, %v1877
        %v1943 = vadd.f32 %v1942, %v1881
        %v1944 = vrot.slane %v1943, 4
        %v1945 = vadd.f32 %v1943, %v1944
        %v1946 = vrot.slane %v1945, 2
        %v1947 = vadd.f32 %v1945, %v1946
        %v1948 = vrot.slane %v1947, 1
        %v1949 = vadd.f32 %v1947, %v1948
        %v1950 = vadd.f32 %v1869, %v1873
        %v1951 = vadd.f32 %v1950, %v1879
        %v1952 = vadd.f32 %v1951, %v1883
        %v1953 = vrot.slane %v1952, 4
        %v1954 = vadd.f32 %v1952, %v1953
        %v1955 = vrot.slane %v1954, 2
        %v1956 = vadd.f32 %v1954, %v1955
        %v1957 = vrot.slane %v1956, 1
        %v1958 = vadd.f32 %v1956, %v1957
        %v1959 = vadd.f32 %v1887, %v1891
        %v1960 = vadd.f32 %v1959, %v1897
        %v1961 = vadd.f32 %v1960, %v1901
        %v1962 = vrot.slane %v1961, 4
        %v1963 = vadd.f32 %v1961, %v1962
        %v1964 = vrot.slane %v1963, 2
        %v1965 = vadd.f32 %v1963, %v1964
        %v1966 = vrot.slane %v1965, 1
        %v1967 = vadd.f32 %v1965, %v1966
        %v1968 = vadd.f32 %v1889, %v1893
        %v1969 = vadd.f32 %v1968, %v1899
        %v1970 = vadd.f32 %v1969, %v1903
        %v1971 = vrot.slane %v1970, 4
        %v1972 = vadd.f32 %v1970, %v1971
        %v1973 = vrot.slane %v1972, 2
        %v1974 = vadd.f32 %v1972, %v1973
        %v1975 = vrot.slane %v1974, 1
        %v1976 = vadd.f32 %v1974, %v1975
        %v1977 = vmul.f32 %v1913, %v578
        %v1978 = vmul.f32 %v1922, %v578
        %v1979 = vmul.f32 %v1931, %v578
        %v1980 = vmul.f32 %v1940, %v578
        %v1981 = vmul.f32 %v1949, %v578
        %v1982 = vmul.f32 %v1958, %v578
        %v1983 = vmul.f32 %v1967, %v578
        %v1984 = vmul.f32 %v1976, %v578
        %v1985 = vsub.f32 %v1827, %v1977
        %v1986 = vsub.f32 %v1829, %v1978
        %v1987 = vsub.f32 %v1831, %v1977
        %v1988 = vsub.f32 %v1833, %v1978
        %v1989 = vsub.f32 %v1837, %v1977
        %v1990 = vsub.f32 %v1839, %v1978
        %v1991 = vsub.f32 %v1841, %v1977
        %v1992 = vsub.f32 %v1843, %v1978
        %v1993 = vsub.f32 %v1847, %v1979
        %v1994 = vsub.f32 %v1849, %v1980
        %v1995 = vsub.f32 %v1851, %v1979
        %v1996 = vsub.f32 %v1853, %v1980
        %v1997 = vsub.f32 %v1857, %v1979
        %v1998 = vsub.f32 %v1859, %v1980
        %v1999 = vsub.f32 %v1861, %v1979
        %v2000 = vsub.f32 %v1863, %v1980
        %v2001 = vsub.f32 %v1867, %v1981
        %v2002 = vsub.f32 %v1869, %v1982
        %v2003 = vsub.f32 %v1871, %v1981
        %v2004 = vsub.f32 %v1873, %v1982
        %v2005 = vsub.f32 %v1877, %v1981
        %v2006 = vsub.f32 %v1879, %v1982
        %v2007 = vsub.f32 %v1881, %v1981
        %v2008 = vsub.f32 %v1883, %v1982
        %v2009 = vsub.f32 %v1887, %v1983
        %v2010 = vsub.f32 %v1889, %v1984
        %v2011 = vsub.f32 %v1891, %v1983
        %v2012 = vsub.f32 %v1893, %v1984
        %v2013 = vsub.f32 %v1897, %v1983
        %v2014 = vsub.f32 %v1899, %v1984
        %v2015 = vsub.f32 %v1901, %v1983
        %v2016 = vsub.f32 %v1903, %v1984
        %v2017 = vmul.f32 %v1985, %v1985
        %v2018 = vmul.f32 %v1986, %v1986
        %v2019 = vmul.f32 %v1987, %v1987
        %v2020 = vmul.f32 %v1988, %v1988
        %v2021 = vmul.f32 %v1989, %v1989
        %v2022 = vmul.f32 %v1990, %v1990
        %v2023 = vmul.f32 %v1991, %v1991
        %v2024 = vmul.f32 %v1992, %v1992
        %v2025 = vmul.f32 %v1993, %v1993
        %v2026 = vmul.f32 %v1994, %v1994
        %v2027 = vmul.f32 %v1995, %v1995
        %v2028 = vmul.f32 %v1996, %v1996
        %v2029 = vmul.f32 %v1997, %v1997
        %v2030 = vmul.f32 %v1998, %v1998
        %v2031 = vmul.f32 %v1999, %v1999
        %v2032 = vmul.f32 %v2000, %v2000
        %v2033 = vmul.f32 %v2001, %v2001
        %v2034 = vmul.f32 %v2002, %v2002
        %v2035 = vmul.f32 %v2003, %v2003
        %v2036 = vmul.f32 %v2004, %v2004
        %v2037 = vmul.f32 %v2005, %v2005
        %v2038 = vmul.f32 %v2006, %v2006
        %v2039 = vmul.f32 %v2007, %v2007
        %v2040 = vmul.f32 %v2008, %v2008
        %v2041 = vmul.f32 %v2009, %v2009
        %v2042 = vmul.f32 %v2010, %v2010
        %v2043 = vmul.f32 %v2011, %v2011
        %v2044 = vmul.f32 %v2012, %v2012
        %v2045 = vmul.f32 %v2013, %v2013
        %v2046 = vmul.f32 %v2014, %v2014
        %v2047 = vmul.f32 %v2015, %v2015
        %v2048 = vmul.f32 %v2016, %v2016
        %v2049 = vadd.f32 %v2017, %v2019
        %v2050 = vadd.f32 %v2049, %v2021
        %v2051 = vadd.f32 %v2050, %v2023
        %v2052 = vrot.slane %v2051, 4
        %v2053 = vadd.f32 %v2051, %v2052
        %v2054 = vrot.slane %v2053, 2
        %v2055 = vadd.f32 %v2053, %v2054
        %v2056 = vrot.slane %v2055, 1
        %v2057 = vadd.f32 %v2055, %v2056
        %v2058 = vadd.f32 %v2018, %v2020
        %v2059 = vadd.f32 %v2058, %v2022
        %v2060 = vadd.f32 %v2059, %v2024
        %v2061 = vrot.slane %v2060, 4
        %v2062 = vadd.f32 %v2060, %v2061
        %v2063 = vrot.slane %v2062, 2
        %v2064 = vadd.f32 %v2062, %v2063
        %v2065 = vrot.slane %v2064, 1
        %v2066 = vadd.f32 %v2064, %v2065
        %v2067 = vadd.f32 %v2025, %v2027
        %v2068 = vadd.f32 %v2067, %v2029
        %v2069 = vadd.f32 %v2068, %v2031
        %v2070 = vrot.slane %v2069, 4
        %v2071 = vadd.f32 %v2069, %v2070
        %v2072 = vrot.slane %v2071, 2
        %v2073 = vadd.f32 %v2071, %v2072
        %v2074 = vrot.slane %v2073, 1
        %v2075 = vadd.f32 %v2073, %v2074
        %v2076 = vadd.f32 %v2026, %v2028
        %v2077 = vadd.f32 %v2076, %v2030
        %v2078 = vadd.f32 %v2077, %v2032
        %v2079 = vrot.slane %v2078, 4
        %v2080 = vadd.f32 %v2078, %v2079
        %v2081 = vrot.slane %v2080, 2
        %v2082 = vadd.f32 %v2080, %v2081
        %v2083 = vrot.slane %v2082, 1
        %v2084 = vadd.f32 %v2082, %v2083
        %v2085 = vadd.f32 %v2033, %v2035
        %v2086 = vadd.f32 %v2085, %v2037
        %v2087 = vadd.f32 %v2086, %v2039
        %v2088 = vrot.slane %v2087, 4
        %v2089 = vadd.f32 %v2087, %v2088
        %v2090 = vrot.slane %v2089, 2
        %v2091 = vadd.f32 %v2089, %v2090
        %v2092 = vrot.slane %v2091, 1
        %v2093 = vadd.f32 %v2091, %v2092
        %v2094 = vadd.f32 %v2034, %v2036
        %v2095 = vadd.f32 %v2094, %v2038
        %v2096 = vadd.f32 %v2095, %v2040
        %v2097 = vrot.slane %v2096, 4
        %v2098 = vadd.f32 %v2096, %v2097
        %v2099 = vrot.slane %v2098, 2
        %v2100 = vadd.f32 %v2098, %v2099
        %v2101 = vrot.slane %v2100, 1
        %v2102 = vadd.f32 %v2100, %v2101
        %v2103 = vadd.f32 %v2041, %v2043
        %v2104 = vadd.f32 %v2103, %v2045
        %v2105 = vadd.f32 %v2104, %v2047
        %v2106 = vrot.slane %v2105, 4
        %v2107 = vadd.f32 %v2105, %v2106
        %v2108 = vrot.slane %v2107, 2
        %v2109 = vadd.f32 %v2107, %v2108
        %v2110 = vrot.slane %v2109, 1
        %v2111 = vadd.f32 %v2109, %v2110
        %v2112 = vadd.f32 %v2042, %v2044
        %v2113 = vadd.f32 %v2112, %v2046
        %v2114 = vadd.f32 %v2113, %v2048
        %v2115 = vrot.slane %v2114, 4
        %v2116 = vadd.f32 %v2114, %v2115
        %v2117 = vrot.slane %v2116, 2
        %v2118 = vadd.f32 %v2116, %v2117
        %v2119 = vrot.slane %v2118, 1
        %v2120 = vadd.f32 %v2118, %v2119
        %v2121 = vmul.f32 %v2057, %v578
        %v2122 = vmul.f32 %v2066, %v578
        %v2123 = vmul.f32 %v2075, %v578
        %v2124 = vmul.f32 %v2084, %v578
        %v2125 = vmul.f32 %v2093, %v578
        %v2126 = vmul.f32 %v2102, %v578
        %v2127 = vmul.f32 %v2111, %v578
        %v2128 = vmul.f32 %v2120, %v578
        %v2129 = vld [vmem:[%s1] sm:$0x30]
        %v2130 = vld [vmem:[%s1 + $0x8] sm:$0x30]
        %v2131 = vadd.f32 %v2121, 1e-05
        %v2132 = vadd.f32 %v2122, 1e-05
        %v2133 = vadd.f32 %v2123, 1e-05
        %v2134 = vadd.f32 %v2124, 1e-05
        %v2135 = vadd.f32 %v2125, 1e-05
        %v2136 = vadd.f32 %v2126, 1e-05
        %v2137 = vadd.f32 %v2127, 1e-05
        %v2138 = vadd.f32 %v2128, 1e-05
        %v2139 = vrsqrt.pop %v2131
        %v2140 = vrsqrt.pop %v2132
        %v2141 = vrsqrt.pop %v2133
        %v2142 = vrsqrt.pop %v2134
        %v2143 = vrsqrt.pop %v2135
        %v2144 = vrsqrt.pop %v2136
        %v2145 = vrsqrt.pop %v2137
        %v2146 = vrsqrt.pop %v2138
        %v2147 = vmul.f32 %v2139, %v2129
        %v2148 = vmul.f32 %v2140, %v2130
        %v2149 = vmul.f32 %v2141, %v2129
        %v2150 = vmul.f32 %v2142, %v2130
        %v2151 = vmul.f32 %v2143, %v2129
        %v2152 = vmul.f32 %v2144, %v2130
        %v2153 = vmul.f32 %v2145, %v2129
        %v2154 = vmul.f32 %v2146, %v2130
        %v2155 = vlaneseq
        %v2156 = vshrl.u32 %v2155, 7
        %v2157 = vsub.s32 4, %v2156
        %v2158 = vrot.slane %v2147, %v2157
        %v2159 = vlaneseq
        %v2160 = vshrl.u32 %v2159, 7
        %v2161 = vsub.s32 4, %v2160
        %v2162 = vrot.slane %v2148, %v2161
        %v2163 = vlaneseq
        %v2164 = vshrl.u32 %v2163, 7
        %v2165 = vsub.s32 4, %v2164
        %v2166 = vrot.slane %v2149, %v2165
        %v2167 = vlaneseq
        %v2168 = vshrl.u32 %v2167, 7
        %v2169 = vsub.s32 4, %v2168
        %v2170 = vrot.slane %v2150, %v2169
        %v2171 = vlaneseq
        %v2172 = vshrl.u32 %v2171, 7
        %v2173 = vsub.s32 4, %v2172
        %v2174 = vrot.slane %v2151, %v2173
        %v2175 = vlaneseq
        %v2176 = vshrl.u32 %v2175, 7
        %v2177 = vsub.s32 4, %v2176
        %v2178 = vrot.slane %v2152, %v2177
        %v2179 = vlaneseq
        %v2180 = vshrl.u32 %v2179, 7
        %v2181 = vsub.s32 4, %v2180
        %v2182 = vrot.slane %v2153, %v2181
        %v2183 = vlaneseq
        %v2184 = vshrl.u32 %v2183, 7
        %v2185 = vsub.s32 4, %v2184
        %v2186 = vrot.slane %v2154, %v2185
        %v2187 = vmul.f32 %v1985, %v2158
        %v2188 = vmul.f32 %v1986, %v2162
        %v2189 = vmul.f32 %v1987, %v2158
        %v2190 = vmul.f32 %v1988, %v2162
        %v2191 = vmul.f32 %v1989, %v2158
        %v2192 = vmul.f32 %v1990, %v2162
        %v2193 = vmul.f32 %v1991, %v2158
        %v2194 = vmul.f32 %v1992, %v2162
        %v2195 = vmul.f32 %v1993, %v2166
        %v2196 = vmul.f32 %v1994, %v2170
        %v2197 = vmul.f32 %v1995, %v2166
        %v2198 = vmul.f32 %v1996, %v2170
        %v2199 = vmul.f32 %v1997, %v2166
        %v2200 = vmul.f32 %v1998, %v2170
        %v2201 = vmul.f32 %v1999, %v2166
        %v2202 = vmul.f32 %v2000, %v2170
        %v2203 = vmul.f32 %v2001, %v2174
        %v2204 = vmul.f32 %v2002, %v2178
        %v2205 = vmul.f32 %v2003, %v2174
        %v2206 = vmul.f32 %v2004, %v2178
        %v2207 = vmul.f32 %v2005, %v2174
        %v2208 = vmul.f32 %v2006, %v2178
        %v2209 = vmul.f32 %v2007, %v2174
        %v2210 = vmul.f32 %v2008, %v2178
        %v2211 = vmul.f32 %v2009, %v2182
        %v2212 = vmul.f32 %v2010, %v2186
        %v2213 = vmul.f32 %v2011, %v2182
        %v2214 = vmul.f32 %v2012, %v2186
        %v2215 = vmul.f32 %v2013, %v2182
        %v2216 = vmul.f32 %v2014, %v2186
        %v2217 = vmul.f32 %v2015, %v2182
        %v2218 = vmul.f32 %v2016, %v2186
        %v2219 = vlaneseq
        %v2220 = vshrl.u32 %v2219, 7
        %v2221 = vsub.s32 5, %v2220
        %v2222 = vrot.slane %v2129, %v2221
        %v2223 = vlaneseq
        %v2224 = vshrl.u32 %v2223, 7
        %v2225 = vsub.s32 5, %v2224
        %v2226 = vrot.slane %v2130, %v2225
        %v2227 = vadd.f32 %v2187, %v2222
        %v2228 = vadd.f32 %v2188, %v2226
        %v2229 = vadd.f32 %v2189, %v2222
        %v2230 = vadd.f32 %v2190, %v2226
        %v2231 = vadd.f32 %v2191, %v2222
        %v2232 = vadd.f32 %v2192, %v2226
        %v2233 = vadd.f32 %v2193, %v2222
        %v2234 = vadd.f32 %v2194, %v2226
        %v2235 = vadd.f32 %v2195, %v2222
        %v2236 = vadd.f32 %v2196, %v2226
        %v2237 = vadd.f32 %v2197, %v2222
        %v2238 = vadd.f32 %v2198, %v2226
        %v2239 = vadd.f32 %v2199, %v2222
        %v2240 = vadd.f32 %v2200, %v2226
        %v2241 = vadd.f32 %v2201, %v2222
        %v2242 = vadd.f32 %v2202, %v2226
        %v2243 = vadd.f32 %v2203, %v2222
        %v2244 = vadd.f32 %v2204, %v2226
        %v2245 = vadd.f32 %v2205, %v2222
        %v2246 = vadd.f32 %v2206, %v2226
        %v2247 = vadd.f32 %v2207, %v2222
        %v2248 = vadd.f32 %v2208, %v2226
        %v2249 = vadd.f32 %v2209, %v2222
        %v2250 = vadd.f32 %v2210, %v2226
        %v2251 = vadd.f32 %v2211, %v2222
        %v2252 = vadd.f32 %v2212, %v2226
        %v2253 = vadd.f32 %v2213, %v2222
        %v2254 = vadd.f32 %v2214, %v2226
        %v2255 = vadd.f32 %v2215, %v2222
        %v2256 = vadd.f32 %v2216, %v2226
        %v2257 = vadd.f32 %v2217, %v2222
        %v2258 = vadd.f32 %v2218, %v2226
        %v2259 = vxor.u32 %v2228, 2147483648
        %v2260 = vxor.u32 %v2230, 2147483648
        %v2261 = vxor.u32 %v2232, 2147483648
        %v2262 = vxor.u32 %v2234, 2147483648
        %v2263 = vxor.u32 %v2236, 2147483648
        %v2264 = vxor.u32 %v2238, 2147483648
        %v2265 = vxor.u32 %v2240, 2147483648
        %v2266 = vxor.u32 %v2242, 2147483648
        %v2267 = vxor.u32 %v2244, 2147483648
        %v2268 = vxor.u32 %v2246, 2147483648
        %v2269 = vxor.u32 %v2248, 2147483648
        %v2270 = vxor.u32 %v2250, 2147483648
        %v2271 = vxor.u32 %v2252, 2147483648
        %v2272 = vxor.u32 %v2254, 2147483648
        %v2273 = vxor.u32 %v2256, 2147483648
        %v2274 = vxor.u32 %v2258, 2147483648
        %v2275 = vmul.f32 %v2259, 1.442695
        %v2276 = vpow.pop %v2275
        %v2277 = vmul.f32 %v2260, 1.442695
        %v2278 = vpow.pop %v2277
        %v2279 = vmul.f32 %v2261, 1.442695
        %v2280 = vpow.pop %v2279
        %v2281 = vmul.f32 %v2262, 1.442695
        %v2282 = vpow.pop %v2281
        %v2283 = vmul.f32 %v2263, 1.442695
        %v2284 = vpow.pop %v2283
        %v2285 = vmul.f32 %v2264, 1.442695
        %v2286 = vpow.pop %v2285
        %v2287 = vmul.f32 %v2265, 1.442695
        %v2288 = vpow.pop %v2287
        %v2289 = vmul.f32 %v2266, 1.442695
        %v2290 = vpow.pop %v2289
        %v2291 = vmul.f32 %v2267, 1.442695
        %v2292 = vpow.pop %v2291
        %v2293 = vmul.f32 %v2268, 1.442695
        %v2294 = vpow.pop %v2293
        %v2295 = vmul.f32 %v2269, 1.442695
        %v2296 = vpow.pop %v2295
        %v2297 = vmul.f32 %v2270, 1.442695
        %v2298 = vpow.pop %v2297
        %v2299 = vmul.f32 %v2271, 1.442695
        %v2300 = vpow.pop %v2299
        %v2301 = vmul.f32 %v2272, 1.442695
        %v2302 = vpow.pop %v2301
        %v2303 = vmul.f32 %v2273, 1.442695
        %v2304 = vpow.pop %v2303
        %v2305 = vmul.f32 %v2274, 1.442695
        %v2306 = vpow.pop %v2305
        %v2307 = vadd.f32 %v2276, 1.0
        %v2308 = vadd.f32 %v2278, 1.0
        %v2309 = vadd.f32 %v2280, 1.0
        %v2310 = vadd.f32 %v2282, 1.0
        %v2311 = vadd.f32 %v2284, 1.0
        %v2312 = vadd.f32 %v2286, 1.0
        %v2313 = vadd.f32 %v2288, 1.0
        %v2314 = vadd.f32 %v2290, 1.0
        %v2315 = vadd.f32 %v2292, 1.0
        %v2316 = vadd.f32 %v2294, 1.0
        %v2317 = vadd.f32 %v2296, 1.0
        %v2318 = vadd.f32 %v2298, 1.0
        %v2319 = vadd.f32 %v2300, 1.0
        %v2320 = vadd.f32 %v2302, 1.0
        %v2321 = vadd.f32 %v2304, 1.0
        %v2322 = vadd.f32 %v2306, 1.0
        %v2323 = vrcp.pop %v2307
        %v2324 = vmul.f32 1.0, %v2323
        %v2325 = vrcp.pop %v2308
        %v2326 = vmul.f32 1.0, %v2325
        %v2327 = vrcp.pop %v2309
        %v2328 = vmul.f32 1.0, %v2327
        %v2329 = vrcp.pop %v2310
        %v2330 = vmul.f32 1.0, %v2329
        %v2331 = vrcp.pop %v2311
        %v2332 = vmul.f32 1.0, %v2331
        %v2333 = vrcp.pop %v2312
        %v2334 = vmul.f32 1.0, %v2333
        %v2335 = vrcp.pop %v2313
        %v2336 = vmul.f32 1.0, %v2335
        %v2337 = vrcp.pop %v2314
        %v2338 = vmul.f32 1.0, %v2337
        %v2339 = vrcp.pop %v2315
        %v2340 = vmul.f32 1.0, %v2339
        %v2341 = vrcp.pop %v2316
        %v2342 = vmul.f32 1.0, %v2341
        %v2343 = vrcp.pop %v2317
        %v2344 = vmul.f32 1.0, %v2343
        %v2345 = vrcp.pop %v2318
        %v2346 = vmul.f32 1.0, %v2345
        %v2347 = vrcp.pop %v2319
        %v2348 = vmul.f32 1.0, %v2347
        %v2349 = vrcp.pop %v2320
        %v2350 = vmul.f32 1.0, %v2349
        %v2351 = vrcp.pop %v2321
        %v2352 = vmul.f32 1.0, %v2351
        %v2353 = vrcp.pop %v2322
        %v2354 = vmul.f32 1.0, %v2353
        %v2355 = vmul.f32 %v2227, %v2324
        %v2356 = vmul.f32 %v2229, %v2326
        %v2357 = vmul.f32 %v2231, %v2328
        %v2358 = vmul.f32 %v2233, %v2330
        %v2359 = vmul.f32 %v2235, %v2332
        %v2360 = vmul.f32 %v2237, %v2334
        %v2361 = vmul.f32 %v2239, %v2336
        %v2362 = vmul.f32 %v2241, %v2338
        %v2363 = vmul.f32 %v2243, %v2340
        %v2364 = vmul.f32 %v2245, %v2342
        %v2365 = vmul.f32 %v2247, %v2344
        %v2366 = vmul.f32 %v2249, %v2346
        %v2367 = vmul.f32 %v2251, %v2348
        %v2368 = vmul.f32 %v2253, %v2350
        %v2369 = vmul.f32 %v2255, %v2352
        %v2370 = vmul.f32 %v2257, %v2354
        %v2371 = vadd.f32 %v1672, %v2355
        %v2372 = vadd.f32 %v1673, %v2356
        %v2373 = vadd.f32 %v1674, %v2357
        %v2374 = vadd.f32 %v1675, %v2358
        %v2375 = vadd.f32 %v1676, %v2359
        %v2376 = vadd.f32 %v1677, %v2360
        %v2377 = vadd.f32 %v1678, %v2361
        %v2378 = vadd.f32 %v1679, %v2362
        %v2379 = vadd.f32 %v1680, %v2363
        %v2380 = vadd.f32 %v1681, %v2364
        %v2381 = vadd.f32 %v1682, %v2365
        %v2382 = vadd.f32 %v1683, %v2366
        %v2383 = vadd.f32 %v1684, %v2367
        %v2384 = vadd.f32 %v1685, %v2368
        %v2385 = vadd.f32 %v1686, %v2369
        %v2386 = vadd.f32 %v1687, %v2370
        %v2387 = vmul.f32 %v2371, 0.70710677
        %v2388 = vmul.f32 %v2372, 0.70710677
        %v2389 = vmul.f32 %v2373, 0.70710677
        %v2390 = vmul.f32 %v2374, 0.70710677
        %v2391 = vmul.f32 %v2375, 0.70710677
        %v2392 = vmul.f32 %v2376, 0.70710677
        %v2393 = vmul.f32 %v2377, 0.70710677
        %v2394 = vmul.f32 %v2378, 0.70710677
        %v2395 = vmul.f32 %v2379, 0.70710677
        %v2396 = vmul.f32 %v2380, 0.70710677
        %v2397 = vmul.f32 %v2381, 0.70710677
        %v2398 = vmul.f32 %v2382, 0.70710677
        %v2399 = vmul.f32 %v2383, 0.70710677
        %v2400 = vmul.f32 %v2384, 0.70710677
        %v2401 = vmul.f32 %v2385, 0.70710677
        %v2402 = vmul.f32 %v2386, 0.70710677
        %v2403 = vld [vmem:[#allocation6] sm:$0xff]
        %v2404 = vld [vmem:[#allocation6 + $0x8] sm:$0xff]
        %v2405 = vld [vmem:[#allocation6 + $0x10] sm:$0xff]
        %v2406 = vld [vmem:[#allocation6 + $0x18] sm:$0xff]
        %v2407 = vld [vmem:[#allocation6 + $0x20] sm:$0xff]
        %v2408 = vld [vmem:[#allocation6 + $0x28] sm:$0xff]
        %v2409 = vld [vmem:[#allocation6 + $0x30] sm:$0xff]
        %v2410 = vld [vmem:[#allocation6 + $0x38] sm:$0xff]
        %v2411 = vld [vmem:[#allocation6 + $0x40] sm:$0xff]
        %v2412 = vld [vmem:[#allocation6 + $0x48] sm:$0xff]
        %v2413 = vld [vmem:[#allocation6 + $0x50] sm:$0xff]
        %v2414 = vld [vmem:[#allocation6 + $0x58] sm:$0xff]
        %v2415 = vld [vmem:[#allocation6 + $0x60] sm:$0xff]
        %v2416 = vld [vmem:[#allocation6 + $0x68] sm:$0xff]
        %v2417 = vld [vmem:[#allocation6 + $0x70] sm:$0xff]
        %v2418 = vld [vmem:[#allocation6 + $0x78] sm:$0xff]
        %v2419 = vpack.c.bf16 %v2388, %v2387
        %v2420 = vpack.c.bf16 %v2390, %v2389
        %v2421 = vpack.c.bf16 %v2392, %v2391
        %v2422 = vpack.c.bf16 %v2394, %v2393
        %v2423 = vpack.c.bf16 %v2396, %v2395
        %v2424 = vpack.c.bf16 %v2398, %v2397
        %v2425 = vpack.c.bf16 %v2400, %v2399
        %v2426 = vpack.c.bf16 %v2402, %v2401
        %v2443 = vunpack.c.l.b16 %v2403
        %v2444 = vunpack.c.h.b16 %v2403
        %v2445 = vunpack.c.l.b16 %v2404
        %v2446 = vunpack.c.h.b16 %v2404
        %v2447 = vunpack.c.l.b16 %v2405
        %v2448 = vunpack.c.h.b16 %v2405
        %v2449 = vunpack.c.l.b16 %v2406
        %v2450 = vunpack.c.h.b16 %v2406
        %v2451 = vunpack.c.l.b16 %v2407
        %v2452 = vunpack.c.h.b16 %v2407
        %v2453 = vunpack.c.l.b16 %v2408
        %v2454 = vunpack.c.h.b16 %v2408
        %v2455 = vunpack.c.l.b16 %v2409
        %v2456 = vunpack.c.h.b16 %v2409
        %v2457 = vunpack.c.l.b16 %v2410
        %v2458 = vunpack.c.h.b16 %v2410
        %v2459 = vunpack.c.l.b16 %v2411
        %v2460 = vunpack.c.h.b16 %v2411
        %v2461 = vunpack.c.l.b16 %v2412
        %v2462 = vunpack.c.h.b16 %v2412
        %v2463 = vunpack.c.l.b16 %v2413
        %v2464 = vunpack.c.h.b16 %v2413
        %v2465 = vunpack.c.l.b16 %v2414
        %v2466 = vunpack.c.h.b16 %v2414
        %v2467 = vunpack.c.l.b16 %v2415
        %v2468 = vunpack.c.h.b16 %v2415
        %v2469 = vunpack.c.l.b16 %v2416
        %v2470 = vunpack.c.h.b16 %v2416
        %v2471 = vunpack.c.l.b16 %v2417
        %v2472 = vunpack.c.h.b16 %v2417
        %v2473 = vunpack.c.l.b16 %v2418
        %v2474 = vunpack.c.h.b16 %v2418
        %v2475 = vpack.c.b16 %v2445, %v2443
        %v2476 = vpack.c.b16 %v2446, %v2444
        %v2477 = vpack.c.b16 %v2449, %v2447
        %v2478 = vpack.c.b16 %v2450, %v2448
        %v2479 = vpack.c.b16 %v2453, %v2451
        %v2480 = vpack.c.b16 %v2454, %v2452
        %v2481 = vpack.c.b16 %v2457, %v2455
        %v2482 = vpack.c.b16 %v2458, %v2456
        %v2483 = vpack.c.b16 %v2461, %v2459
        %v2484 = vpack.c.b16 %v2462, %v2460
        %v2485 = vpack.c.b16 %v2465, %v2463
        %v2486 = vpack.c.b16 %v2466, %v2464
        %v2487 = vpack.c.b16 %v2469, %v2467
        %v2488 = vpack.c.b16 %v2470, %v2468
        %v2489 = vpack.c.b16 %v2473, %v2471
        %v2490 = vpack.c.b16 %v2474, %v2472
        %2507 = vmatprep.subr.bf16.mxu0 %v2476
        %2508 = vmatpush1.bf16.msra.mxu0 %v2475
        %2509 = vmatprep.subr.bf16.mxu0 %v2478
        %2510 = vmatpush1.bf16.msra.mxu0 %v2477
        %2511 = vmatprep.subr.bf16.mxu0 %v2480
        %2512 = vmatpush1.bf16.msra.mxu0 %v2479
        %2513 = vmatprep.subr.bf16.mxu0 %v2482
        %2514 = vmatpush1.bf16.msra.mxu0 %v2481
        %2515 = vmatprep.subr.bf16.mxu0 %v2484
        %2516 = vmatpush1.bf16.msra.mxu0 %v2483
        %2517 = vmatprep.subr.bf16.mxu0 %v2486
        %2518 = vmatpush1.bf16.msra.mxu0 %v2485
        %2519 = vmatprep.subr.bf16.mxu0 %v2488
        %2520 = vmatpush1.bf16.msra.mxu0 %v2487
        %2521 = vmatprep.subr.bf16.mxu0 %v2490
        %2522 = vmatpush1.bf16.msra.mxu0 %v2489
        %2523 = vmatprep.subr.bf16.mxu0 0
        %2524 = vmatpush1.bf16.msra.mxu0 0
        %2525 = vmatprep.subr.bf16.mxu0 0
        %2526 = vmatpush1.bf16.msra.mxu0 0
        %2527 = vmatprep.subr.bf16.mxu0 0
        %2528 = vmatpush1.bf16.msra.mxu0 0
        %2529 = vmatprep.subr.bf16.mxu0 0
        %2530 = vmatpush1.bf16.msra.mxu0 0
        %2531 = vmatprep.subr.bf16.mxu0 0
        %2532 = vmatpush1.bf16.msra.mxu0 0
        %2533 = vmatprep.subr.bf16.mxu0 0
        %2534 = vmatpush1.bf16.msra.mxu0 0
        %2535 = vmatprep.subr.bf16.mxu0 0
        %2536 = vmatpush1.bf16.msra.mxu0 0
        %2537 = vmatprep.subr.bf16.mxu0 0
        %2538 = vmatpush1.bf16.msra.mxu0 0
        %2539 = vmatprep.mubr.bf16.mxu0 0
        %2540 = vmatmul.mubr.bf16.gmra.mrb[0].mxu0 %v2419
        %v2541 = vpop.f32.mrb[0].mxu0
        %v2542 = vadd.f32 0.0, %v2541
        %v2543 = vpop.f32.mrb[0].mxu0
        %v2544 = vadd.f32 0.0, %v2543
        %v2545 = vpop.f32.mrb[0].mxu0
        %v2546 = vadd.f32 0.0, %v2545
        %v2547 = vpop.f32.mrb[0].mxu0
        %v2548 = vadd.f32 0.0, %v2547
        %2549 = vmatprep.mubr.bf16.mxu0 0
        %2550 = vmatmul.mubr.bf16.gmra.mrb[0].mxu0 %v2420
        %v2551 = vpop.f32.mrb[0].mxu0
        %v2552 = vadd.f32 0.0, %v2551
        %v2553 = vpop.f32.mrb[0].mxu0
        %v2554 = vadd.f32 0.0, %v2553
        %v2555 = vpop.f32.mrb[0].mxu0
        %v2556 = vadd.f32 0.0, %v2555
        %v2557 = vpop.f32.mrb[0].mxu0
        %v2558 = vadd.f32 0.0, %v2557
        %2559 = vmatprep.mubr.bf16.mxu0 0
        %2560 = vmatmul.mubr.bf16.gmra.mrb[0].mxu0 %v2421
        %v2561 = vpop.f32.mrb[0].mxu0
        %v2562 = vadd.f32 0.0, %v2561
        %v2563 = vpop.f32.mrb[0].mxu0
        %v2564 = vadd.f32 0.0, %v2563
        %v2565 = vpop.f32.mrb[0].mxu0
        %v2566 = vadd.f32 0.0, %v2565
        %v2567 = vpop.f32.mrb[0].mxu0
        %v2568 = vadd.f32 0.0, %v2567
        %2569 = vmatprep.mubr.bf16.mxu0 0
        %2570 = vmatmul.mubr.bf16.gmra.mrb[0].mxu0 %v2422
        %v2571 = vpop.f32.mrb[0].mxu0
        %v2572 = vadd.f32 0.0, %v2571
        %v2573 = vpop.f32.mrb[0].mxu0
        %v2574 = vadd.f32 0.0, %v2573
        %v2575 = vpop.f32.mrb[0].mxu0
        %v2576 = vadd.f32 0.0, %v2575
        %v2577 = vpop.f32.mrb[0].mxu0
        %v2578 = vadd.f32 0.0, %v2577
        %2579 = vmatprep.mubr.bf16.mxu0 0
        %2580 = vmatmul.mubr.bf16.gmra.mrb[0].mxu0 %v2423
        %v2581 = vpop.f32.mrb[0].mxu0
        %v2582 = vadd.f32 0.0, %v2581
        %v2583 = vpop.f32.mrb[0].mxu0
        %v2584 = vadd.f32 0.0, %v2583
        %v2585 = vpop.f32.mrb[0].mxu0
        %v2586 = vadd.f32 0.0, %v2585
        %v2587 = vpop.f32.mrb[0].mxu0
        %v2588 = vadd.f32 0.0, %v2587
        %2589 = vmatprep.mubr.bf16.mxu0 0
        %2590 = vmatmul.mubr.bf16.gmra.mrb[0].mxu0 %v2424
        %v2591 = vpop.f32.mrb[0].mxu0
        %v2592 = vadd.f32 0.0, %v2591
        %v2593 = vpop.f32.mrb[0].mxu0
        %v2594 = vadd.f32 0.0, %v2593
        %v2595 = vpop.f32.mrb[0].mxu0
        %v2596 = vadd.f32 0.0, %v2595
        %v2597 = vpop.f32.mrb[0].mxu0
        %v2598 = vadd.f32 0.0, %v2597
        %2599 = vmatprep.mubr.bf16.mxu0 0
        %2600 = vmatmul.mubr.bf16.gmra.mrb[0].mxu0 %v2425
        %v2601 = vpop.f32.mrb[0].mxu0
        %v2602 = vadd.f32 0.0, %v2601
        %v2603 = vpop.f32.mrb[0].mxu0
        %v2604 = vadd.f32 0.0, %v2603
        %v2605 = vpop.f32.mrb[0].mxu0
        %v2606 = vadd.f32 0.0, %v2605
        %v2607 = vpop.f32.mrb[0].mxu0
        %v2608 = vadd.f32 0.0, %v2607
        %2609 = vmatprep.mubr.bf16.mxu0 0
        %2610 = vmatmul.mubr.bf16.gmra.mrb[0].mxu0 %v2426
        %v2611 = vpop.f32.mrb[0].mxu0
        %v2612 = vadd.f32 0.0, %v2611
        %v2613 = vpop.f32.mrb[0].mxu0
        %v2614 = vadd.f32 0.0, %v2613
        %v2615 = vpop.f32.mrb[0].mxu0
        %v2616 = vadd.f32 0.0, %v2615
        %v2617 = vpop.f32.mrb[0].mxu0
        %v2618 = vadd.f32 0.0, %v2617
        %2619 = vdwg.mxu0
        %v2620 = vadd.f32 %v2542, %v2546
        %v2621 = vadd.f32 %v2620, %v2552
        %v2622 = vadd.f32 %v2621, %v2556
        %v2623 = vrot.slane %v2622, 4
        %v2624 = vadd.f32 %v2622, %v2623
        %v2625 = vrot.slane %v2624, 2
        %v2626 = vadd.f32 %v2624, %v2625
        %v2627 = vrot.slane %v2626, 1
        %v2628 = vadd.f32 %v2626, %v2627
        %v2629 = vadd.f32 %v2544, %v2548
        %v2630 = vadd.f32 %v2629, %v2554
        %v2631 = vadd.f32 %v2630, %v2558
        %v2632 = vrot.slane %v2631, 4
        %v2633 = vadd.f32 %v2631, %v2632
        %v2634 = vrot.slane %v2633, 2
        %v2635 = vadd.f32 %v2633, %v2634
        %v2636 = vrot.slane %v2635, 1
        %v2637 = vadd.f32 %v2635, %v2636
        %v2638 = vadd.f32 %v2562, %v2566
        %v2639 = vadd.f32 %v2638, %v2572
        %v2640 = vadd.f32 %v2639, %v2576
        %v2641 = vrot.slane %v2640, 4
        %v2642 = vadd.f32 %v2640, %v2641
        %v2643 = vrot.slane %v2642, 2
        %v2644 = vadd.f32 %v2642, %v2643
        %v2645 = vrot.slane %v2644, 1
        %v2646 = vadd.f32 %v2644, %v2645
        %v2647 = vadd.f32 %v2564, %v2568
        %v2648 = vadd.f32 %v2647, %v2574
        %v2649 = vadd.f32 %v2648, %v2578
        %v2650 = vrot.slane %v2649, 4
        %v2651 = vadd.f32 %v2649, %v2650
        %v2652 = vrot.slane %v2651, 2
        %v2653 = vadd.f32 %v2651, %v2652
        %v2654 = vrot.slane %v2653, 1
        %v2655 = vadd.f32 %v2653, %v2654
        %v2656 = vadd.f32 %v2582, %v2586
        %v2657 = vadd.f32 %v2656, %v2592
        %v2658 = vadd.f32 %v2657, %v2596
        %v2659 = vrot.slane %v2658, 4
        %v2660 = vadd.f32 %v2658, %v2659
        %v2661 = vrot.slane %v2660, 2
        %v2662 = vadd.f32 %v2660, %v2661
        %v2663 = vrot.slane %v2662, 1
        %v2664 = vadd.f32 %v2662, %v2663
        %v2665 = vadd.f32 %v2584, %v2588
        %v2666 = vadd.f32 %v2665, %v2594
        %v2667 = vadd.f32 %v2666, %v2598
        %v2668 = vrot.slane %v2667, 4
        %v2669 = vadd.f32 %v2667, %v2668
        %v2670 = vrot.slane %v2669, 2
        %v2671 = vadd.f32 %v2669, %v2670
        %v2672 = vrot.slane %v2671, 1
        %v2673 = vadd.f32 %v2671, %v2672
        %v2674 = vadd.f32 %v2602, %v2606
        %v2675 = vadd.f32 %v2674, %v2612
        %v2676 = vadd.f32 %v2675, %v2616
        %v2677 = vrot.slane %v2676, 4
        %v2678 = vadd.f32 %v2676, %v2677
        %v2679 = vrot.slane %v2678, 2
        %v2680 = vadd.f32 %v2678, %v2679
        %v2681 = vrot.slane %v2680, 1
        %v2682 = vadd.f32 %v2680, %v2681
        %v2683 = vadd.f32 %v2604, %v2608
        %v2684 = vadd.f32 %v2683, %v2614
        %v2685 = vadd.f32 %v2684, %v2618
        %v2686 = vrot.slane %v2685, 4
        %v2687 = vadd.f32 %v2685, %v2686
        %v2688 = vrot.slane %v2687, 2
        %v2689 = vadd.f32 %v2687, %v2688
        %v2690 = vrot.slane %v2689, 1
        %v2691 = vadd.f32 %v2689, %v2690
        %v2692 = vmul.f32 %v2628, %v578
        %v2693 = vmul.f32 %v2637, %v578
        %v2694 = vmul.f32 %v2646, %v578
        %v2695 = vmul.f32 %v2655, %v578
        %v2696 = vmul.f32 %v2664, %v578
        %v2697 = vmul.f32 %v2673, %v578
        %v2698 = vmul.f32 %v2682, %v578
        %v2699 = vmul.f32 %v2691, %v578
        %v2700 = vsub.f32 %v2542, %v2692
        %v2701 = vsub.f32 %v2544, %v2693
        %v2702 = vsub.f32 %v2546, %v2692
        %v2703 = vsub.f32 %v2548, %v2693
        %v2704 = vsub.f32 %v2552, %v2692
        %v2705 = vsub.f32 %v2554, %v2693
        %v2706 = vsub.f32 %v2556, %v2692
        %v2707 = vsub.f32 %v2558, %v2693
        %v2708 = vsub.f32 %v2562, %v2694
        %v2709 = vsub.f32 %v2564, %v2695
        %v2710 = vsub.f32 %v2566, %v2694
        %v2711 = vsub.f32 %v2568, %v2695
        %v2712 = vsub.f32 %v2572, %v2694
        %v2713 = vsub.f32 %v2574, %v2695
        %v2714 = vsub.f32 %v2576, %v2694
        %v2715 = vsub.f32 %v2578, %v2695
        %v2716 = vsub.f32 %v2582, %v2696
        %v2717 = vsub.f32 %v2584, %v2697
        %v2718 = vsub.f32 %v2586, %v2696
        %v2719 = vsub.f32 %v2588, %v2697
        %v2720 = vsub.f32 %v2592, %v2696
        %v2721 = vsub.f32 %v2594, %v2697
        %v2722 = vsub.f32 %v2596, %v2696
        %v2723 = vsub.f32 %v2598, %v2697
        %v2724 = vsub.f32 %v2602, %v2698
        %v2725 = vsub.f32 %v2604, %v2699
        %v2726 = vsub.f32 %v2606, %v2698
        %v2727 = vsub.f32 %v2608, %v2699
        %v2728 = vsub.f32 %v2612, %v2698
        %v2729 = vsub.f32 %v2614, %v2699
        %v2730 = vsub.f32 %v2616, %v2698
        %v2731 = vsub.f32 %v2618, %v2699
        %v2732 = vmul.f32 %v2700, %v2700
        %v2733 = vmul.f32 %v2701, %v2701
        %v2734 = vmul.f32 %v2702, %v2702
        %v2735 = vmul.f32 %v2703, %v2703
        %v2736 = vmul.f32 %v2704, %v2704
        %v2737 = vmul.f32 %v2705, %v2705
        %v2738 = vmul.f32 %v2706, %v2706
        %v2739 = vmul.f32 %v2707, %v2707
        %v2740 = vmul.f32 %v2708, %v2708
        %v2741 = vmul.f32 %v2709, %v2709
        %v2742 = vmul.f32 %v2710, %v2710
        %v2743 = vmul.f32 %v2711, %v2711
        %v2744 = vmul.f32 %v2712, %v2712
        %v2745 = vmul.f32 %v2713, %v2713
        %v2746 = vmul.f32 %v2714, %v2714
        %v2747 = vmul.f32 %v2715, %v2715
        %v2748 = vmul.f32 %v2716, %v2716
        %v2749 = vmul.f32 %v2717, %v2717
        %v2750 = vmul.f32 %v2718, %v2718
        %v2751 = vmul.f32 %v2719, %v2719
        %v2752 = vmul.f32 %v2720, %v2720
        %v2753 = vmul.f32 %v2721, %v2721
        %v2754 = vmul.f32 %v2722, %v2722
        %v2755 = vmul.f32 %v2723, %v2723
        %v2756 = vmul.f32 %v2724, %v2724
        %v2757 = vmul.f32 %v2725, %v2725
        %v2758 = vmul.f32 %v2726, %v2726
        %v2759 = vmul.f32 %v2727, %v2727
        %v2760 = vmul.f32 %v2728, %v2728
        %v2761 = vmul.f32 %v2729, %v2729
        %v2762 = vmul.f32 %v2730, %v2730
        %v2763 = vmul.f32 %v2731, %v2731
        %v2764 = vadd.f32 %v2732, %v2734
        %v2765 = vadd.f32 %v2764, %v2736
        %v2766 = vadd.f32 %v2765, %v2738
        %v2767 = vrot.slane %v2766, 4
        %v2768 = vadd.f32 %v2766, %v2767
        %v2769 = vrot.slane %v2768, 2
        %v2770 = vadd.f32 %v2768, %v2769
        %v2771 = vrot.slane %v2770, 1
        %v2772 = vadd.f32 %v2770, %v2771
        %v2773 = vadd.f32 %v2733, %v2735
        %v2774 = vadd.f32 %v2773, %v2737
        %v2775 = vadd.f32 %v2774, %v2739
        %v2776 = vrot.slane %v2775, 4
        %v2777 = vadd.f32 %v2775, %v2776
        %v2778 = vrot.slane %v2777, 2
        %v2779 = vadd.f32 %v2777, %v2778
        %v2780 = vrot.slane %v2779, 1
        %v2781 = vadd.f32 %v2779, %v2780
        %v2782 = vadd.f32 %v2740, %v2742
        %v2783 = vadd.f32 %v2782, %v2744
        %v2784 = vadd.f32 %v2783, %v2746
        %v2785 = vrot.slane %v2784, 4
        %v2786 = vadd.f32 %v2784, %v2785
        %v2787 = vrot.slane %v2786, 2
        %v2788 = vadd.f32 %v2786, %v2787
        %v2789 = vrot.slane %v2788, 1
        %v2790 = vadd.f32 %v2788, %v2789
        %v2791 = vadd.f32 %v2741, %v2743
        %v2792 = vadd.f32 %v2791, %v2745
        %v2793 = vadd.f32 %v2792, %v2747
        %v2794 = vrot.slane %v2793, 4
        %v2795 = vadd.f32 %v2793, %v2794
        %v2796 = vrot.slane %v2795, 2
        %v2797 = vadd.f32 %v2795, %v2796
        %v2798 = vrot.slane %v2797, 1
        %v2799 = vadd.f32 %v2797, %v2798
        %v2800 = vadd.f32 %v2748, %v2750
        %v2801 = vadd.f32 %v2800, %v2752
        %v2802 = vadd.f32 %v2801, %v2754
        %v2803 = vrot.slane %v2802, 4
        %v2804 = vadd.f32 %v2802, %v2803
        %v2805 = vrot.slane %v2804, 2
        %v2806 = vadd.f32 %v2804, %v2805
        %v2807 = vrot.slane %v2806, 1
        %v2808 = vadd.f32 %v2806, %v2807
        %v2809 = vadd.f32 %v2749, %v2751
        %v2810 = vadd.f32 %v2809, %v2753
        %v2811 = vadd.f32 %v2810, %v2755
        %v2812 = vrot.slane %v2811, 4
        %v2813 = vadd.f32 %v2811, %v2812
        %v2814 = vrot.slane %v2813, 2
        %v2815 = vadd.f32 %v2813, %v2814
        %v2816 = vrot.slane %v2815, 1
        %v2817 = vadd.f32 %v2815, %v2816
        %v2818 = vadd.f32 %v2756, %v2758
        %v2819 = vadd.f32 %v2818, %v2760
        %v2820 = vadd.f32 %v2819, %v2762
        %v2821 = vrot.slane %v2820, 4
        %v2822 = vadd.f32 %v2820, %v2821
        %v2823 = vrot.slane %v2822, 2
        %v2824 = vadd.f32 %v2822, %v2823
        %v2825 = vrot.slane %v2824, 1
        %v2826 = vadd.f32 %v2824, %v2825
        %v2827 = vadd.f32 %v2757, %v2759
        %v2828 = vadd.f32 %v2827, %v2761
        %v2829 = vadd.f32 %v2828, %v2763
        %v2830 = vrot.slane %v2829, 4
        %v2831 = vadd.f32 %v2829, %v2830
        %v2832 = vrot.slane %v2831, 2
        %v2833 = vadd.f32 %v2831, %v2832
        %v2834 = vrot.slane %v2833, 1
        %v2835 = vadd.f32 %v2833, %v2834
        %v2836 = vmul.f32 %v2772, %v578
        %v2837 = vmul.f32 %v2781, %v578
        %v2838 = vmul.f32 %v2790, %v578
        %v2839 = vmul.f32 %v2799, %v578
        %v2840 = vmul.f32 %v2808, %v578
        %v2841 = vmul.f32 %v2817, %v578
        %v2842 = vmul.f32 %v2826, %v578
        %v2843 = vmul.f32 %v2835, %v578
        %v2844 = vld [vmem:[%s1] sm:$0xc0]
        %v2845 = vld [vmem:[%s1 + $0x8] sm:$0xc0]
        %v2846 = vadd.f32 %v2836, 1e-05
        %v2847 = vadd.f32 %v2837, 1e-05
        %v2848 = vadd.f32 %v2838, 1e-05
        %v2849 = vadd.f32 %v2839, 1e-05
        %v2850 = vadd.f32 %v2840, 1e-05
        %v2851 = vadd.f32 %v2841, 1e-05
        %v2852 = vadd.f32 %v2842, 1e-05
        %v2853 = vadd.f32 %v2843, 1e-05
        %v2854 = vrsqrt.pop %v2846
        %v2855 = vrsqrt.pop %v2847
        %v2856 = vrsqrt.pop %v2848
        %v2857 = vrsqrt.pop %v2849
        %v2858 = vrsqrt.pop %v2850
        %v2859 = vrsqrt.pop %v2851
        %v2860 = vrsqrt.pop %v2852
        %v2861 = vrsqrt.pop %v2853
        %v2862 = vmul.f32 %v2854, %v2844
        %v2863 = vmul.f32 %v2855, %v2845
        %v2864 = vmul.f32 %v2856, %v2844
        %v2865 = vmul.f32 %v2857, %v2845
        %v2866 = vmul.f32 %v2858, %v2844
        %v2867 = vmul.f32 %v2859, %v2845
        %v2868 = vmul.f32 %v2860, %v2844
        %v2869 = vmul.f32 %v2861, %v2845
        %v2870 = vlaneseq
        %v2871 = vshrl.u32 %v2870, 7
        %v2872 = vsub.s32 6, %v2871
        %v2873 = vrot.slane %v2862, %v2872
        %v2874 = vlaneseq
        %v2875 = vshrl.u32 %v2874, 7
        %v2876 = vsub.s32 6, %v2875
        %v2877 = vrot.slane %v2863, %v2876
        %v2878 = vlaneseq
        %v2879 = vshrl.u32 %v2878, 7
        %v2880 = vsub.s32 6, %v2879
        %v2881 = vrot.slane %v2864, %v2880
        %v2882 = vlaneseq
        %v2883 = vshrl.u32 %v2882, 7
        %v2884 = vsub.s32 6, %v2883
        %v2885 = vrot.slane %v2865, %v2884
        %v2886 = vlaneseq
        %v2887 = vshrl.u32 %v2886, 7
        %v2888 = vsub.s32 6, %v2887
        %v2889 = vrot.slane %v2866, %v2888
        %v2890 = vlaneseq
        %v2891 = vshrl.u32 %v2890, 7
        %v2892 = vsub.s32 6, %v2891
        %v2893 = vrot.slane %v2867, %v2892
        %v2894 = vlaneseq
        %v2895 = vshrl.u32 %v2894, 7
        %v2896 = vsub.s32 6, %v2895
        %v2897 = vrot.slane %v2868, %v2896
        %v2898 = vlaneseq
        %v2899 = vshrl.u32 %v2898, 7
        %v2900 = vsub.s32 6, %v2899
        %v2901 = vrot.slane %v2869, %v2900
        %v2902 = vmul.f32 %v2700, %v2873
        %v2903 = vmul.f32 %v2701, %v2877
        %v2904 = vmul.f32 %v2702, %v2873
        %v2905 = vmul.f32 %v2703, %v2877
        %v2906 = vmul.f32 %v2704, %v2873
        %v2907 = vmul.f32 %v2705, %v2877
        %v2908 = vmul.f32 %v2706, %v2873
        %v2909 = vmul.f32 %v2707, %v2877
        %v2910 = vmul.f32 %v2708, %v2881
        %v2911 = vmul.f32 %v2709, %v2885
        %v2912 = vmul.f32 %v2710, %v2881
        %v2913 = vmul.f32 %v2711, %v2885
        %v2914 = vmul.f32 %v2712, %v2881
        %v2915 = vmul.f32 %v2713, %v2885
        %v2916 = vmul.f32 %v2714, %v2881
        %v2917 = vmul.f32 %v2715, %v2885
        %v2918 = vmul.f32 %v2716, %v2889
        %v2919 = vmul.f32 %v2717, %v2893
        %v2920 = vmul.f32 %v2718, %v2889
        %v2921 = vmul.f32 %v2719, %v2893
        %v2922 = vmul.f32 %v2720, %v2889
        %v2923 = vmul.f32 %v2721, %v2893
        %v2924 = vmul.f32 %v2722, %v2889
        %v2925 = vmul.f32 %v2723, %v2893
        %v2926 = vmul.f32 %v2724, %v2897
        %v2927 = vmul.f32 %v2725, %v2901
        %v2928 = vmul.f32 %v2726, %v2897
        %v2929 = vmul.f32 %v2727, %v2901
        %v2930 = vmul.f32 %v2728, %v2897
        %v2931 = vmul.f32 %v2729, %v2901
        %v2932 = vmul.f32 %v2730, %v2897
        %v2933 = vmul.f32 %v2731, %v2901
        %v2934 = vlaneseq
        %v2935 = vshrl.u32 %v2934, 7
        %v2936 = vsub.s32 7, %v2935
        %v2937 = vrot.slane %v2844, %v2936
        %v2938 = vlaneseq
        %v2939 = vshrl.u32 %v2938, 7
        %v2940 = vsub.s32 7, %v2939
        %v2941 = vrot.slane %v2845, %v2940
        %v2942 = vadd.f32 %v2902, %v2937
        %v2943 = vadd.f32 %v2903, %v2941
        %v2944 = vadd.f32 %v2904, %v2937
        %v2945 = vadd.f32 %v2905, %v2941
        %v2946 = vadd.f32 %v2906, %v2937
        %v2947 = vadd.f32 %v2907, %v2941
        %v2948 = vadd.f32 %v2908, %v2937
        %v2949 = vadd.f32 %v2909, %v2941
        %v2950 = vadd.f32 %v2910, %v2937
        %v2951 = vadd.f32 %v2911, %v2941
        %v2952 = vadd.f32 %v2912, %v2937
        %v2953 = vadd.f32 %v2913, %v2941
        %v2954 = vadd.f32 %v2914, %v2937
        %v2955 = vadd.f32 %v2915, %v2941
        %v2956 = vadd.f32 %v2916, %v2937
        %v2957 = vadd.f32 %v2917, %v2941
        %v2958 = vadd.f32 %v2918, %v2937
        %v2959 = vadd.f32 %v2919, %v2941
        %v2960 = vadd.f32 %v2920, %v2937
        %v2961 = vadd.f32 %v2921, %v2941
        %v2962 = vadd.f32 %v2922, %v2937
        %v2963 = vadd.f32 %v2923, %v2941
        %v2964 = vadd.f32 %v2924, %v2937
        %v2965 = vadd.f32 %v2925, %v2941
        %v2966 = vadd.f32 %v2926, %v2937
        %v2967 = vadd.f32 %v2927, %v2941
        %v2968 = vadd.f32 %v2928, %v2937
        %v2969 = vadd.f32 %v2929, %v2941
        %v2970 = vadd.f32 %v2930, %v2937
        %v2971 = vadd.f32 %v2931, %v2941
        %v2972 = vadd.f32 %v2932, %v2937
        %v2973 = vadd.f32 %v2933, %v2941
        %v2974 = vxor.u32 %v2943, 2147483648
        %v2975 = vxor.u32 %v2945, 2147483648
        %v2976 = vxor.u32 %v2947, 2147483648
        %v2977 = vxor.u32 %v2949, 2147483648
        %v2978 = vxor.u32 %v2951, 2147483648
        %v2979 = vxor.u32 %v2953, 2147483648
        %v2980 = vxor.u32 %v2955, 2147483648
        %v2981 = vxor.u32 %v2957, 2147483648
        %v2982 = vxor.u32 %v2959, 2147483648
        %v2983 = vxor.u32 %v2961, 2147483648
        %v2984 = vxor.u32 %v2963, 2147483648
        %v2985 = vxor.u32 %v2965, 2147483648
        %v2986 = vxor.u32 %v2967, 2147483648
        %v2987 = vxor.u32 %v2969, 2147483648
        %v2988 = vxor.u32 %v2971, 2147483648
        %v2989 = vxor.u32 %v2973, 2147483648
        %v2990 = vmul.f32 %v2974, 1.442695
        %v2991 = vpow.pop %v2990
        %v2992 = vmul.f32 %v2975, 1.442695
        %v2993 = vpow.pop %v2992
        %v2994 = vmul.f32 %v2976, 1.442695
        %v2995 = vpow.pop %v2994
        %v2996 = vmul.f32 %v2977, 1.442695
        %v2997 = vpow.pop %v2996
        %v2998 = vmul.f32 %v2978, 1.442695
        %v2999 = vpow.pop %v2998
        %v3000 = vmul.f32 %v2979, 1.442695
        %v3001 = vpow.pop %v3000
        %v3002 = vmul.f32 %v2980, 1.442695
        %v3003 = vpow.pop %v3002
        %v3004 = vmul.f32 %v2981, 1.442695
        %v3005 = vpow.pop %v3004
        %v3006 = vmul.f32 %v2982, 1.442695
        %v3007 = vpow.pop %v3006
        %v3008 = vmul.f32 %v2983, 1.442695
        %v3009 = vpow.pop %v3008
        %v3010 = vmul.f32 %v2984, 1.442695
        %v3011 = vpow.pop %v3010
        %v3012 = vmul.f32 %v2985, 1.442695
        %v3013 = vpow.pop %v3012
        %v3014 = vmul.f32 %v2986, 1.442695
        %v3015 = vpow.pop %v3014
        %v3016 = vmul.f32 %v2987, 1.442695
        %v3017 = vpow.pop %v3016
        %v3018 = vmul.f32 %v2988, 1.442695
        %v3019 = vpow.pop %v3018
        %v3020 = vmul.f32 %v2989, 1.442695
        %v3021 = vpow.pop %v3020
        %v3022 = vadd.f32 %v2991, 1.0
        %v3023 = vadd.f32 %v2993, 1.0
        %v3024 = vadd.f32 %v2995, 1.0
        %v3025 = vadd.f32 %v2997, 1.0
        %v3026 = vadd.f32 %v2999, 1.0
        %v3027 = vadd.f32 %v3001, 1.0
        %v3028 = vadd.f32 %v3003, 1.0
        %v3029 = vadd.f32 %v3005, 1.0
        %v3030 = vadd.f32 %v3007, 1.0
        %v3031 = vadd.f32 %v3009, 1.0
        %v3032 = vadd.f32 %v3011, 1.0
        %v3033 = vadd.f32 %v3013, 1.0
        %v3034 = vadd.f32 %v3015, 1.0
        %v3035 = vadd.f32 %v3017, 1.0
        %v3036 = vadd.f32 %v3019, 1.0
        %v3037 = vadd.f32 %v3021, 1.0
        %v3038 = vrcp.pop %v3022
        %v3039 = vmul.f32 1.0, %v3038
        %v3040 = vrcp.pop %v3023
        %v3041 = vmul.f32 1.0, %v3040
        %v3042 = vrcp.pop %v3024
        %v3043 = vmul.f32 1.0, %v3042
        %v3044 = vrcp.pop %v3025
        %v3045 = vmul.f32 1.0, %v3044
        %v3046 = vrcp.pop %v3026
        %v3047 = vmul.f32 1.0, %v3046
        %v3048 = vrcp.pop %v3027
        %v3049 = vmul.f32 1.0, %v3048
        %v3050 = vrcp.pop %v3028
        %v3051 = vmul.f32 1.0, %v3050
        %v3052 = vrcp.pop %v3029
        %v3053 = vmul.f32 1.0, %v3052
        %v3054 = vrcp.pop %v3030
        %v3055 = vmul.f32 1.0, %v3054
        %v3056 = vrcp.pop %v3031
        %v3057 = vmul.f32 1.0, %v3056
        %v3058 = vrcp.pop %v3032
        %v3059 = vmul.f32 1.0, %v3058
        %v3060 = vrcp.pop %v3033
        %v3061 = vmul.f32 1.0, %v3060
        %v3062 = vrcp.pop %v3034
        %v3063 = vmul.f32 1.0, %v3062
        %v3064 = vrcp.pop %v3035
        %v3065 = vmul.f32 1.0, %v3064
        %v3066 = vrcp.pop %v3036
        %v3067 = vmul.f32 1.0, %v3066
        %v3068 = vrcp.pop %v3037
        %v3069 = vmul.f32 1.0, %v3068
        %v3070 = vmul.f32 %v2942, %v3039
        %v3071 = vmul.f32 %v2944, %v3041
        %v3072 = vmul.f32 %v2946, %v3043
        %v3073 = vmul.f32 %v2948, %v3045
        %v3074 = vmul.f32 %v2950, %v3047
        %v3075 = vmul.f32 %v2952, %v3049
        %v3076 = vmul.f32 %v2954, %v3051
        %v3077 = vmul.f32 %v2956, %v3053
        %v3078 = vmul.f32 %v2958, %v3055
        %v3079 = vmul.f32 %v2960, %v3057
        %v3080 = vmul.f32 %v2962, %v3059
        %v3081 = vmul.f32 %v2964, %v3061
        %v3082 = vmul.f32 %v2966, %v3063
        %v3083 = vmul.f32 %v2968, %v3065
        %v3084 = vmul.f32 %v2970, %v3067
        %v3085 = vmul.f32 %v2972, %v3069
        %v3086 = vadd.f32 %v2387, %v3070
        %v3087 = vadd.f32 %v2388, %v3071
        %v3088 = vadd.f32 %v2389, %v3072
        %v3089 = vadd.f32 %v2390, %v3073
        %v3090 = vadd.f32 %v2391, %v3074
        %v3091 = vadd.f32 %v2392, %v3075
        %v3092 = vadd.f32 %v2393, %v3076
        %v3093 = vadd.f32 %v2394, %v3077
        %v3094 = vadd.f32 %v2395, %v3078
        %v3095 = vadd.f32 %v2396, %v3079
        %v3096 = vadd.f32 %v2397, %v3080
        %v3097 = vadd.f32 %v2398, %v3081
        %v3098 = vadd.f32 %v2399, %v3082
        %v3099 = vadd.f32 %v2400, %v3083
        %v3100 = vadd.f32 %v2401, %v3084
        %v3101 = vadd.f32 %v2402, %v3085
        %v3102 = vmul.f32 %v3086, 0.70710677
        %v3103 = vmul.f32 %v3087, 0.70710677
        %v3104 = vmul.f32 %v3088, 0.70710677
        %v3105 = vmul.f32 %v3089, 0.70710677
        %v3106 = vmul.f32 %v3090, 0.70710677
        %v3107 = vmul.f32 %v3091, 0.70710677
        %v3108 = vmul.f32 %v3092, 0.70710677
        %v3109 = vmul.f32 %v3093, 0.70710677
        %v3110 = vmul.f32 %v3094, 0.70710677
        %v3111 = vmul.f32 %v3095, 0.70710677
        %v3112 = vmul.f32 %v3096, 0.70710677
        %v3113 = vmul.f32 %v3097, 0.70710677
        %v3114 = vmul.f32 %v3098, 0.70710677
        %v3115 = vmul.f32 %v3099, 0.70710677
        %v3116 = vmul.f32 %v3100, 0.70710677
        %v3117 = vmul.f32 %v3101, 0.70710677
        %3118 = vst.msk [vmem:[%s297] sm:$0xff] %vm368, %v3102
        %3119 = vst.msk [vmem:[%s297 + $0x8] sm:$0xff] %vm368, %v3103
        %3120 = vst.msk [vmem:[%s297 + $0x10] sm:$0xff] %vm368, %v3104
        %3121 = vst.msk [vmem:[%s297 + $0x18] sm:$0xff] %vm368, %v3105
        %3122 = vst.msk [vmem:[%s297 + $0x20] sm:$0xff] %vm368, %v3106
        %3123 = vst.msk [vmem:[%s297 + $0x28] sm:$0xff] %vm368, %v3107
        %3124 = vst.msk [vmem:[%s297 + $0x30] sm:$0xff] %vm368, %v3108
        %3125 = vst.msk [vmem:[%s297 + $0x38] sm:$0xff] %vm368, %v3109
        %3126 = vst.msk [vmem:[%s297 + $0x40] sm:$0xff] %vm368, %v3110
        %3127 = vst.msk [vmem:[%s297 + $0x48] sm:$0xff] %vm368, %v3111
        %3128 = vst.msk [vmem:[%s297 + $0x50] sm:$0xff] %vm368, %v3112
        %3129 = vst.msk [vmem:[%s297 + $0x58] sm:$0xff] %vm368, %v3113
        %3130 = vst.msk [vmem:[%s297 + $0x60] sm:$0xff] %vm368, %v3114
        %3131 = vst.msk [vmem:[%s297 + $0x68] sm:$0xff] %vm368, %v3115
        %3132 = vst.msk [vmem:[%s297 + $0x70] sm:$0xff] %vm368, %v3116
        %3133 = vst.msk [vmem:[%s297 + $0x78] sm:$0xff] %vm368, %v3117
        %s3134 = smul.u32 16, %s19
        %p3135 = scmp.lt.s32.totalorder %s3134, 31
        %s3136 = scalar_select %p3135, %s3134, 31
        %s3137 = smul.addr %s3136, 8
        %s3138 = scalar_lea.vmem %s6, %s3137
        // Predicated region
        $region57: #{tpu_custom_call.1} parent=43 // pred_check
          %p3139 = pneg %p168
        $region58: #{tpu_custom_call.1} parent=43 // pred_check_branch
          %3141 = sbr.rel (%p3139) target = $region60
        $region59: #{tpu_custom_call.1} parent=43 // pred_region
          %s3142 = smul.u32 16, %s19
        $region60: #{tpu_custom_call.1} parent=43 // pred_fallthru
          _
      $region44: #{tpu_custom_call.1} parent=5 // pred_fallthru
        _
      %p3143 = scmp.le.s32.totalorder 2, %s14
      // Predicated region
      $region61: #{tpu_custom_call.1} parent=5 // pred_check
        %p3144 = pneg %p3143
      $region62: #{tpu_custom_call.1} parent=5 // pred_check_branch
        %3146 = sbr.rel (%p3144) target = $region64
      $region63: #{tpu_custom_call.1} parent=5 // pred_region
        %s3147 = ssub.s32 %s14, 2
        // Predicated region
        $region65: #{tpu_custom_call.1} parent=63 // pred_check
          %p3148 = pneg %p174
        $region66: #{tpu_custom_call.1} parent=63 // pred_check_branch
          %3150 = sbr.rel (%p3148) target = $region68
        $region67: #{tpu_custom_call.1} parent=63 // pred_region
          %s3151 = smul.u32 16, %s20
          %p3152 = scmp.lt.s32.totalorder %s3151, 31
          %s3153 = scalar_select %p3152, %s3151, 31
          %s3154 = smul.addr %s3153, 8
          %s3155 = scalar_lea.vmem %s6, %s3154
        $region68: #{tpu_custom_call.1} parent=63 // pred_fallthru
          _
      $region64: #{tpu_custom_call.1} parent=5 // pred_fallthru
        _
    $region6: #{tpu_custom_call.1} parent=1 // loop_footer
      %s18 = sadd.s32 1, %s14
    $region7: #{tpu_custom_call.1} parent=1 // loop_footer_branch
      %13 = sbr.rel target = $region3
    $region8: #{tpu_custom_call.1} parent=1 // loop_exit
      _
    %3156 = vsyncpa [#allocation3], 1
    %s3157 = scalar_lea.sflag [#allocation3], 1
    %3158 = vsyncpa %s3157, 1
    %3159 = vsyncpa [#allocation5], 1

</llo_original>
